<compile_context>
chip_gen: v6e
topology: v6e:2x2x1
jax: 0.10.0
libtpu: 0.0.40
codegen_flags: <defaults>
</compile_context>

<pallas_src>
import math
import numpy as np
import jax
import jax.numpy as jnp
from jax.experimental import pallas as pl
from jax.experimental.pallas import tpu as pltpu

# ---- constants from the PyTorch module / torchaudio defaults -------------
WIN_LENGTH = 400
HOP_LENGTH = WIN_LENGTH // 2          # 200
N_FFT = 400
N_MELS = 40
N_MFCC = 20

SAMPLE_RATE = 16000                   # torchaudio.transforms.MFCC default
F_MIN = 0.0
F_MAX = SAMPLE_RATE / 2.0
TOP_DB = 80.0
AMIN = 1e-10
DELTA_DENOM = 10.0                    # 2 * sum(n^2, n=1..2) for win_length=5

N_FREQ = N_FFT // 2 + 1               # 201 one-sided bins
# MXU / lane friendly zero padding (padding contributes exactly 0 everywhere)
K_PAD = 512                           # padded frame length fed to the DFT matmul
FREQ_PAD = 256                        # padded frequency bins
MEL_PAD = 128                         # padded mel bins (lane dense)
COEF_PAD = 32                         # padded MFCC coefficient columns
N_OUT = 3 * N_MFCC + 3                # 63 feature rows
ROW_PAD = 64                          # rows in the emitted block (63 + 1 pad)
F_ALIGN = 16                          # in-kernel frame-count alignment


# ---------------- deterministic constant matrices (numpy) -----------------
def _hann_window_periodic(n):
    k = np.arange(n, dtype=np.float64)
    return 0.5 * (1.0 - np.cos(2.0 * np.pi * k / n))


def _dft_matrix():
    """Windowed real-DFT [cos | sin] matrix, zero padded to (K_PAD, 2*FREQ_PAD)."""
    win = _hann_window_periodic(N_FFT)
    k = np.arange(N_FFT, dtype=np.float64)[:, None]
    f = np.arange(N_FREQ, dtype=np.float64)[None, :]
    ang = 2.0 * np.pi * k * f / N_FFT
    m = np.zeros((K_PAD, 2 * FREQ_PAD), dtype=np.float32)
    m[:N_FFT, :N_FREQ] = (win[:, None] * np.cos(ang)).astype(np.float32)
    m[:N_FFT, FREQ_PAD:FREQ_PAD + N_FREQ] = (win[:, None] * np.sin(ang)).astype(np.float32)
    return m


def _mel_filterbank():
    """torchaudio melscale_fbanks (HTK, norm=None), zero padded to (FREQ_PAD, MEL_PAD)."""
    def hz_to_mel(f):
        return 2595.0 * np.log10(1.0 + np.asarray(f, np.float64) / 700.0)

    def mel_to_hz(m):
        return 700.0 * (10.0 ** (np.asarray(m, np.float64) / 2595.0) - 1.0)

    all_freqs = np.linspace(0.0, SAMPLE_RATE // 2, N_FREQ)
    m_pts = np.linspace(hz_to_mel(F_MIN), hz_to_mel(F_MAX), N_MELS + 2)
    f_pts = mel_to_hz(m_pts)
    f_diff = f_pts[1:] - f_pts[:-1]
    slopes = f_pts[None, :] - all_freqs[:, None]
    down = (-1.0 * slopes[:, :-2]) / f_diff[:-1]
    up = slopes[:, 2:] / f_diff[1:]
    fb = np.maximum(0.0, np.minimum(down, up))           # (N_FREQ, N_MELS)
    out = np.zeros((FREQ_PAD, MEL_PAD), dtype=np.float32)
    out[:N_FREQ, :N_MELS] = fb.astype(np.float32)
    return out


def _dct_matrix():
    """Ortho DCT-II as (mel, coef), zero padded to (MEL_PAD, COEF_PAD).
    Padded mel rows MUST stay exactly zero (dB there is nonzero after clamp)."""
    n = np.arange(N_MELS, dtype=np.float64)[:, None]
    k = np.arange(N_MFCC, dtype=np.float64)[None, :]
    dct = np.cos(np.pi / N_MELS * (n + 0.5) * k)          # (N_MELS, N_MFCC)
    dct[:, 0] *= 1.0 / math.sqrt(2.0)
    dct *= math.sqrt(2.0 / N_MELS)
    out = np.zeros((MEL_PAD, COEF_PAD), dtype=np.float32)
    out[:N_MELS, :N_MFCC] = dct.astype(np.float32)
    return out


# ----------------------- in-kernel delta helpers ---------------------------
def _shift_time(x, n):
    """y[..., t] = x[..., clamp(t + n, 0, W-1)] (replicate edges), static n.
    Combined with the replicated tail (columns >= F hold x[..., F-1]) this is
    exactly torchaudio's replicate padding at the true frame count F."""
    w = x.shape[-1]
    if n == 0 or w == 1:
        return x
    # TODO(synk): pltpu.roll + iota/where edge fix would move this to the XLU
    # slot; the lane concat below is the known-good (previously compiled) path.
    n = int(np.clip(n, -(w - 1), w - 1))
    if n > 0:
        edge = jnp.broadcast_to(x[..., w - 1:w], x.shape[:-1] + (n,))
        return jnp.concatenate([x[..., n:], edge], axis=-1)
    m = -n
    edge = jnp.broadcast_to(x[..., 0:1], x.shape[:-1] + (m,))
    return jnp.concatenate([edge, x[..., :w - m]], axis=-1)


def _delta(x):
    """torchaudio.functional.compute_deltas (win_length=5) along the last axis."""
    return ((_shift_time(x, 1) - _shift_time(x, -1))
            + 2.0 * (_shift_time(x, 2) - _shift_time(x, -2))) / DELTA_DENOM


# ------------------------------- kernel -----------------------------------
def _make_kernel(gb, C, F, F_cmp, F_out):
    G = gb * C   # channel-items per grid step (gb whole batch items)

    def _replicate_tail(x):
        # Columns t >= F hold x[..., F-1] so shifted reads beyond the last real
        # frame see torchaudio's replicate-padded value.
        if F >= F_cmp:
            return x
        t = jax.lax.broadcasted_iota(jnp.int32, (1, 1, F_cmp), 2)
        return jnp.where(t < F, x, x[..., F - 1:F])

    def kernel(hops_ref, dft_ref, mel_ref, dct_ref, out_ref):
        h = hops_ref[...]                                        # (G, F_cmp+1, HOP) f32
        # Frame f = [hop f | hop f+1 | zeros] (WIN == 2*HOP), built in VMEM so
        # no overlapping frames array ever hits HBM.
        frames = jnp.concatenate(
            [h[:, :F_cmp, :], h[:, 1:, :],
             jnp.zeros((G, F_cmp, K_PAD - WIN_LENGTH), jnp.float32)], axis=-1)
        if F < F_cmp:
            # Zero padded frame rows -> their dB is the global floor (-100 dB)
            # and can never raise the per-item top_db max.
            keep = jax.lax.broadcasted_iota(jnp.int32, (1, F_cmp, K_PAD), 1) < F
            frames = jnp.where(keep, frames, jnp.zeros((), frames.dtype))
        x = frames.reshape(G * F_cmp, K_PAD).astype(jnp.bfloat16)

        # Windowed real DFT: one fused [cos|sin] matmul on bf16 operands (f32 acc).
        spec = jnp.dot(x, dft_ref[...], preferred_element_type=jnp.float32)
        re = spec[:, :FREQ_PAD]
        im = spec[:, FREQ_PAD:]
        power = re * re + im * im                                # (G*F_cmp, FREQ_PAD) f32

        # Mel filterbank (small f32 matmul) -> power dB.
        mel = jnp.dot(power, mel_ref[...], preferred_element_type=jnp.float32)
        db = 10.0 * jnp.log10(jnp.maximum(mel, AMIN))            # (G*F_cmp, MEL_PAD)

        # top_db clamp: torchaudio reduces over (channels, mels, frames) per batch
        # item (padded frames were zeroed above; padded batch items are separate
        # rows of gb, so neither can perturb a real item's max).
        dbg = db.reshape(gb, C * F_cmp, MEL_PAD)
        mx = jnp.max(dbg, axis=2, keepdims=True)
        mx = jnp.max(mx, axis=1, keepdims=True)                  # (gb, 1, 1)
        dbg = jnp.maximum(dbg, mx - TOP_DB)

        # Ortho DCT-II as ONE big MXU matmul, then per-item XLU transposes into
        # coefficient-major (item, coef, time) layout.
        mf = jnp.dot(dbg.reshape(G * F_cmp, MEL_PAD), dct_ref[...],
                     preferred_element_type=jnp.float32)         # (G*F_cmp, COEF_PAD)
        mf = mf.reshape(G, F_cmp, COEF_PAD)
        mfcc = jnp.transpose(mf, (0, 2, 1))[:, :N_MFCC, :]       # (G, 20, F_cmp)

        # 5-tap shifted-difference deltas (replicate edges), applied twice.
        mfcc = _replicate_tail(mfcc)
        d1 = _replicate_tail(_delta(mfcc))
        d2 = _delta(d1)

        # Store rows directly (no concatenated temporary; pad row never written):
        # rows = mfcc(20) | d1(20) | d2(20) | energy | d_energy | dd_energy.
        if F_out > F_cmp:  # lane-dense store path (pad frames with zeros once)
            zpad = jnp.zeros((G, N_MFCC, F_out - F_cmp), jnp.float32)
            mfcc = jnp.concatenate([mfcc, zpad], axis=-1)
            d1 = jnp.concatenate([d1, zpad], axis=-1)
            d2 = jnp.concatenate([d2, zpad], axis=-1)
        out_ref[:, 0:N_MFCC, :] = mfcc
        out_ref[:, N_MFCC:2 * N_MFCC, :] = d1
        out_ref[:, 2 * N_MFCC:3 * N_MFCC, :] = d2
        out_ref[:, 3 * N_MFCC:3 * N_MFCC + 1, :] = mfcc[:, 0:1, :]
        out_ref[:, 3 * N_MFCC + 1:3 * N_MFCC + 2, :] = d1[:, 0:1, :]
        out_ref[:, 3 * N_MFCC + 2:3 * N_MFCC + 3, :] = d2[:, 0:1, :]

    return kernel


# ------------------------------ wrapper ------------------------------------
def _group_batches(B, C, F_cmp):
    """Batch items per grid step: target ~1024 MXU rows (G*F_cmp), keep >= 2
    grid steps so both v7x TensorCores get work, minimize batch padding."""
    target_rows = 1024
    items = max(1, target_rows // F_cmp)          # channel-items per step
    gb = max(1, items // C)
    if B >= 2:
        gb = min(gb, (B + 1) // 2)                # at least two grid steps
    gb = min(gb, B)
    steps = -(-B // gb)
    return -(-B // steps)


def feature_extractor_v2(x):
    """x: (B, C, T) float32 waveform -> (B, C, 63, frames) float32."""
    x = jnp.asarray(x, jnp.float32)
    B, C, T = x.shape
    pad = N_FFT // 2
    # center=True, pad_mode='reflect' (cheap host-side glue, no gather).
    xp = jnp.pad(x, ((0, 0), (0, 0), (pad, pad)), mode="reflect")
    F = 1 + (xp.shape[-1] - N_FFT) // HOP_LENGTH
    F_cmp = -(-F // F_ALIGN) * F_ALIGN                    # in-kernel frame width
    F_out = (-(-F // 128) * 128) if F >= 64 else F_cmp    # lane-dense store width
    gb = _group_batches(B, C, F_cmp)
    B_pad = -(-B // gb) * gb
    G = gb * C
    # TODO(synk): add a second ("arbitrary") grid axis over frame tiles (with a
    # +/-2 frame halo and two-pass top_db) for very long clips on v7x (64 MiB VMEM).

    # Hop chunks: WIN == 2*HOP so frame f == concat(hop f, hop f+1); this is a
    # pure reshape of the padded waveform (no strided frames array in HBM).
    need = (F_cmp + 1) * HOP_LENGTH
    cur = xp.shape[-1]
    if need > cur:
        xp = jnp.pad(xp, ((0, 0), (0, 0), (0, need - cur)))
    else:
        xp = xp[:, :, :need]                      # trailing samples no frame uses
    hops = xp.reshape(B * C, F_cmp + 1, HOP_LENGTH)
    hops = jnp.pad(hops, ((0, (B_pad - B) * C), (0, 0), (0, 0)))
    # TODO(synk): ship hops as bf16 (halves input HBM bytes) once the packed
    # (16,128) sublane-offset slice inside the kernel is validated on all gens.

    dft = jnp.asarray(_dft_matrix(), jnp.bfloat16)
    mel = jnp.asarray(_mel_filterbank(), jnp.float32)
    dct = jnp.asarray(_dct_matrix(), jnp.float32)

    kernel = _make_kernel(gb, C, F, F_cmp, F_out)
    out = pl.pallas_call(
        kernel,
        out_shape=jax.ShapeDtypeStruct((B_pad * C, ROW_PAD, F_out), jnp.float32),
        grid_spec=pltpu.PrefetchScalarGridSpec(
            num_scalar_prefetch=0,
            grid=(B_pad // gb,),
            in_specs=[
                pl.BlockSpec((G, F_cmp + 1, HOP_LENGTH), lambda i: (i, 0, 0)),   # hops
                # TODO(synk): pipeline_mode=pl.Buffered(1) on the three constant
                # operands would halve their VMEM footprint once verified here.
                pl.BlockSpec((K_PAD, 2 * FREQ_PAD), lambda i: (0, 0)),           # [cos|sin]
                pl.BlockSpec((FREQ_PAD, MEL_PAD), lambda i: (0, 0)),             # mel fb
                pl.BlockSpec((MEL_PAD, COEF_PAD), lambda i: (0, 0)),             # DCT
            ],
            out_specs=pl.BlockSpec((G, ROW_PAD, F_out), lambda i: (i, 0, 0)),
        ),
        compiler_params=pltpu.CompilerParams(
            dimension_semantics=("parallel",),
            vmem_limit_bytes=48 * 1024 * 1024,
        ),
    )(hops, dft, mel, dct)

    return out.reshape(B_pad, C, ROW_PAD, F_out)[:B, :, :N_OUT, :F]


if __name__ == "__main__":
    key = jax.random.PRNGKey(0)
    B, C, T = 9, 2, 2000                 # small multi-channel waveform batch
    x = jax.random.normal(key, (B, C, T), dtype=jnp.float32)

    feats = feature_extractor_v2(x)
    feats = jax.block_until_ready(feats)

    expected_frames = 1 + T // HOP_LENGTH   # center-padded STFT frame count
    assert feats.shape == (B, C, 3 * N_MFCC + 3, expected_frames), feats.shape
    assert feats.dtype == jnp.float32
    assert bool(jnp.all(jnp.isfinite(feats)))
    print("KERNEL_OK")
</pallas_src>

<mosaic_0001>
module attributes {stable_mosaic.version = 11 : i64} {
  func.func @kernel(%arg0: i32, %arg1: memref<10x17x200xf32, #tpu.memory_space<vmem>>, %arg2: memref<512x512xbf16, #tpu.memory_space<vmem>>, %arg3: memref<256x128xf32, #tpu.memory_space<vmem>>, %arg4: memref<128x32xf32, #tpu.memory_space<vmem>>, %arg5: memref<10x64x16xf32, #tpu.memory_space<vmem>>) attributes {dimension_semantics = [#tpu.dimension_semantics<parallel>], iteration_bounds = array<i64: 2>, scalar_prefetch = 0 : i64, scratch_operands = 0 : i64, tpu.core_type = #tpu.core_type<tc>, window_params = [{transform_indices = @transform_0, window_bounds = array<i64: 10, 17, 200>}, {pipeline_mode = #tpu.pipeline_mode<synchronous>, transform_indices = @transform_1, window_bounds = array<i64: 512, 512>}, {pipeline_mode = #tpu.pipeline_mode<synchronous>, transform_indices = @transform_2, window_bounds = array<i64: 256, 128>}, {pipeline_mode = #tpu.pipeline_mode<synchronous>, transform_indices = @transform_3, window_bounds = array<i64: 128, 32>}, {transform_indices = @transform_4, window_bounds = array<i64: 10, 64, 16>}]} {
    %c0 = arith.constant 0 : index
    %c0_0 = arith.constant 0 : index
    %c0_1 = arith.constant 0 : index
    %0 = vector.load %arg1[%c0, %c0_0, %c0_1] : memref<10x17x200xf32, #tpu.memory_space<vmem>>, vector<10x17x200xf32>
    %1 = vector.extract_strided_slice %0 {offsets = [0, 0, 0], sizes = [10, 16, 200], strides = [1, 1, 1]} : vector<10x17x200xf32> to vector<10x16x200xf32>
    %2 = vector.extract_strided_slice %0 {offsets = [0, 1, 0], sizes = [10, 16, 200], strides = [1, 1, 1]} : vector<10x17x200xf32> to vector<10x16x200xf32>
    %cst = arith.constant 0.000000e+00 : f32
    %3 = vector.broadcast %cst : f32 to vector<10x16x112xf32>
    %4 = tpu.concatenate %1, %2, %3 in 2 : vector<10x16x200xf32>, vector<10x16x200xf32>, vector<10x16x112xf32> -> vector<10x16x512xf32>
    %5 = tpu.iota {dimensions = array<i32: 1>} : vector<1x16x512xi32>
    %c11_i32 = arith.constant 11 : i32
    %6 = vector.broadcast %c11_i32 : i32 to vector<1x16x512xi32>
    %7 = arith.cmpi slt, %5, %6 : vector<1x16x512xi32>
    %cst_2 = arith.constant 0.000000e+00 : f32
    %8 = vector.shape_cast %7 : vector<1x16x512xi1> to vector<1x16x512xi1>
    %9 = vector.broadcast %8 : vector<1x16x512xi1> to vector<10x16x512xi1>
    %10 = vector.broadcast %cst_2 : f32 to vector<10x16x512xf32>
    %11 = arith.select %9, %4, %10 : vector<10x16x512xi1>, vector<10x16x512xf32>
    %12 = vector.shape_cast %11 : vector<10x16x512xf32> to vector<160x512xf32>
    %13 = arith.truncf %12 : vector<160x512xf32> to vector<160x512xbf16>
    %c0_3 = arith.constant 0 : index
    %c0_4 = arith.constant 0 : index
    %14 = vector.load %arg2[%c0_3, %c0_4] : memref<512x512xbf16, #tpu.memory_space<vmem>>, vector<512x512xbf16>
    %cst_5 = arith.constant dense<0.000000e+00> : vector<160x512xf32>
    %15 = tpu.matmul %13, %14, %cst_5 {dimension_numbers = #tpu.dot_dimension_numbers<[1], [0], [0], [1], [0, 0, 1, 1], [], []>} : vector<160x512xbf16>, vector<512x512xbf16>, vector<160x512xf32> -> vector<160x512xf32>
    %16 = vector.extract_strided_slice %15 {offsets = [0, 0], sizes = [160, 256], strides = [1, 1]} : vector<160x512xf32> to vector<160x256xf32>
    %17 = vector.extract_strided_slice %15 {offsets = [0, 256], sizes = [160, 256], strides = [1, 1]} : vector<160x512xf32> to vector<160x256xf32>
    %18 = arith.mulf %16, %16 : vector<160x256xf32>
    %19 = arith.mulf %17, %17 : vector<160x256xf32>
    %20 = arith.addf %18, %19 : vector<160x256xf32>
    %c0_6 = arith.constant 0 : index
    %c0_7 = arith.constant 0 : index
    %21 = vector.load %arg3[%c0_6, %c0_7] : memref<256x128xf32, #tpu.memory_space<vmem>>, vector<256x128xf32>
    %cst_8 = arith.constant dense<0.000000e+00> : vector<160x128xf32>
    %22 = tpu.matmul %20, %21, %cst_8 {dimension_numbers = #tpu.dot_dimension_numbers<[1], [0], [0], [1], [0, 0, 1, 1], [], []>} : vector<160x256xf32>, vector<256x128xf32>, vector<160x128xf32> -> vector<160x128xf32>
    %cst_9 = arith.constant 1.000000e-10 : f32
    %23 = vector.broadcast %cst_9 : f32 to vector<160x128xf32>
    %24 = arith.maximumf %22, %23 : vector<160x128xf32>
    %25 = math.log %24 : vector<160x128xf32>
    %cst_10 = arith.constant 0.434294492 : f32
    %26 = vector.broadcast %cst_10 : f32 to vector<160x128xf32>
    %27 = arith.mulf %25, %26 : vector<160x128xf32>
    %cst_11 = arith.constant 1.000000e+01 : f32
    %28 = vector.broadcast %cst_11 : f32 to vector<160x128xf32>
    %29 = arith.mulf %28, %27 : vector<160x128xf32>
    %30 = vector.shape_cast %29 : vector<160x128xf32> to vector<5x32x128xf32>
    %cst_12 = arith.constant dense<0xFF800000> : vector<5x32xf32>
    %31 = vector.multi_reduction <maximumf>, %30, %cst_12 [2] : vector<5x32x128xf32> to vector<5x32xf32>
    %32 = vector.shape_cast %31 : vector<5x32xf32> to vector<5x32x1xf32>
    %cst_13 = arith.constant dense<0xFF800000> : vector<5x1xf32>
    %33 = vector.multi_reduction <maximumf>, %32, %cst_13 [1] : vector<5x32x1xf32> to vector<5x1xf32>
    %34 = vector.shape_cast %33 : vector<5x1xf32> to vector<5x1x1xf32>
    %cst_14 = arith.constant 8.000000e+01 : f32
    %35 = vector.broadcast %cst_14 : f32 to vector<5x1x1xf32>
    %36 = arith.subf %34, %35 : vector<5x1x1xf32>
    %37 = vector.broadcast %36 : vector<5x1x1xf32> to vector<5x32x128xf32>
    %38 = arith.maximumf %30, %37 : vector<5x32x128xf32>
    %39 = vector.shape_cast %38 : vector<5x32x128xf32> to vector<160x128xf32>
    %c0_15 = arith.constant 0 : index
    %c0_16 = arith.constant 0 : index
    %40 = vector.load %arg4[%c0_15, %c0_16] : memref<128x32xf32, #tpu.memory_space<vmem>>, vector<128x32xf32>
    %cst_17 = arith.constant dense<0.000000e+00> : vector<160x32xf32>
    %41 = tpu.matmul %39, %40, %cst_17 {dimension_numbers = #tpu.dot_dimension_numbers<[1], [0], [0], [1], [0, 0, 1, 1], [], []>} : vector<160x128xf32>, vector<128x32xf32>, vector<160x32xf32> -> vector<160x32xf32>
    %42 = vector.shape_cast %41 : vector<160x32xf32> to vector<10x16x32xf32>
    %43 = tpu.transpose %42, [0, 2, 1] : vector<10x16x32xf32> -> vector<10x32x16xf32>
    %44 = vector.extract_strided_slice %43 {offsets = [0, 0, 0], sizes = [10, 20, 16], strides = [1, 1, 1]} : vector<10x32x16xf32> to vector<10x20x16xf32>
    %45 = tpu.iota {dimensions = array<i32: 2>} : vector<1x1x16xi32>
    %c11_i32_18 = arith.constant 11 : i32
    %46 = vector.broadcast %c11_i32_18 : i32 to vector<1x1x16xi32>
    %47 = arith.cmpi slt, %45, %46 : vector<1x1x16xi32>
    %48 = vector.extract_strided_slice %44 {offsets = [0, 0, 10], sizes = [10, 20, 1], strides = [1, 1, 1]} : vector<10x20x16xf32> to vector<10x20x1xf32>
    %49 = vector.shape_cast %47 : vector<1x1x16xi1> to vector<1x1x16xi1>
    %50 = vector.broadcast %49 : vector<1x1x16xi1> to vector<10x20x16xi1>
    %51 = vector.shape_cast %48 : vector<10x20x1xf32> to vector<10x20x1xf32>
    %52 = vector.broadcast %51 : vector<10x20x1xf32> to vector<10x20x16xf32>
    %53 = arith.select %50, %44, %52 : vector<10x20x16xi1>, vector<10x20x16xf32>
    %54 = vector.extract_strided_slice %53 {offsets = [0, 0, 15], sizes = [10, 20, 1], strides = [1, 1, 1]} : vector<10x20x16xf32> to vector<10x20x1xf32>
    %55 = vector.extract_strided_slice %53 {offsets = [0, 0, 1], sizes = [10, 20, 15], strides = [1, 1, 1]} : vector<10x20x16xf32> to vector<10x20x15xf32>
    %56 = tpu.concatenate %55, %54 in 2 : vector<10x20x15xf32>, vector<10x20x1xf32> -> vector<10x20x16xf32>
    %57 = vector.extract_strided_slice %53 {offsets = [0, 0, 0], sizes = [10, 20, 1], strides = [1, 1, 1]} : vector<10x20x16xf32> to vector<10x20x1xf32>
    %58 = vector.extract_strided_slice %53 {offsets = [0, 0, 0], sizes = [10, 20, 15], strides = [1, 1, 1]} : vector<10x20x16xf32> to vector<10x20x15xf32>
    %59 = tpu.concatenate %57, %58 in 2 : vector<10x20x1xf32>, vector<10x20x15xf32> -> vector<10x20x16xf32>
    %60 = arith.subf %56, %59 : vector<10x20x16xf32>
    %61 = vector.extract_strided_slice %53 {offsets = [0, 0, 15], sizes = [10, 20, 1], strides = [1, 1, 1]} : vector<10x20x16xf32> to vector<10x20x1xf32>
    %62 = vector.shape_cast %61 : vector<10x20x1xf32> to vector<10x20x1xf32>
    %63 = vector.broadcast %62 : vector<10x20x1xf32> to vector<10x20x2xf32>
    %64 = vector.extract_strided_slice %53 {offsets = [0, 0, 2], sizes = [10, 20, 14], strides = [1, 1, 1]} : vector<10x20x16xf32> to vector<10x20x14xf32>
    %65 = tpu.concatenate %64, %63 in 2 : vector<10x20x14xf32>, vector<10x20x2xf32> -> vector<10x20x16xf32>
    %66 = vector.extract_strided_slice %53 {offsets = [0, 0, 0], sizes = [10, 20, 1], strides = [1, 1, 1]} : vector<10x20x16xf32> to vector<10x20x1xf32>
    %67 = vector.shape_cast %66 : vector<10x20x1xf32> to vector<10x20x1xf32>
    %68 = vector.broadcast %67 : vector<10x20x1xf32> to vector<10x20x2xf32>
    %69 = vector.extract_strided_slice %53 {offsets = [0, 0, 0], sizes = [10, 20, 14], strides = [1, 1, 1]} : vector<10x20x16xf32> to vector<10x20x14xf32>
    %70 = tpu.concatenate %68, %69 in 2 : vector<10x20x2xf32>, vector<10x20x14xf32> -> vector<10x20x16xf32>
    %71 = arith.subf %65, %70 : vector<10x20x16xf32>
    %cst_19 = arith.constant 2.000000e+00 : f32
    %72 = vector.broadcast %cst_19 : f32 to vector<10x20x16xf32>
    %73 = arith.mulf %72, %71 : vector<10x20x16xf32>
    %74 = arith.addf %60, %73 : vector<10x20x16xf32>
    %cst_20 = arith.constant 1.000000e+01 : f32
    %75 = vector.broadcast %cst_20 : f32 to vector<10x20x16xf32>
    %76 = arith.divf %74, %75 : vector<10x20x16xf32>
    %77 = tpu.iota {dimensions = array<i32: 2>} : vector<1x1x16xi32>
    %c11_i32_21 = arith.constant 11 : i32
    %78 = vector.broadcast %c11_i32_21 : i32 to vector<1x1x16xi32>
    %79 = arith.cmpi slt, %77, %78 : vector<1x1x16xi32>
    %80 = vector.extract_strided_slice %76 {offsets = [0, 0, 10], sizes = [10, 20, 1], strides = [1, 1, 1]} : vector<10x20x16xf32> to vector<10x20x1xf32>
    %81 = vector.shape_cast %79 : vector<1x1x16xi1> to vector<1x1x16xi1>
    %82 = vector.broadcast %81 : vector<1x1x16xi1> to vector<10x20x16xi1>
    %83 = vector.shape_cast %80 : vector<10x20x1xf32> to vector<10x20x1xf32>
    %84 = vector.broadcast %83 : vector<10x20x1xf32> to vector<10x20x16xf32>
    %85 = arith.select %82, %76, %84 : vector<10x20x16xi1>, vector<10x20x16xf32>
    %86 = vector.extract_strided_slice %85 {offsets = [0, 0, 15], sizes = [10, 20, 1], strides = [1, 1, 1]} : vector<10x20x16xf32> to vector<10x20x1xf32>
    %87 = vector.extract_strided_slice %85 {offsets = [0, 0, 1], sizes = [10, 20, 15], strides = [1, 1, 1]} : vector<10x20x16xf32> to vector<10x20x15xf32>
    %88 = tpu.concatenate %87, %86 in 2 : vector<10x20x15xf32>, vector<10x20x1xf32> -> vector<10x20x16xf32>
    %89 = vector.extract_strided_slice %85 {offsets = [0, 0, 0], sizes = [10, 20, 1], strides = [1, 1, 1]} : vector<10x20x16xf32> to vector<10x20x1xf32>
    %90 = vector.extract_strided_slice %85 {offsets = [0, 0, 0], sizes = [10, 20, 15], strides = [1, 1, 1]} : vector<10x20x16xf32> to vector<10x20x15xf32>
    %91 = tpu.concatenate %89, %90 in 2 : vector<10x20x1xf32>, vector<10x20x15xf32> -> vector<10x20x16xf32>
    %92 = arith.subf %88, %91 : vector<10x20x16xf32>
    %93 = vector.extract_strided_slice %85 {offsets = [0, 0, 15], sizes = [10, 20, 1], strides = [1, 1, 1]} : vector<10x20x16xf32> to vector<10x20x1xf32>
    %94 = vector.shape_cast %93 : vector<10x20x1xf32> to vector<10x20x1xf32>
    %95 = vector.broadcast %94 : vector<10x20x1xf32> to vector<10x20x2xf32>
    %96 = vector.extract_strided_slice %85 {offsets = [0, 0, 2], sizes = [10, 20, 14], strides = [1, 1, 1]} : vector<10x20x16xf32> to vector<10x20x14xf32>
    %97 = tpu.concatenate %96, %95 in 2 : vector<10x20x14xf32>, vector<10x20x2xf32> -> vector<10x20x16xf32>
    %98 = vector.extract_strided_slice %85 {offsets = [0, 0, 0], sizes = [10, 20, 1], strides = [1, 1, 1]} : vector<10x20x16xf32> to vector<10x20x1xf32>
    %99 = vector.shape_cast %98 : vector<10x20x1xf32> to vector<10x20x1xf32>
    %100 = vector.broadcast %99 : vector<10x20x1xf32> to vector<10x20x2xf32>
    %101 = vector.extract_strided_slice %85 {offsets = [0, 0, 0], sizes = [10, 20, 14], strides = [1, 1, 1]} : vector<10x20x16xf32> to vector<10x20x14xf32>
    %102 = tpu.concatenate %100, %101 in 2 : vector<10x20x2xf32>, vector<10x20x14xf32> -> vector<10x20x16xf32>
    %103 = arith.subf %97, %102 : vector<10x20x16xf32>
    %cst_22 = arith.constant 2.000000e+00 : f32
    %104 = vector.broadcast %cst_22 : f32 to vector<10x20x16xf32>
    %105 = arith.mulf %104, %103 : vector<10x20x16xf32>
    %106 = arith.addf %92, %105 : vector<10x20x16xf32>
    %cst_23 = arith.constant 1.000000e+01 : f32
    %107 = vector.broadcast %cst_23 : f32 to vector<10x20x16xf32>
    %108 = arith.divf %106, %107 : vector<10x20x16xf32>
    %c0_24 = arith.constant 0 : index
    %c0_25 = arith.constant 0 : index
    %c0_26 = arith.constant 0 : index
    %109 = vector.load %arg5[%c0_24, %c0_25, %c0_26] : memref<10x64x16xf32, #tpu.memory_space<vmem>>, vector<10x20x16xf32>
    tpu.vector_store %arg5[%c0_24, %c0_25, %c0_26], %53 {strides = array<i32>} : memref<10x64x16xf32, #tpu.memory_space<vmem>>, vector<10x20x16xf32>,
    %c0_27 = arith.constant 0 : index
    %c20 = arith.constant 20 : index
    %c0_28 = arith.constant 0 : index
    %110 = vector.load %arg5[%c0_27, %c20, %c0_28] : memref<10x64x16xf32, #tpu.memory_space<vmem>>, vector<10x20x16xf32>
    tpu.vector_store %arg5[%c0_27, %c20, %c0_28], %85 {strides = array<i32>} : memref<10x64x16xf32, #tpu.memory_space<vmem>>, vector<10x20x16xf32>,
    %c0_29 = arith.constant 0 : index
    %c40 = arith.constant 40 : index
    %c0_30 = arith.constant 0 : index
    %111 = vector.load %arg5[%c0_29, %c40, %c0_30] : memref<10x64x16xf32, #tpu.memory_space<vmem>>, vector<10x20x16xf32>
    tpu.vector_store %arg5[%c0_29, %c40, %c0_30], %108 {strides = array<i32>} : memref<10x64x16xf32, #tpu.memory_space<vmem>>, vector<10x20x16xf32>,
    %112 = vector.extract_strided_slice %53 {offsets = [0, 0, 0], sizes = [10, 1, 16], strides = [1, 1, 1]} : vector<10x20x16xf32> to vector<10x1x16xf32>
    %c0_31 = arith.constant 0 : index
    %c60 = arith.constant 60 : index
    %c0_32 = arith.constant 0 : index
    %113 = vector.load %arg5[%c0_31, %c60, %c0_32] : memref<10x64x16xf32, #tpu.memory_space<vmem>>, vector<10x1x16xf32>
    tpu.vector_store %arg5[%c0_31, %c60, %c0_32], %112 {strides = array<i32>} : memref<10x64x16xf32, #tpu.memory_space<vmem>>, vector<10x1x16xf32>,
    %114 = vector.extract_strided_slice %85 {offsets = [0, 0, 0], sizes = [10, 1, 16], strides = [1, 1, 1]} : vector<10x20x16xf32> to vector<10x1x16xf32>
    %c0_33 = arith.constant 0 : index
    %c61 = arith.constant 61 : index
    %c0_34 = arith.constant 0 : index
    %115 = vector.load %arg5[%c0_33, %c61, %c0_34] : memref<10x64x16xf32, #tpu.memory_space<vmem>>, vector<10x1x16xf32>
    tpu.vector_store %arg5[%c0_33, %c61, %c0_34], %114 {strides = array<i32>} : memref<10x64x16xf32, #tpu.memory_space<vmem>>, vector<10x1x16xf32>,
    %116 = vector.extract_strided_slice %108 {offsets = [0, 0, 0], sizes = [10, 1, 16], strides = [1, 1, 1]} : vector<10x20x16xf32> to vector<10x1x16xf32>
    %c0_35 = arith.constant 0 : index
    %c62 = arith.constant 62 : index
    %c0_36 = arith.constant 0 : index
    %117 = vector.load %arg5[%c0_35, %c62, %c0_36] : memref<10x64x16xf32, #tpu.memory_space<vmem>>, vector<10x1x16xf32>
    tpu.vector_store %arg5[%c0_35, %c62, %c0_36], %116 {strides = array<i32>} : memref<10x64x16xf32, #tpu.memory_space<vmem>>, vector<10x1x16xf32>,
    return
  }
  func.func @transform_0(%arg0: i32) -> (i32, i32, i32) {
    %c0_i32 = arith.constant 0 : i32
    %c0_i32_0 = arith.constant 0 : i32
    %c0_i32_1 = arith.constant 0 : i32
    return %arg0, %c0_i32, %c0_i32_0 : i32, i32, i32
  }
  func.func @transform_1(%arg0: i32) -> (i32, i32) {
    %c0_i32 = arith.constant 0 : i32
    %c0_i32_0 = arith.constant 0 : i32
    %c0_i32_1 = arith.constant 0 : i32
    return %c0_i32, %c0_i32_0 : i32, i32
  }
  func.func @transform_2(%arg0: i32) -> (i32, i32) {
    %c0_i32 = arith.constant 0 : i32
    %c0_i32_0 = arith.constant 0 : i32
    %c0_i32_1 = arith.constant 0 : i32
    return %c0_i32, %c0_i32_0 : i32, i32
  }
  func.func @transform_3(%arg0: i32) -> (i32, i32) {
    %c0_i32 = arith.constant 0 : i32
    %c0_i32_0 = arith.constant 0 : i32
    %c0_i32_1 = arith.constant 0 : i32
    return %c0_i32, %c0_i32_0 : i32, i32
  }
  func.func @transform_4(%arg0: i32) -> (i32, i32, i32) {
    %c0_i32 = arith.constant 0 : i32
    %c0_i32_0 = arith.constant 0 : i32
    %c0_i32_1 = arith.constant 0 : i32
    return %arg0, %c0_i32, %c0_i32_0 : i32, i32, i32
  }
}

</mosaic_0001>

<llo_original>
// kernel: tpu_custom_call.1
$region0: #{tpu_custom_call.1}
  #allocation0 [shape = 'u32[]', space=smem, size = 0x4, offset = 0x4, fixed_abs, tag = 'smem constant byte address 0x4 - core index']
  #allocation1 [shape = 'u32[144,128]{1,0:T(1,128)}', space=vmem, size = 0x12000, scoped, tag = 'internal scratch']
  %s0 = inlined_call_operand.vmem [shape: f32[20,17,200], index: 0, kind: input, shape index: {}]
  %s1 = inlined_call_operand.vmem [shape: bf16[512,512], index: 1, kind: input, shape index: {}]
  %s2 = inlined_call_operand.vmem [shape: f32[256,128], index: 2, kind: input, shape index: {}]
  %s3 = inlined_call_operand.vmem [shape: f32[128,32], index: 3, kind: input, shape index: {}]
  %s4 = inlined_call_operand.vmem [shape: f32[20,64,16], index: 4, kind: output, shape index: {}]
  %s5 = sld [smem:[#allocation0]]
  $region49: #{tpu_custom_call.1} parent=0
    _
  %s7 = ssub.s32 1, %s5
  %s8 = scalar_select 0, %s7, %s5
  loop: start=0, step=1, limit=4
  $region2: #{tpu_custom_call.1} parent=0 // loop_pre_header
    _
  $region3: #{tpu_custom_call.1} parent=0 // loop_header
    %s10 = sphi 0, %s14
    %p11 = scmp.ge.s32.totalorder %s10, 4
    %s20 = sphi 0, %s22
    %s23 = sphi 0, %s20
    %s24 = sphi 0, %s23
    %s40 = sphi 0, %s24
    %s44 = sphi 0, %s44
    %s46 = sphi 0, %s44
    %s47 = sphi 0, %s46
    %s61 = sphi 0, %s47
    %s65 = sphi 0, %s65
    %s67 = sphi 0, %s65
    %s68 = sphi 0, %s67
    %s82 = sphi 0, %s68
    %s86 = sphi 0, %s86
    %s88 = sphi 0, %s86
    %s89 = sphi 0, %s88
    %s103 = sphi 0, %s89
    %s109 = sphi 0, %s111
    %s112 = sphi 0, %s109
    %s113 = sphi 0, %s112
    %s129 = sphi 0, %s113
  $region4: #{tpu_custom_call.1} parent=0 // loop_header_branch
    %13 = sbr.rel (%p11) target = $region8
  $region5: #{tpu_custom_call.1} parent=0 // loop_body
    %s15 = ssub.s32 %s10, 1
    %s16 = ssub.s32 %s10, 2
    %s17 = sadd.s32 %s10, 1
    %s18 = ssub.s32 %s10, %s17
    %p19 = scmp.eq.s32.totalorder %s18, 0
    %s21 = sadd.s32 %s20, 1
    %s22 = scalar_select %p19, %s20, %s21
    %p25 = pneg %p19
    %p26 = scmp.eq.s32.totalorder %s10, 1
    %p27 = por %p25, %p26
    %p28 = scmp.ne.s32.totalorder %s20, %s23
    %p29 = scmp.eq.s32.totalorder %s10, 0
    %p30 = por %p28, %p29
    %p31 = scmp.ne.s32.totalorder %s20, %s23
    %p32 = scmp.eq.s32.totalorder %s15, 1
    %p33 = por %p31, %p32
    %p34 = scmp.ne.s32.totalorder %s23, %s24
    %p35 = scmp.eq.s32.totalorder %s15, 0
    %p36 = por %p34, %p35
    %p37 = scmp.ne.s32.totalorder %s23, %s24
    %p38 = scmp.eq.s32.totalorder %s16, 1
    %p39 = por %p37, %p38
    %p41 = scmp.ne.s32.totalorder %s24, %s40
    %p42 = scmp.eq.s32.totalorder %s16, 0
    %p43 = por %p41, %p42
    %s45 = sadd.s32 %s44, 1
    %p48 = scmp.eq.s32.totalorder %s10, 1
    %p49 = scmp.ne.s32.totalorder %s44, %s46
    %p50 = scmp.eq.s32.totalorder %s10, 0
    %p51 = por %p49, %p50
    %p52 = scmp.ne.s32.totalorder %s44, %s46
    %p53 = scmp.eq.s32.totalorder %s15, 1
    %p54 = por %p52, %p53
    %p55 = scmp.ne.s32.totalorder %s46, %s47
    %p56 = scmp.eq.s32.totalorder %s15, 0
    %p57 = por %p55, %p56
    %p58 = scmp.ne.s32.totalorder %s46, %s47
    %p59 = scmp.eq.s32.totalorder %s16, 1
    %p60 = por %p58, %p59
    %p62 = scmp.ne.s32.totalorder %s47, %s61
    %p63 = scmp.eq.s32.totalorder %s16, 0
    %p64 = por %p62, %p63
    %s66 = sadd.s32 %s65, 1
    %p69 = scmp.eq.s32.totalorder %s10, 1
    %p70 = scmp.ne.s32.totalorder %s65, %s67
    %p71 = scmp.eq.s32.totalorder %s10, 0
    %p72 = por %p70, %p71
    %p73 = scmp.ne.s32.totalorder %s65, %s67
    %p74 = scmp.eq.s32.totalorder %s15, 1
    %p75 = por %p73, %p74
    %p76 = scmp.ne.s32.totalorder %s67, %s68
    %p77 = scmp.eq.s32.totalorder %s15, 0
    %p78 = por %p76, %p77
    %p79 = scmp.ne.s32.totalorder %s67, %s68
    %p80 = scmp.eq.s32.totalorder %s16, 1
    %p81 = por %p79, %p80
    %p83 = scmp.ne.s32.totalorder %s68, %s82
    %p84 = scmp.eq.s32.totalorder %s16, 0
    %p85 = por %p83, %p84
    %s87 = sadd.s32 %s86, 1
    %p90 = scmp.eq.s32.totalorder %s10, 1
    %p91 = scmp.ne.s32.totalorder %s86, %s88
    %p92 = scmp.eq.s32.totalorder %s10, 0
    %p93 = por %p91, %p92
    %p94 = scmp.ne.s32.totalorder %s86, %s88
    %p95 = scmp.eq.s32.totalorder %s15, 1
    %p96 = por %p94, %p95
    %p97 = scmp.ne.s32.totalorder %s88, %s89
    %p98 = scmp.eq.s32.totalorder %s15, 0
    %p99 = por %p97, %p98
    %p100 = scmp.ne.s32.totalorder %s88, %s89
    %p101 = scmp.eq.s32.totalorder %s16, 1
    %p102 = por %p100, %p101
    %p104 = scmp.ne.s32.totalorder %s89, %s103
    %p105 = scmp.eq.s32.totalorder %s16, 0
    %p106 = por %p104, %p105
    %s107 = ssub.s32 %s10, %s17
    %p108 = scmp.eq.s32.totalorder %s107, 0
    %s110 = sadd.s32 %s109, 1
    %s111 = scalar_select %p108, %s109, %s110
    %p114 = pneg %p108
    %p115 = scmp.eq.s32.totalorder %s10, 1
    %p116 = por %p114, %p115
    %p117 = scmp.ne.s32.totalorder %s109, %s112
    %p118 = scmp.eq.s32.totalorder %s10, 0
    %p119 = por %p117, %p118
    %p120 = scmp.ne.s32.totalorder %s109, %s112
    %p121 = scmp.eq.s32.totalorder %s15, 1
    %p122 = por %p120, %p121
    %p123 = scmp.ne.s32.totalorder %s112, %s113
    %p124 = scmp.eq.s32.totalorder %s15, 0
    %p125 = por %p123, %p124
    %p126 = scmp.ne.s32.totalorder %s112, %s113
    %p127 = scmp.eq.s32.totalorder %s16, 1
    %p128 = por %p126, %p127
    %p130 = scmp.ne.s32.totalorder %s113, %s129
    %p131 = scmp.eq.s32.totalorder %s16, 0
    %p132 = por %p130, %p131
    %p133 = scmp.le.s32.totalorder 1, %s10
    %p134 = scmp.lt.s32.totalorder %s10, 3
    %p135 = pnand %p133, %p134
    %p136 = pneg %p135
    // Predicated region
    $region9: #{tpu_custom_call.1} parent=5 // pred_check
      _
    $region10: #{tpu_custom_call.1} parent=5 // pred_check_branch
      %138 = sbr.rel (%p135) target = $region12
    $region11: #{tpu_custom_call.1} parent=5 // pred_region
      %s139 = ssub.s32 %s10, 1
      // Predicated region
      $region13: #{tpu_custom_call.1} parent=11 // pred_check
        %p140 = pneg %p57
      $region14: #{tpu_custom_call.1} parent=11 // pred_check_branch
        %142 = sbr.rel (%p140) target = $region16
      $region15: #{tpu_custom_call.1} parent=11 // pred_region
        _
      $region16: #{tpu_custom_call.1} parent=11 // pred_fallthru
        _
      // Predicated region
      $region17: #{tpu_custom_call.1} parent=11 // pred_check
        %p143 = pneg %p78
      $region18: #{tpu_custom_call.1} parent=11 // pred_check_branch
        %145 = sbr.rel (%p143) target = $region20
      $region19: #{tpu_custom_call.1} parent=11 // pred_region
        _
      $region20: #{tpu_custom_call.1} parent=11 // pred_fallthru
        _
      // Predicated region
      $region21: #{tpu_custom_call.1} parent=11 // pred_check
        %p146 = pneg %p99
      $region22: #{tpu_custom_call.1} parent=11 // pred_check_branch
        %148 = sbr.rel (%p146) target = $region24
      $region23: #{tpu_custom_call.1} parent=11 // pred_region
        _
      $region24: #{tpu_custom_call.1} parent=11 // pred_fallthru
        _
    $region12: #{tpu_custom_call.1} parent=5 // pred_fallthru
      _
    %p149 = scmp.lt.s32.totalorder %s10, 2
    // Predicated region
    $region25: #{tpu_custom_call.1} parent=5 // pred_check
      %p150 = pneg %p149
    $region26: #{tpu_custom_call.1} parent=5 // pred_check_branch
      %152 = sbr.rel (%p150) target = $region28
    $region27: #{tpu_custom_call.1} parent=5 // pred_region
      // Predicated region
      $region29: #{tpu_custom_call.1} parent=27 // pred_check
        %p153 = pneg %p30
      $region30: #{tpu_custom_call.1} parent=27 // pred_check_branch
        %155 = sbr.rel (%p153) target = $region32
      $region31: #{tpu_custom_call.1} parent=27 // pred_region
        %s156 = smul.u32 10, %s10
        %p157 = scmp.lt.s32.totalorder %s156, 19
        %s158 = scalar_select %p157, %s156, 19
        %s159 = smul.addr %s158, 6
        %s160 = smul.addr %s159, 8
        %s161 = scalar_lea.vmem %s0, %s160
        %s162 = smul.u32 10, %s10
      $region32: #{tpu_custom_call.1} parent=27 // pred_fallthru
        _
    $region28: #{tpu_custom_call.1} parent=5 // pred_fallthru
      _
    %p163 = scmp.le.s32.totalorder 1, %s10
    %p164 = scmp.lt.s32.totalorder %s10, 3
    %p165 = pnand %p163, %p164
    %p166 = pneg %p165
    // Predicated region
    $region33: #{tpu_custom_call.1} parent=5 // pred_check
      _
    $region34: #{tpu_custom_call.1} parent=5 // pred_check_branch
      %168 = sbr.rel (%p165) target = $region36
    $region35: #{tpu_custom_call.1} parent=5 // pred_region
      %s169 = ssub.s32 %s10, 1
      %s170 = smul.u32 10, %s15
      %p171 = scmp.lt.s32.totalorder %s170, 19
      %s172 = scalar_select %p171, %s170, 19
      %s173 = smul.addr %s172, 6
      %s174 = smul.addr %s173, 8
      %s175 = scalar_lea.vmem %s0, %s174
      %p176 = pneg %p36
      %p177 = pneg %p33
      %p178 = pneg %p57
      %p179 = pneg %p54
      %p180 = pneg %p78
      %p181 = pneg %p75
      %p182 = pneg %p99
      %p183 = pneg %p96
      %p184 = pneg %p125
      %p185 = pneg %p122
      %s186 = smul.u32 10, %s15
      %p187 = scmp.lt.s32.totalorder %s186, 19
      %s188 = scalar_select %p187, %s186, 19
      %s189 = smul.addr %s188, 8
      %s190 = smul.addr %s189, 8
      %s191 = scalar_lea.vmem %s4, %s190
      %s192 = smul.u32 10, %s15
      %p193 = scmp.lt.s32.totalorder %s192, 19
      %s194 = scalar_select %p193, %s192, 19
      %s195 = smul.addr %s194, 6
      %s196 = smul.addr %s195, 8
      %s197 = scalar_lea.vmem %s0, %s196
      %s198 = smul.u32 10, %s15
      %s199 = smul.u32 10, %s15
      %p200 = scmp.lt.s32.totalorder %s199, 19
      %s201 = scalar_select %p200, %s199, 19
      %s202 = smul.addr %s201, 8
      %s203 = smul.addr %s202, 8
      %s204 = scalar_lea.vmem %s4, %s203
      %s205 = smul.u32 10, %s15
      %v206 = vld [vmem:[%s197] sm:$0xff]
      %v207 = vld [vmem:[%s197 + $0x8] sm:$0xff]
      %v208 = vld [vmem:[%s197 + $0x10] sm:$0xff]
      %v209 = vld [vmem:[%s197 + $0x18] sm:$0xff]
      %v210 = vld [vmem:[%s197 + $0x20] sm:$0x1]
      %v211 = vld [vmem:[%s197 + $0x28] sm:$0x1]
      %v212 = vld [vmem:[%s197 + $0x30] sm:$0xff]
      %v213 = vld [vmem:[%s197 + $0x38] sm:$0xff]
      %v214 = vld [vmem:[%s197 + $0x40] sm:$0xff]
      %v215 = vld [vmem:[%s197 + $0x48] sm:$0xff]
      %v216 = vld [vmem:[%s197 + $0x50] sm:$0x1]
      %v217 = vld [vmem:[%s197 + $0x58] sm:$0x1]
      %v218 = vld [vmem:[%s197 + $0x60] sm:$0xff]
      %v219 = vld [vmem:[%s197 + $0x68] sm:$0xff]
      %v220 = vld [vmem:[%s197 + $0x70] sm:$0xff]
      %v221 = vld [vmem:[%s197 + $0x78] sm:$0xff]
      %v222 = vld [vmem:[%s197 + $0x80] sm:$0x1]
      %v223 = vld [vmem:[%s197 + $0x88] sm:$0x1]
      %v224 = vld [vmem:[%s197 + $0x90] sm:$0xff]
      %v225 = vld [vmem:[%s197 + $0x98] sm:$0xff]
      %v226 = vld [vmem:[%s197 + $0xa0] sm:$0xff]
      %v227 = vld [vmem:[%s197 + $0xa8] sm:$0xff]
      %v228 = vld [vmem:[%s197 + $0xb0] sm:$0x1]
      %v229 = vld [vmem:[%s197 + $0xb8] sm:$0x1]
      %v230 = vld [vmem:[%s197 + $0xc0] sm:$0xff]
      %v231 = vld [vmem:[%s197 + $0xc8] sm:$0xff]
      %v232 = vld [vmem:[%s197 + $0xd0] sm:$0xff]
      %v233 = vld [vmem:[%s197 + $0xd8] sm:$0xff]
      %v234 = vld [vmem:[%s197 + $0xe0] sm:$0x1]
      %v235 = vld [vmem:[%s197 + $0xe8] sm:$0x1]
      %v236 = vld [vmem:[%s197 + $0xf0] sm:$0xff]
      %v237 = vld [vmem:[%s197 + $0xf8] sm:$0xff]
      %v238 = vld [vmem:[%s197 + $0x100] sm:$0xff]
      %v239 = vld [vmem:[%s197 + $0x108] sm:$0xff]
      %v240 = vld [vmem:[%s197 + $0x110] sm:$0x1]
      %v241 = vld [vmem:[%s197 + $0x118] sm:$0x1]
      %v242 = vld [vmem:[%s197 + $0x120] sm:$0xff]
      %v243 = vld [vmem:[%s197 + $0x128] sm:$0xff]
      %v244 = vld [vmem:[%s197 + $0x130] sm:$0xff]
      %v245 = vld [vmem:[%s197 + $0x138] sm:$0xff]
      %v246 = vld [vmem:[%s197 + $0x140] sm:$0x1]
      %v247 = vld [vmem:[%s197 + $0x148] sm:$0x1]
      %v248 = vld [vmem:[%s197 + $0x150] sm:$0xff]
      %v249 = vld [vmem:[%s197 + $0x158] sm:$0xff]
      %v250 = vld [vmem:[%s197 + $0x160] sm:$0xff]
      %v251 = vld [vmem:[%s197 + $0x168] sm:$0xff]
      %v252 = vld [vmem:[%s197 + $0x170] sm:$0x1]
      %v253 = vld [vmem:[%s197 + $0x178] sm:$0x1]
      %v254 = vld [vmem:[%s197 + $0x180] sm:$0xff]
      %v255 = vld [vmem:[%s197 + $0x188] sm:$0xff]
      %v256 = vld [vmem:[%s197 + $0x190] sm:$0xff]
      %v257 = vld [vmem:[%s197 + $0x198] sm:$0xff]
      %v258 = vld [vmem:[%s197 + $0x1a0] sm:$0x1]
      %v259 = vld [vmem:[%s197 + $0x1a8] sm:$0x1]
      %v260 = vld [vmem:[%s197 + $0x1b0] sm:$0xff]
      %v261 = vld [vmem:[%s197 + $0x1b8] sm:$0xff]
      %v262 = vld [vmem:[%s197 + $0x1c0] sm:$0xff]
      %v263 = vld [vmem:[%s197 + $0x1c8] sm:$0xff]
      %v264 = vld [vmem:[%s197 + $0x1d0] sm:$0x1]
      %v265 = vld [vmem:[%s197 + $0x1d8] sm:$0x1]
      %vm326 = vcmask 1046528
      %v327 = vrot.slane %v206, 1
      %v328 = vrot.slane %v208, 1
      %v329 = vsel %vm326, %v327, %v328
      %v330 = vrot.slane %v207, 1
      %v331 = vrot.slane %v209, 1
      %v332 = vsel %vm326, %v330, %v331
      %v333 = vrot.slane %v210, 1
      %v334 = vsel %vm326, %v328, %v333
      %v335 = vrot.slane %v211, 1
      %v336 = vsel %vm326, %v331, %v335
      %v337 = vrot.slane %v212, 1
      %v338 = vrot.slane %v214, 1
      %v339 = vsel %vm326, %v337, %v338
      %v340 = vrot.slane %v213, 1
      %v341 = vrot.slane %v215, 1
      %v342 = vsel %vm326, %v340, %v341
      %v343 = vrot.slane %v216, 1
      %v344 = vsel %vm326, %v338, %v343
      %v345 = vrot.slane %v217, 1
      %v346 = vsel %vm326, %v341, %v345
      %v347 = vrot.slane %v218, 1
      %v348 = vrot.slane %v220, 1
      %v349 = vsel %vm326, %v347, %v348
      %v350 = vrot.slane %v219, 1
      %v351 = vrot.slane %v221, 1
      %v352 = vsel %vm326, %v350, %v351
      %v353 = vrot.slane %v222, 1
      %v354 = vsel %vm326, %v348, %v353
      %v355 = vrot.slane %v223, 1
      %v356 = vsel %vm326, %v351, %v355
      %v357 = vrot.slane %v224, 1
      %v358 = vrot.slane %v226, 1
      %v359 = vsel %vm326, %v357, %v358
      %v360 = vrot.slane %v225, 1
      %v361 = vrot.slane %v227, 1
      %v362 = vsel %vm326, %v360, %v361
      %v363 = vrot.slane %v228, 1
      %v364 = vsel %vm326, %v358, %v363
      %v365 = vrot.slane %v229, 1
      %v366 = vsel %vm326, %v361, %v365
      %v367 = vrot.slane %v230, 1
      %v368 = vrot.slane %v232, 1
      %v369 = vsel %vm326, %v367, %v368
      %v370 = vrot.slane %v231, 1
      %v371 = vrot.slane %v233, 1
      %v372 = vsel %vm326, %v370, %v371
      %v373 = vrot.slane %v234, 1
      %v374 = vsel %vm326, %v368, %v373
      %v375 = vrot.slane %v235, 1
      %v376 = vsel %vm326, %v371, %v375
      %v377 = vrot.slane %v236, 1
      %v378 = vrot.slane %v238, 1
      %v379 = vsel %vm326, %v377, %v378
      %v380 = vrot.slane %v237, 1
      %v381 = vrot.slane %v239, 1
      %v382 = vsel %vm326, %v380, %v381
      %v383 = vrot.slane %v240, 1
      %v384 = vsel %vm326, %v378, %v383
      %v385 = vrot.slane %v241, 1
      %v386 = vsel %vm326, %v381, %v385
      %v387 = vrot.slane %v242, 1
      %v388 = vrot.slane %v244, 1
      %v389 = vsel %vm326, %v387, %v388
      %v390 = vrot.slane %v243, 1
      %v391 = vrot.slane %v245, 1
      %v392 = vsel %vm326, %v390, %v391
      %v393 = vrot.slane %v246, 1
      %v394 = vsel %vm326, %v388, %v393
      %v395 = vrot.slane %v247, 1
      %v396 = vsel %vm326, %v391, %v395
      %v397 = vrot.slane %v248, 1
      %v398 = vrot.slane %v250, 1
      %v399 = vsel %vm326, %v397, %v398
      %v400 = vrot.slane %v249, 1
      %v401 = vrot.slane %v251, 1
      %v402 = vsel %vm326, %v400, %v401
      %v403 = vrot.slane %v252, 1
      %v404 = vsel %vm326, %v398, %v403
      %v405 = vrot.slane %v253, 1
      %v406 = vsel %vm326, %v401, %v405
      %v407 = vrot.slane %v254, 1
      %v408 = vrot.slane %v256, 1
      %v409 = vsel %vm326, %v407, %v408
      %v410 = vrot.slane %v255, 1
      %v411 = vrot.slane %v257, 1
      %v412 = vsel %vm326, %v410, %v411
      %v413 = vrot.slane %v258, 1
      %v414 = vsel %vm326, %v408, %v413
      %v415 = vrot.slane %v259, 1
      %v416 = vsel %vm326, %v411, %v415
      %v417 = vrot.slane %v260, 1
      %v418 = vrot.slane %v262, 1
      %v419 = vsel %vm326, %v417, %v418
      %v420 = vrot.slane %v261, 1
      %v421 = vrot.slane %v263, 1
      %v422 = vsel %vm326, %v420, %v421
      %v423 = vrot.slane %v264, 1
      %v424 = vsel %vm326, %v418, %v423
      %v425 = vrot.slane %v265, 1
      %v426 = vsel %vm326, %v421, %v425
      %427 = vrot.lane.b32.xlu0 %v329, 72
      %v428 = vpop.permute.xlu0 %427
      %429 = vrot.lane.b32.xlu0 %v332, 72
      %v430 = vpop.permute.xlu0 %429
      %431 = vrot.lane.b32.xlu0 %v334, 72
      %v432 = vpop.permute.xlu0 %431
      %433 = vrot.lane.b32.xlu0 %v336, 72
      %v434 = vpop.permute.xlu0 %433
      %435 = vrot.lane.b32.xlu0 %v339, 72
      %v436 = vpop.permute.xlu0 %435
      %437 = vrot.lane.b32.xlu0 %v342, 72
      %v438 = vpop.permute.xlu0 %437
      %439 = vrot.lane.b32.xlu0 %v344, 72
      %v440 = vpop.permute.xlu0 %439
      %441 = vrot.lane.b32.xlu0 %v346, 72
      %v442 = vpop.permute.xlu0 %441
      %443 = vrot.lane.b32.xlu0 %v349, 72
      %v444 = vpop.permute.xlu0 %443
      %445 = vrot.lane.b32.xlu0 %v352, 72
      %v446 = vpop.permute.xlu0 %445
      %447 = vrot.lane.b32.xlu0 %v354, 72
      %v448 = vpop.permute.xlu0 %447
      %449 = vrot.lane.b32.xlu0 %v356, 72
      %v450 = vpop.permute.xlu0 %449
      %451 = vrot.lane.b32.xlu0 %v359, 72
      %v452 = vpop.permute.xlu0 %451
      %453 = vrot.lane.b32.xlu0 %v362, 72
      %v454 = vpop.permute.xlu0 %453
      %455 = vrot.lane.b32.xlu0 %v364, 72
      %v456 = vpop.permute.xlu0 %455
      %457 = vrot.lane.b32.xlu0 %v366, 72
      %v458 = vpop.permute.xlu0 %457
      %459 = vrot.lane.b32.xlu0 %v369, 72
      %v460 = vpop.permute.xlu0 %459
      %461 = vrot.lane.b32.xlu0 %v372, 72
      %v462 = vpop.permute.xlu0 %461
      %463 = vrot.lane.b32.xlu0 %v374, 72
      %v464 = vpop.permute.xlu0 %463
      %465 = vrot.lane.b32.xlu0 %v376, 72
      %v466 = vpop.permute.xlu0 %465
      %467 = vrot.lane.b32.xlu0 %v379, 72
      %v468 = vpop.permute.xlu0 %467
      %469 = vrot.lane.b32.xlu0 %v382, 72
      %v470 = vpop.permute.xlu0 %469
      %471 = vrot.lane.b32.xlu0 %v384, 72
      %v472 = vpop.permute.xlu0 %471
      %473 = vrot.lane.b32.xlu0 %v386, 72
      %v474 = vpop.permute.xlu0 %473
      %475 = vrot.lane.b32.xlu0 %v389, 72
      %v476 = vpop.permute.xlu0 %475
      %477 = vrot.lane.b32.xlu0 %v392, 72
      %v478 = vpop.permute.xlu0 %477
      %479 = vrot.lane.b32.xlu0 %v394, 72
      %v480 = vpop.permute.xlu0 %479
      %481 = vrot.lane.b32.xlu0 %v396, 72
      %v482 = vpop.permute.xlu0 %481
      %483 = vrot.lane.b32.xlu0 %v399, 72
      %v484 = vpop.permute.xlu0 %483
      %485 = vrot.lane.b32.xlu0 %v402, 72
      %v486 = vpop.permute.xlu0 %485
      %487 = vrot.lane.b32.xlu0 %v404, 72
      %v488 = vpop.permute.xlu0 %487
      %489 = vrot.lane.b32.xlu0 %v406, 72
      %v490 = vpop.permute.xlu0 %489
      %491 = vrot.lane.b32.xlu0 %v409, 72
      %v492 = vpop.permute.xlu0 %491
      %493 = vrot.lane.b32.xlu0 %v412, 72
      %v494 = vpop.permute.xlu0 %493
      %495 = vrot.lane.b32.xlu0 %v414, 72
      %v496 = vpop.permute.xlu0 %495
      %497 = vrot.lane.b32.xlu0 %v416, 72
      %v498 = vpop.permute.xlu0 %497
      %499 = vrot.lane.b32.xlu0 %v419, 72
      %v500 = vpop.permute.xlu0 %499
      %501 = vrot.lane.b32.xlu0 %v422, 72
      %v502 = vpop.permute.xlu0 %501
      %503 = vrot.lane.b32.xlu0 %v424, 72
      %v504 = vpop.permute.xlu0 %503
      %505 = vrot.lane.b32.xlu0 %v426, 72
      %v506 = vpop.permute.xlu0 %505
      %vm507 = vcmask 588800
      %v508 = vsel %vm507, %v428, %v430
      %v509 = vsel %vm507, %v432, %v434
      %v510 = vsel %vm507, %v436, %v438
      %v511 = vsel %vm507, %v440, %v442
      %v512 = vsel %vm507, %v444, %v446
      %v513 = vsel %vm507, %v448, %v450
      %v514 = vsel %vm507, %v452, %v454
      %v515 = vsel %vm507, %v456, %v458
      %v516 = vsel %vm507, %v460, %v462
      %v517 = vsel %vm507, %v464, %v466
      %v518 = vsel %vm507, %v468, %v470
      %v519 = vsel %vm507, %v472, %v474
      %v520 = vsel %vm507, %v476, %v478
      %v521 = vsel %vm507, %v480, %v482
      %v522 = vsel %vm507, %v484, %v486
      %v523 = vsel %vm507, %v488, %v490
      %v524 = vsel %vm507, %v492, %v494
      %v525 = vsel %vm507, %v496, %v498
      %v526 = vsel %vm507, %v500, %v502
      %v527 = vsel %vm507, %v504, %v506
      %v588 = vsel %vm507, %v207, %v428
      %v589 = vsel %vm507, %v209, %v432
      %v590 = vsel %vm507, %v213, %v436
      %v591 = vsel %vm507, %v215, %v440
      %v592 = vsel %vm507, %v219, %v444
      %v593 = vsel %vm507, %v221, %v448
      %v594 = vsel %vm507, %v225, %v452
      %v595 = vsel %vm507, %v227, %v456
      %v596 = vsel %vm507, %v231, %v460
      %v597 = vsel %vm507, %v233, %v464
      %v598 = vsel %vm507, %v237, %v468
      %v599 = vsel %vm507, %v239, %v472
      %v600 = vsel %vm507, %v243, %v476
      %v601 = vsel %vm507, %v245, %v480
      %v602 = vsel %vm507, %v249, %v484
      %v603 = vsel %vm507, %v251, %v488
      %v604 = vsel %vm507, %v255, %v492
      %v605 = vsel %vm507, %v257, %v496
      %v606 = vsel %vm507, %v261, %v500
      %v607 = vsel %vm507, %v263, %v504
      %vm608 = vcmask 130048
      %v609 = vsel %vm608, %v430, 0.0
      %v610 = vsel %vm608, %v434, 0.0
      %v611 = vsel %vm608, %v438, 0.0
      %v612 = vsel %vm608, %v442, 0.0
      %v613 = vsel %vm608, %v446, 0.0
      %v614 = vsel %vm608, %v450, 0.0
      %v615 = vsel %vm608, %v454, 0.0
      %v616 = vsel %vm608, %v458, 0.0
      %v617 = vsel %vm608, %v462, 0.0
      %v618 = vsel %vm608, %v466, 0.0
      %v619 = vsel %vm608, %v470, 0.0
      %v620 = vsel %vm608, %v474, 0.0
      %v621 = vsel %vm608, %v478, 0.0
      %v622 = vsel %vm608, %v482, 0.0
      %v623 = vsel %vm608, %v486, 0.0
      %v624 = vsel %vm608, %v490, 0.0
      %v625 = vsel %vm608, %v494, 0.0
      %v626 = vsel %vm608, %v498, 0.0
      %v627 = vsel %vm608, %v502, 0.0
      %v628 = vsel %vm608, %v506, 0.0
      %v629 = vlaneseq
      %v630 = vshrl.u32 %v629, 7
      %v631 = vadd.s32 %v630, 8
      %vm632 = vcmp.lt.s32.totalorder %v630, 11
      %vm633 = vcmp.lt.s32.totalorder %v631, 11
      %v634 = vsel %vm632, 1, 0
      %v635 = vsel %vm633, 1, 0
      %vm636 = vcmp.eq.s32.totalorder %v634, 1
      %vm637 = vcmp.eq.s32.totalorder %v635, 1
      %v638 = vsel %vm636, %v206, 0.0
      %v639 = vsel %vm636, %v588, 0.0
      %v640 = vsel %vm636, %v508, 0.0
      %v641 = vsel %vm636, %v609, 0.0
      %v642 = vsel %vm637, %v208, 0.0
      %v643 = vsel %vm637, %v589, 0.0
      %v644 = vsel %vm637, %v509, 0.0
      %v645 = vsel %vm637, %v610, 0.0
      %v646 = vsel %vm636, %v212, 0.0
      %v647 = vsel %vm636, %v590, 0.0
      %v648 = vsel %vm636, %v510, 0.0
      %v649 = vsel %vm636, %v611, 0.0
      %v650 = vsel %vm637, %v214, 0.0
      %v651 = vsel %vm637, %v591, 0.0
      %v652 = vsel %vm637, %v511, 0.0
      %v653 = vsel %vm637, %v612, 0.0
      %v654 = vsel %vm636, %v218, 0.0
      %v655 = vsel %vm636, %v592, 0.0
      %v656 = vsel %vm636, %v512, 0.0
      %v657 = vsel %vm636, %v613, 0.0
      %v658 = vsel %vm637, %v220, 0.0
      %v659 = vsel %vm637, %v593, 0.0
      %v660 = vsel %vm637, %v513, 0.0
      %v661 = vsel %vm637, %v614, 0.0
      %v662 = vsel %vm636, %v224, 0.0
      %v663 = vsel %vm636, %v594, 0.0
      %v664 = vsel %vm636, %v514, 0.0
      %v665 = vsel %vm636, %v615, 0.0
      %v666 = vsel %vm637, %v226, 0.0
      %v667 = vsel %vm637, %v595, 0.0
      %v668 = vsel %vm637, %v515, 0.0
      %v669 = vsel %vm637, %v616, 0.0
      %v670 = vsel %vm636, %v230, 0.0
      %v671 = vsel %vm636, %v596, 0.0
      %v672 = vsel %vm636, %v516, 0.0
      %v673 = vsel %vm636, %v617, 0.0
      %v674 = vsel %vm637, %v232, 0.0
      %v675 = vsel %vm637, %v597, 0.0
      %v676 = vsel %vm637, %v517, 0.0
      %v677 = vsel %vm637, %v618, 0.0
      %v678 = vsel %vm636, %v236, 0.0
      %v679 = vsel %vm636, %v598, 0.0
      %v680 = vsel %vm636, %v518, 0.0
      %v681 = vsel %vm636, %v619, 0.0
      %v682 = vsel %vm637, %v238, 0.0
      %v683 = vsel %vm637, %v599, 0.0
      %v684 = vsel %vm637, %v519, 0.0
      %v685 = vsel %vm637, %v620, 0.0
      %v686 = vsel %vm636, %v242, 0.0
      %v687 = vsel %vm636, %v600, 0.0
      %v688 = vsel %vm636, %v520, 0.0
      %v689 = vsel %vm636, %v621, 0.0
      %v690 = vsel %vm637, %v244, 0.0
      %v691 = vsel %vm637, %v601, 0.0
      %v692 = vsel %vm637, %v521, 0.0
      %v693 = vsel %vm637, %v622, 0.0
      %v694 = vsel %vm636, %v248, 0.0
      %v695 = vsel %vm636, %v602, 0.0
      %v696 = vsel %vm636, %v522, 0.0
      %v697 = vsel %vm636, %v623, 0.0
      %v698 = vsel %vm637, %v250, 0.0
      %v699 = vsel %vm637, %v603, 0.0
      %v700 = vsel %vm637, %v523, 0.0
      %v701 = vsel %vm637, %v624, 0.0
      %v702 = vsel %vm636, %v254, 0.0
      %v703 = vsel %vm636, %v604, 0.0
      %v704 = vsel %vm636, %v524, 0.0
      %v705 = vsel %vm636, %v625, 0.0
      %v706 = vsel %vm637, %v256, 0.0
      %v707 = vsel %vm637, %v605, 0.0
      %v708 = vsel %vm637, %v525, 0.0
      %v709 = vsel %vm637, %v626, 0.0
      %v710 = vsel %vm636, %v260, 0.0
      %v711 = vsel %vm636, %v606, 0.0
      %v712 = vsel %vm636, %v526, 0.0
      %v713 = vsel %vm636, %v627, 0.0
      %v714 = vsel %vm637, %v262, 0.0
      %v715 = vsel %vm637, %v607, 0.0
      %v716 = vsel %vm637, %v527, 0.0
      %v717 = vsel %vm637, %v628, 0.0
      %v718 = vpack.c.bf16 %v642, %v638
      %v719 = vpack.c.bf16 %v643, %v639
      %v720 = vpack.c.bf16 %v644, %v640
      %v721 = vpack.c.bf16 %v645, %v641
      %v722 = vpack.c.bf16 %v650, %v646
      %v723 = vpack.c.bf16 %v651, %v647
      %v724 = vpack.c.bf16 %v652, %v648
      %v725 = vpack.c.bf16 %v653, %v649
      %v726 = vpack.c.bf16 %v658, %v654
      %v727 = vpack.c.bf16 %v659, %v655
      %v728 = vpack.c.bf16 %v660, %v656
      %v729 = vpack.c.bf16 %v661, %v657
      %v730 = vpack.c.bf16 %v666, %v662
      %v731 = vpack.c.bf16 %v667, %v663
      %v732 = vpack.c.bf16 %v668, %v664
      %v733 = vpack.c.bf16 %v669, %v665
      %v734 = vpack.c.bf16 %v674, %v670
      %v735 = vpack.c.bf16 %v675, %v671
      %v736 = vpack.c.bf16 %v676, %v672
      %v737 = vpack.c.bf16 %v677, %v673
      %v738 = vpack.c.bf16 %v682, %v678
      %v739 = vpack.c.bf16 %v683, %v679
      %v740 = vpack.c.bf16 %v684, %v680
      %v741 = vpack.c.bf16 %v685, %v681
      %v742 = vpack.c.bf16 %v690, %v686
      %v743 = vpack.c.bf16 %v691, %v687
      %v744 = vpack.c.bf16 %v692, %v688
      %v745 = vpack.c.bf16 %v693, %v689
      %v746 = vpack.c.bf16 %v698, %v694
      %v747 = vpack.c.bf16 %v699, %v695
      %v748 = vpack.c.bf16 %v700, %v696
      %v749 = vpack.c.bf16 %v701, %v697
      %v750 = vpack.c.bf16 %v706, %v702
      %v751 = vpack.c.bf16 %v707, %v703
      %v752 = vpack.c.bf16 %v708, %v704
      %v753 = vpack.c.bf16 %v709, %v705
      %v754 = vpack.c.bf16 %v714, %v710
      %v755 = vpack.c.bf16 %v715, %v711
      %v756 = vpack.c.bf16 %v716, %v712
      %v757 = vpack.c.bf16 %v717, %v713
      %v758 = vld [vmem:[%s1] sm:$0xff]
      %v759 = vld [vmem:[%s1 + $0x8] sm:$0xff]
      %v760 = vld [vmem:[%s1 + $0x10] sm:$0xff]
      %v761 = vld [vmem:[%s1 + $0x18] sm:$0xff]
      %v762 = vld [vmem:[%s1 + $0x20] sm:$0xff]
      %v763 = vld [vmem:[%s1 + $0x28] sm:$0xff]
      %v764 = vld [vmem:[%s1 + $0x30] sm:$0xff]
      %v765 = vld [vmem:[%s1 + $0x38] sm:$0xff]
      %v766 = vld [vmem:[%s1 + $0x40] sm:$0xff]
      %v767 = vld [vmem:[%s1 + $0x48] sm:$0xff]
      %v768 = vld [vmem:[%s1 + $0x50] sm:$0xff]
      %v769 = vld [vmem:[%s1 + $0x58] sm:$0xff]
      %v770 = vld [vmem:[%s1 + $0x60] sm:$0xff]
      %v771 = vld [vmem:[%s1 + $0x68] sm:$0xff]
      %v772 = vld [vmem:[%s1 + $0x70] sm:$0xff]
      %v773 = vld [vmem:[%s1 + $0x78] sm:$0xff]
      %v774 = vld [vmem:[%s1 + $0x80] sm:$0xff]
      %v775 = vld [vmem:[%s1 + $0x88] sm:$0xff]
      %v776 = vld [vmem:[%s1 + $0x90] sm:$0xff]
      %v777 = vld [vmem:[%s1 + $0x98] sm:$0xff]
      %v778 = vld [vmem:[%s1 + $0xa0] sm:$0xff]
      %v779 = vld [vmem:[%s1 + $0xa8] sm:$0xff]
      %v780 = vld [vmem:[%s1 + $0xb0] sm:$0xff]
      %v781 = vld [vmem:[%s1 + $0xb8] sm:$0xff]
      %v782 = vld [vmem:[%s1 + $0xc0] sm:$0xff]
      %v783 = vld [vmem:[%s1 + $0xc8] sm:$0xff]
      %v784 = vld [vmem:[%s1 + $0xd0] sm:$0xff]
      %v785 = vld [vmem:[%s1 + $0xd8] sm:$0xff]
      %v786 = vld [vmem:[%s1 + $0xe0] sm:$0xff]
      %v787 = vld [vmem:[%s1 + $0xe8] sm:$0xff]
      %v788 = vld [vmem:[%s1 + $0xf0] sm:$0xff]
      %v789 = vld [vmem:[%s1 + $0xf8] sm:$0xff]
      %v790 = vld [vmem:[%s1 + $0x100] sm:$0xff]
      %v791 = vld [vmem:[%s1 + $0x108] sm:$0xff]
      %v792 = vld [vmem:[%s1 + $0x110] sm:$0xff]
      %v793 = vld [vmem:[%s1 + $0x118] sm:$0xff]
      %v794 = vld [vmem:[%s1 + $0x120] sm:$0xff]
      %v795 = vld [vmem:[%s1 + $0x128] sm:$0xff]
      %v796 = vld [vmem:[%s1 + $0x130] sm:$0xff]
      %v797 = vld [vmem:[%s1 + $0x138] sm:$0xff]
      %v798 = vld [vmem:[%s1 + $0x140] sm:$0xff]
      %v799 = vld [vmem:[%s1 + $0x148] sm:$0xff]
      %v800 = vld [vmem:[%s1 + $0x150] sm:$0xff]
      %v801 = vld [vmem:[%s1 + $0x158] sm:$0xff]
      %v802 = vld [vmem:[%s1 + $0x160] sm:$0xff]
      %v803 = vld [vmem:[%s1 + $0x168] sm:$0xff]
      %v804 = vld [vmem:[%s1 + $0x170] sm:$0xff]
      %v805 = vld [vmem:[%s1 + $0x178] sm:$0xff]
      %v806 = vld [vmem:[%s1 + $0x180] sm:$0xff]
      %v807 = vld [vmem:[%s1 + $0x188] sm:$0xff]
      %v808 = vld [vmem:[%s1 + $0x190] sm:$0xff]
      %v809 = vld [vmem:[%s1 + $0x198] sm:$0xff]
      %v810 = vld [vmem:[%s1 + $0x1a0] sm:$0xff]
      %v811 = vld [vmem:[%s1 + $0x1a8] sm:$0xff]
      %v812 = vld [vmem:[%s1 + $0x1b0] sm:$0xff]
      %v813 = vld [vmem:[%s1 + $0x1b8] sm:$0xff]
      %v814 = vld [vmem:[%s1 + $0x1c0] sm:$0xff]
      %v815 = vld [vmem:[%s1 + $0x1c8] sm:$0xff]
      %v816 = vld [vmem:[%s1 + $0x1d0] sm:$0xff]
      %v817 = vld [vmem:[%s1 + $0x1d8] sm:$0xff]
      %v818 = vld [vmem:[%s1 + $0x1e0] sm:$0xff]
      %v819 = vld [vmem:[%s1 + $0x1e8] sm:$0xff]
      %v820 = vld [vmem:[%s1 + $0x1f0] sm:$0xff]
      %v821 = vld [vmem:[%s1 + $0x1f8] sm:$0xff]
      %v822 = vld [vmem:[%s1 + $0x200] sm:$0xff]
      %v823 = vld [vmem:[%s1 + $0x208] sm:$0xff]
      %v824 = vld [vmem:[%s1 + $0x210] sm:$0xff]
      %v825 = vld [vmem:[%s1 + $0x218] sm:$0xff]
      %v826 = vld [vmem:[%s1 + $0x220] sm:$0xff]
      %v827 = vld [vmem:[%s1 + $0x228] sm:$0xff]
      %v828 = vld [vmem:[%s1 + $0x230] sm:$0xff]
      %v829 = vld [vmem:[%s1 + $0x238] sm:$0xff]
      %v830 = vld [vmem:[%s1 + $0x240] sm:$0xff]
      %v831 = vld [vmem:[%s1 + $0x248] sm:$0xff]
      %v832 = vld [vmem:[%s1 + $0x250] sm:$0xff]
      %v833 = vld [vmem:[%s1 + $0x258] sm:$0xff]
      %v834 = vld [vmem:[%s1 + $0x260] sm:$0xff]
      %v835 = vld [vmem:[%s1 + $0x268] sm:$0xff]
      %v836 = vld [vmem:[%s1 + $0x270] sm:$0xff]
      %v837 = vld [vmem:[%s1 + $0x278] sm:$0xff]
      %v838 = vld [vmem:[%s1 + $0x280] sm:$0xff]
      %v839 = vld [vmem:[%s1 + $0x288] sm:$0xff]
      %v840 = vld [vmem:[%s1 + $0x290] sm:$0xff]
      %v841 = vld [vmem:[%s1 + $0x298] sm:$0xff]
      %v842 = vld [vmem:[%s1 + $0x2a0] sm:$0xff]
      %v843 = vld [vmem:[%s1 + $0x2a8] sm:$0xff]
      %v844 = vld [vmem:[%s1 + $0x2b0] sm:$0xff]
      %v845 = vld [vmem:[%s1 + $0x2b8] sm:$0xff]
      %v846 = vld [vmem:[%s1 + $0x2c0] sm:$0xff]
      %v847 = vld [vmem:[%s1 + $0x2c8] sm:$0xff]
      %v848 = vld [vmem:[%s1 + $0x2d0] sm:$0xff]
      %v849 = vld [vmem:[%s1 + $0x2d8] sm:$0xff]
      %v850 = vld [vmem:[%s1 + $0x2e0] sm:$0xff]
      %v851 = vld [vmem:[%s1 + $0x2e8] sm:$0xff]
      %v852 = vld [vmem:[%s1 + $0x2f0] sm:$0xff]
      %v853 = vld [vmem:[%s1 + $0x2f8] sm:$0xff]
      %v854 = vld [vmem:[%s1 + $0x300] sm:$0xff]
      %v855 = vld [vmem:[%s1 + $0x308] sm:$0xff]
      %v856 = vld [vmem:[%s1 + $0x310] sm:$0xff]
      %v857 = vld [vmem:[%s1 + $0x318] sm:$0xff]
      %v858 = vld [vmem:[%s1 + $0x320] sm:$0xff]
      %v859 = vld [vmem:[%s1 + $0x328] sm:$0xff]
      %v860 = vld [vmem:[%s1 + $0x330] sm:$0xff]
      %v861 = vld [vmem:[%s1 + $0x338] sm:$0xff]
      %v862 = vld [vmem:[%s1 + $0x340] sm:$0xff]
      %v863 = vld [vmem:[%s1 + $0x348] sm:$0xff]
      %v864 = vld [vmem:[%s1 + $0x350] sm:$0xff]
      %v865 = vld [vmem:[%s1 + $0x358] sm:$0xff]
      %v866 = vld [vmem:[%s1 + $0x360] sm:$0xff]
      %v867 = vld [vmem:[%s1 + $0x368] sm:$0xff]
      %v868 = vld [vmem:[%s1 + $0x370] sm:$0xff]
      %v869 = vld [vmem:[%s1 + $0x378] sm:$0xff]
      %v870 = vld [vmem:[%s1 + $0x380] sm:$0xff]
      %v871 = vld [vmem:[%s1 + $0x388] sm:$0xff]
      %v872 = vld [vmem:[%s1 + $0x390] sm:$0xff]
      %v873 = vld [vmem:[%s1 + $0x398] sm:$0xff]
      %v874 = vld [vmem:[%s1 + $0x3a0] sm:$0xff]
      %v875 = vld [vmem:[%s1 + $0x3a8] sm:$0xff]
      %v876 = vld [vmem:[%s1 + $0x3b0] sm:$0xff]
      %v877 = vld [vmem:[%s1 + $0x3b8] sm:$0xff]
      %v878 = vld [vmem:[%s1 + $0x3c0] sm:$0xff]
      %v879 = vld [vmem:[%s1 + $0x3c8] sm:$0xff]
      %v880 = vld [vmem:[%s1 + $0x3d0] sm:$0xff]
      %v881 = vld [vmem:[%s1 + $0x3d8] sm:$0xff]
      %v882 = vld [vmem:[%s1 + $0x3e0] sm:$0xff]
      %v883 = vld [vmem:[%s1 + $0x3e8] sm:$0xff]
      %v884 = vld [vmem:[%s1 + $0x3f0] sm:$0xff]
      %v885 = vld [vmem:[%s1 + $0x3f8] sm:$0xff]
      %v1014 = vunpack.c.l.b16 %v758
      %v1015 = vunpack.c.h.b16 %v758
      %v1016 = vunpack.c.l.b16 %v759
      %v1017 = vunpack.c.h.b16 %v759
      %v1018 = vunpack.c.l.b16 %v760
      %v1019 = vunpack.c.h.b16 %v760
      %v1020 = vunpack.c.l.b16 %v761
      %v1021 = vunpack.c.h.b16 %v761
      %v1022 = vunpack.c.l.b16 %v762
      %v1023 = vunpack.c.h.b16 %v762
      %v1024 = vunpack.c.l.b16 %v763
      %v1025 = vunpack.c.h.b16 %v763
      %v1026 = vunpack.c.l.b16 %v764
      %v1027 = vunpack.c.h.b16 %v764
      %v1028 = vunpack.c.l.b16 %v765
      %v1029 = vunpack.c.h.b16 %v765
      %v1030 = vunpack.c.l.b16 %v766
      %v1031 = vunpack.c.h.b16 %v766
      %v1032 = vunpack.c.l.b16 %v767
      %v1033 = vunpack.c.h.b16 %v767
      %v1034 = vunpack.c.l.b16 %v768
      %v1035 = vunpack.c.h.b16 %v768
      %v1036 = vunpack.c.l.b16 %v769
      %v1037 = vunpack.c.h.b16 %v769
      %v1038 = vunpack.c.l.b16 %v770
      %v1039 = vunpack.c.h.b16 %v770
      %v1040 = vunpack.c.l.b16 %v771
      %v1041 = vunpack.c.h.b16 %v771
      %v1042 = vunpack.c.l.b16 %v772
      %v1043 = vunpack.c.h.b16 %v772
      %v1044 = vunpack.c.l.b16 %v773
      %v1045 = vunpack.c.h.b16 %v773
      %v1046 = vunpack.c.l.b16 %v774
      %v1047 = vunpack.c.h.b16 %v774
      %v1048 = vunpack.c.l.b16 %v775
      %v1049 = vunpack.c.h.b16 %v775
      %v1050 = vunpack.c.l.b16 %v776
      %v1051 = vunpack.c.h.b16 %v776
      %v1052 = vunpack.c.l.b16 %v777
      %v1053 = vunpack.c.h.b16 %v777
      %v1054 = vunpack.c.l.b16 %v778
      %v1055 = vunpack.c.h.b16 %v778
      %v1056 = vunpack.c.l.b16 %v779
      %v1057 = vunpack.c.h.b16 %v779
      %v1058 = vunpack.c.l.b16 %v780
      %v1059 = vunpack.c.h.b16 %v780
      %v1060 = vunpack.c.l.b16 %v781
      %v1061 = vunpack.c.h.b16 %v781
      %v1062 = vunpack.c.l.b16 %v782
      %v1063 = vunpack.c.h.b16 %v782
      %v1064 = vunpack.c.l.b16 %v783
      %v1065 = vunpack.c.h.b16 %v783
      %v1066 = vunpack.c.l.b16 %v784
      %v1067 = vunpack.c.h.b16 %v784
      %v1068 = vunpack.c.l.b16 %v785
      %v1069 = vunpack.c.h.b16 %v785
      %v1070 = vunpack.c.l.b16 %v786
      %v1071 = vunpack.c.h.b16 %v786
      %v1072 = vunpack.c.l.b16 %v787
      %v1073 = vunpack.c.h.b16 %v787
      %v1074 = vunpack.c.l.b16 %v788
      %v1075 = vunpack.c.h.b16 %v788
      %v1076 = vunpack.c.l.b16 %v789
      %v1077 = vunpack.c.h.b16 %v789
      %v1078 = vunpack.c.l.b16 %v790
      %v1079 = vunpack.c.h.b16 %v790
      %v1080 = vunpack.c.l.b16 %v791
      %v1081 = vunpack.c.h.b16 %v791
      %v1082 = vunpack.c.l.b16 %v792
      %v1083 = vunpack.c.h.b16 %v792
      %v1084 = vunpack.c.l.b16 %v793
      %v1085 = vunpack.c.h.b16 %v793
      %v1086 = vunpack.c.l.b16 %v794
      %v1087 = vunpack.c.h.b16 %v794
      %v1088 = vunpack.c.l.b16 %v795
      %v1089 = vunpack.c.h.b16 %v795
      %v1090 = vunpack.c.l.b16 %v796
      %v1091 = vunpack.c.h.b16 %v796
      %v1092 = vunpack.c.l.b16 %v797
      %v1093 = vunpack.c.h.b16 %v797
      %v1094 = vunpack.c.l.b16 %v798
      %v1095 = vunpack.c.h.b16 %v798
      %v1096 = vunpack.c.l.b16 %v799
      %v1097 = vunpack.c.h.b16 %v799
      %v1098 = vunpack.c.l.b16 %v800
      %v1099 = vunpack.c.h.b16 %v800
      %v1100 = vunpack.c.l.b16 %v801
      %v1101 = vunpack.c.h.b16 %v801
      %v1102 = vunpack.c.l.b16 %v802
      %v1103 = vunpack.c.h.b16 %v802
      %v1104 = vunpack.c.l.b16 %v803
      %v1105 = vunpack.c.h.b16 %v803
      %v1106 = vunpack.c.l.b16 %v804
      %v1107 = vunpack.c.h.b16 %v804
      %v1108 = vunpack.c.l.b16 %v805
      %v1109 = vunpack.c.h.b16 %v805
      %v1110 = vunpack.c.l.b16 %v806
      %v1111 = vunpack.c.h.b16 %v806
      %v1112 = vunpack.c.l.b16 %v807
      %v1113 = vunpack.c.h.b16 %v807
      %v1114 = vunpack.c.l.b16 %v808
      %v1115 = vunpack.c.h.b16 %v808
      %v1116 = vunpack.c.l.b16 %v809
      %v1117 = vunpack.c.h.b16 %v809
      %v1118 = vunpack.c.l.b16 %v810
      %v1119 = vunpack.c.h.b16 %v810
      %v1120 = vunpack.c.l.b16 %v811
      %v1121 = vunpack.c.h.b16 %v811
      %v1122 = vunpack.c.l.b16 %v812
      %v1123 = vunpack.c.h.b16 %v812
      %v1124 = vunpack.c.l.b16 %v813
      %v1125 = vunpack.c.h.b16 %v813
      %v1126 = vunpack.c.l.b16 %v814
      %v1127 = vunpack.c.h.b16 %v814
      %v1128 = vunpack.c.l.b16 %v815
      %v1129 = vunpack.c.h.b16 %v815
      %v1130 = vunpack.c.l.b16 %v816
      %v1131 = vunpack.c.h.b16 %v816
      %v1132 = vunpack.c.l.b16 %v817
      %v1133 = vunpack.c.h.b16 %v817
      %v1134 = vunpack.c.l.b16 %v818
      %v1135 = vunpack.c.h.b16 %v818
      %v1136 = vunpack.c.l.b16 %v819
      %v1137 = vunpack.c.h.b16 %v819
      %v1138 = vunpack.c.l.b16 %v820
      %v1139 = vunpack.c.h.b16 %v820
      %v1140 = vunpack.c.l.b16 %v821
      %v1141 = vunpack.c.h.b16 %v821
      %v1142 = vunpack.c.l.b16 %v822
      %v1143 = vunpack.c.h.b16 %v822
      %v1144 = vunpack.c.l.b16 %v823
      %v1145 = vunpack.c.h.b16 %v823
      %v1146 = vunpack.c.l.b16 %v824
      %v1147 = vunpack.c.h.b16 %v824
      %v1148 = vunpack.c.l.b16 %v825
      %v1149 = vunpack.c.h.b16 %v825
      %v1150 = vunpack.c.l.b16 %v826
      %v1151 = vunpack.c.h.b16 %v826
      %v1152 = vunpack.c.l.b16 %v827
      %v1153 = vunpack.c.h.b16 %v827
      %v1154 = vunpack.c.l.b16 %v828
      %v1155 = vunpack.c.h.b16 %v828
      %v1156 = vunpack.c.l.b16 %v829
      %v1157 = vunpack.c.h.b16 %v829
      %v1158 = vunpack.c.l.b16 %v830
      %v1159 = vunpack.c.h.b16 %v830
      %v1160 = vunpack.c.l.b16 %v831
      %v1161 = vunpack.c.h.b16 %v831
      %v1162 = vunpack.c.l.b16 %v832
      %v1163 = vunpack.c.h.b16 %v832
      %v1164 = vunpack.c.l.b16 %v833
      %v1165 = vunpack.c.h.b16 %v833
      %v1166 = vunpack.c.l.b16 %v834
      %v1167 = vunpack.c.h.b16 %v834
      %v1168 = vunpack.c.l.b16 %v835
      %v1169 = vunpack.c.h.b16 %v835
      %v1170 = vunpack.c.l.b16 %v836
      %v1171 = vunpack.c.h.b16 %v836
      %v1172 = vunpack.c.l.b16 %v837
      %v1173 = vunpack.c.h.b16 %v837
      %v1174 = vunpack.c.l.b16 %v838
      %v1175 = vunpack.c.h.b16 %v838
      %v1176 = vunpack.c.l.b16 %v839
      %v1177 = vunpack.c.h.b16 %v839
      %v1178 = vunpack.c.l.b16 %v840
      %v1179 = vunpack.c.h.b16 %v840
      %v1180 = vunpack.c.l.b16 %v841
      %v1181 = vunpack.c.h.b16 %v841
      %v1182 = vunpack.c.l.b16 %v842
      %v1183 = vunpack.c.h.b16 %v842
      %v1184 = vunpack.c.l.b16 %v843
      %v1185 = vunpack.c.h.b16 %v843
      %v1186 = vunpack.c.l.b16 %v844
      %v1187 = vunpack.c.h.b16 %v844
      %v1188 = vunpack.c.l.b16 %v845
      %v1189 = vunpack.c.h.b16 %v845
      %v1190 = vunpack.c.l.b16 %v846
      %v1191 = vunpack.c.h.b16 %v846
      %v1192 = vunpack.c.l.b16 %v847
      %v1193 = vunpack.c.h.b16 %v847
      %v1194 = vunpack.c.l.b16 %v848
      %v1195 = vunpack.c.h.b16 %v848
      %v1196 = vunpack.c.l.b16 %v849
      %v1197 = vunpack.c.h.b16 %v849
      %v1198 = vunpack.c.l.b16 %v850
      %v1199 = vunpack.c.h.b16 %v850
      %v1200 = vunpack.c.l.b16 %v851
      %v1201 = vunpack.c.h.b16 %v851
      %v1202 = vunpack.c.l.b16 %v852
      %v1203 = vunpack.c.h.b16 %v852
      %v1204 = vunpack.c.l.b16 %v853
      %v1205 = vunpack.c.h.b16 %v853
      %v1206 = vunpack.c.l.b16 %v854
      %v1207 = vunpack.c.h.b16 %v854
      %v1208 = vunpack.c.l.b16 %v855
      %v1209 = vunpack.c.h.b16 %v855
      %v1210 = vunpack.c.l.b16 %v856
      %v1211 = vunpack.c.h.b16 %v856
      %v1212 = vunpack.c.l.b16 %v857
      %v1213 = vunpack.c.h.b16 %v857
      %v1214 = vunpack.c.l.b16 %v858
      %v1215 = vunpack.c.h.b16 %v858
      %v1216 = vunpack.c.l.b16 %v859
      %v1217 = vunpack.c.h.b16 %v859
      %v1218 = vunpack.c.l.b16 %v860
      %v1219 = vunpack.c.h.b16 %v860
      %v1220 = vunpack.c.l.b16 %v861
      %v1221 = vunpack.c.h.b16 %v861
      %v1222 = vunpack.c.l.b16 %v862
      %v1223 = vunpack.c.h.b16 %v862
      %v1224 = vunpack.c.l.b16 %v863
      %v1225 = vunpack.c.h.b16 %v863
      %v1226 = vunpack.c.l.b16 %v864
      %v1227 = vunpack.c.h.b16 %v864
      %v1228 = vunpack.c.l.b16 %v865
      %v1229 = vunpack.c.h.b16 %v865
      %v1230 = vunpack.c.l.b16 %v866
      %v1231 = vunpack.c.h.b16 %v866
      %v1232 = vunpack.c.l.b16 %v867
      %v1233 = vunpack.c.h.b16 %v867
      %v1234 = vunpack.c.l.b16 %v868
      %v1235 = vunpack.c.h.b16 %v868
      %v1236 = vunpack.c.l.b16 %v869
      %v1237 = vunpack.c.h.b16 %v869
      %v1238 = vunpack.c.l.b16 %v870
      %v1239 = vunpack.c.h.b16 %v870
      %v1240 = vunpack.c.l.b16 %v871
      %v1241 = vunpack.c.h.b16 %v871
      %v1242 = vunpack.c.l.b16 %v872
      %v1243 = vunpack.c.h.b16 %v872
      %v1244 = vunpack.c.l.b16 %v873
      %v1245 = vunpack.c.h.b16 %v873
      %v1246 = vunpack.c.l.b16 %v874
      %v1247 = vunpack.c.h.b16 %v874
      %v1248 = vunpack.c.l.b16 %v875
      %v1249 = vunpack.c.h.b16 %v875
      %v1250 = vunpack.c.l.b16 %v876
      %v1251 = vunpack.c.h.b16 %v876
      %v1252 = vunpack.c.l.b16 %v877
      %v1253 = vunpack.c.h.b16 %v877
      %v1254 = vunpack.c.l.b16 %v878
      %v1255 = vunpack.c.h.b16 %v878
      %v1256 = vunpack.c.l.b16 %v879
      %v1257 = vunpack.c.h.b16 %v879
      %v1258 = vunpack.c.l.b16 %v880
      %v1259 = vunpack.c.h.b16 %v880
      %v1260 = vunpack.c.l.b16 %v881
      %v1261 = vunpack.c.h.b16 %v881
      %v1262 = vunpack.c.l.b16 %v882
      %v1263 = vunpack.c.h.b16 %v882
      %v1264 = vunpack.c.l.b16 %v883
      %v1265 = vunpack.c.h.b16 %v883
      %v1266 = vunpack.c.l.b16 %v884
      %v1267 = vunpack.c.h.b16 %v884
      %v1268 = vunpack.c.l.b16 %v885
      %v1269 = vunpack.c.h.b16 %v885
      %v1270 = vpack.c.b16 %v1018, %v1014
      %v1271 = vpack.c.b16 %v1019, %v1015
      %v1272 = vpack.c.b16 %v1020, %v1016
      %v1273 = vpack.c.b16 %v1021, %v1017
      %v1274 = vpack.c.b16 %v1026, %v1022
      %v1275 = vpack.c.b16 %v1027, %v1023
      %v1276 = vpack.c.b16 %v1028, %v1024
      %v1277 = vpack.c.b16 %v1029, %v1025
      %v1278 = vpack.c.b16 %v1034, %v1030
      %v1279 = vpack.c.b16 %v1035, %v1031
      %v1280 = vpack.c.b16 %v1036, %v1032
      %v1281 = vpack.c.b16 %v1037, %v1033
      %v1282 = vpack.c.b16 %v1042, %v1038
      %v1283 = vpack.c.b16 %v1043, %v1039
      %v1284 = vpack.c.b16 %v1044, %v1040
      %v1285 = vpack.c.b16 %v1045, %v1041
      %v1286 = vpack.c.b16 %v1050, %v1046
      %v1287 = vpack.c.b16 %v1051, %v1047
      %v1288 = vpack.c.b16 %v1052, %v1048
      %v1289 = vpack.c.b16 %v1053, %v1049
      %v1290 = vpack.c.b16 %v1058, %v1054
      %v1291 = vpack.c.b16 %v1059, %v1055
      %v1292 = vpack.c.b16 %v1060, %v1056
      %v1293 = vpack.c.b16 %v1061, %v1057
      %v1294 = vpack.c.b16 %v1066, %v1062
      %v1295 = vpack.c.b16 %v1067, %v1063
      %v1296 = vpack.c.b16 %v1068, %v1064
      %v1297 = vpack.c.b16 %v1069, %v1065
      %v1298 = vpack.c.b16 %v1074, %v1070
      %v1299 = vpack.c.b16 %v1075, %v1071
      %v1300 = vpack.c.b16 %v1076, %v1072
      %v1301 = vpack.c.b16 %v1077, %v1073
      %v1302 = vpack.c.b16 %v1082, %v1078
      %v1303 = vpack.c.b16 %v1083, %v1079
      %v1304 = vpack.c.b16 %v1084, %v1080
      %v1305 = vpack.c.b16 %v1085, %v1081
      %v1306 = vpack.c.b16 %v1090, %v1086
      %v1307 = vpack.c.b16 %v1091, %v1087
      %v1308 = vpack.c.b16 %v1092, %v1088
      %v1309 = vpack.c.b16 %v1093, %v1089
      %v1310 = vpack.c.b16 %v1098, %v1094
      %v1311 = vpack.c.b16 %v1099, %v1095
      %v1312 = vpack.c.b16 %v1100, %v1096
      %v1313 = vpack.c.b16 %v1101, %v1097
      %v1314 = vpack.c.b16 %v1106, %v1102
      %v1315 = vpack.c.b16 %v1107, %v1103
      %v1316 = vpack.c.b16 %v1108, %v1104
      %v1317 = vpack.c.b16 %v1109, %v1105
      %v1318 = vpack.c.b16 %v1114, %v1110
      %v1319 = vpack.c.b16 %v1115, %v1111
      %v1320 = vpack.c.b16 %v1116, %v1112
      %v1321 = vpack.c.b16 %v1117, %v1113
      %v1322 = vpack.c.b16 %v1122, %v1118
      %v1323 = vpack.c.b16 %v1123, %v1119
      %v1324 = vpack.c.b16 %v1124, %v1120
      %v1325 = vpack.c.b16 %v1125, %v1121
      %v1326 = vpack.c.b16 %v1130, %v1126
      %v1327 = vpack.c.b16 %v1131, %v1127
      %v1328 = vpack.c.b16 %v1132, %v1128
      %v1329 = vpack.c.b16 %v1133, %v1129
      %v1330 = vpack.c.b16 %v1138, %v1134
      %v1331 = vpack.c.b16 %v1139, %v1135
      %v1332 = vpack.c.b16 %v1140, %v1136
      %v1333 = vpack.c.b16 %v1141, %v1137
      %v1334 = vpack.c.b16 %v1146, %v1142
      %v1335 = vpack.c.b16 %v1147, %v1143
      %v1336 = vpack.c.b16 %v1148, %v1144
      %v1337 = vpack.c.b16 %v1149, %v1145
      %v1338 = vpack.c.b16 %v1154, %v1150
      %v1339 = vpack.c.b16 %v1155, %v1151
      %v1340 = vpack.c.b16 %v1156, %v1152
      %v1341 = vpack.c.b16 %v1157, %v1153
      %v1342 = vpack.c.b16 %v1162, %v1158
      %v1343 = vpack.c.b16 %v1163, %v1159
      %v1344 = vpack.c.b16 %v1164, %v1160
      %v1345 = vpack.c.b16 %v1165, %v1161
      %v1346 = vpack.c.b16 %v1170, %v1166
      %v1347 = vpack.c.b16 %v1171, %v1167
      %v1348 = vpack.c.b16 %v1172, %v1168
      %v1349 = vpack.c.b16 %v1173, %v1169
      %v1350 = vpack.c.b16 %v1178, %v1174
      %v1351 = vpack.c.b16 %v1179, %v1175
      %v1352 = vpack.c.b16 %v1180, %v1176
      %v1353 = vpack.c.b16 %v1181, %v1177
      %v1354 = vpack.c.b16 %v1186, %v1182
      %v1355 = vpack.c.b16 %v1187, %v1183
      %v1356 = vpack.c.b16 %v1188, %v1184
      %v1357 = vpack.c.b16 %v1189, %v1185
      %v1358 = vpack.c.b16 %v1194, %v1190
      %v1359 = vpack.c.b16 %v1195, %v1191
      %v1360 = vpack.c.b16 %v1196, %v1192
      %v1361 = vpack.c.b16 %v1197, %v1193
      %v1362 = vpack.c.b16 %v1202, %v1198
      %v1363 = vpack.c.b16 %v1203, %v1199
      %v1364 = vpack.c.b16 %v1204, %v1200
      %v1365 = vpack.c.b16 %v1205, %v1201
      %v1366 = vpack.c.b16 %v1210, %v1206
      %v1367 = vpack.c.b16 %v1211, %v1207
      %v1368 = vpack.c.b16 %v1212, %v1208
      %v1369 = vpack.c.b16 %v1213, %v1209
      %v1370 = vpack.c.b16 %v1218, %v1214
      %v1371 = vpack.c.b16 %v1219, %v1215
      %v1372 = vpack.c.b16 %v1220, %v1216
      %v1373 = vpack.c.b16 %v1221, %v1217
      %v1374 = vpack.c.b16 %v1226, %v1222
      %v1375 = vpack.c.b16 %v1227, %v1223
      %v1376 = vpack.c.b16 %v1228, %v1224
      %v1377 = vpack.c.b16 %v1229, %v1225
      %v1378 = vpack.c.b16 %v1234, %v1230
      %v1379 = vpack.c.b16 %v1235, %v1231
      %v1380 = vpack.c.b16 %v1236, %v1232
      %v1381 = vpack.c.b16 %v1237, %v1233
      %v1382 = vpack.c.b16 %v1242, %v1238
      %v1383 = vpack.c.b16 %v1243, %v1239
      %v1384 = vpack.c.b16 %v1244, %v1240
      %v1385 = vpack.c.b16 %v1245, %v1241
      %v1386 = vpack.c.b16 %v1250, %v1246
      %v1387 = vpack.c.b16 %v1251, %v1247
      %v1388 = vpack.c.b16 %v1252, %v1248
      %v1389 = vpack.c.b16 %v1253, %v1249
      %v1390 = vpack.c.b16 %v1258, %v1254
      %v1391 = vpack.c.b16 %v1259, %v1255
      %v1392 = vpack.c.b16 %v1260, %v1256
      %v1393 = vpack.c.b16 %v1261, %v1257
      %v1394 = vpack.c.b16 %v1266, %v1262
      %v1395 = vpack.c.b16 %v1267, %v1263
      %v1396 = vpack.c.b16 %v1268, %v1264
      %v1397 = vpack.c.b16 %v1269, %v1265
      %1526 = vmatprep.subr.bf16.mxu0 %v1299
      %1527 = vmatpush1.bf16.msra.mxu0 %v1298
      %1528 = vmatprep.subr.bf16.mxu0 %v1295
      %1529 = vmatpush1.bf16.msra.mxu0 %v1294
      %1530 = vmatprep.subr.bf16.mxu0 %v1291
      %1531 = vmatpush1.bf16.msra.mxu0 %v1290
      %1532 = vmatprep.subr.bf16.mxu0 %v1287
      %1533 = vmatpush1.bf16.msra.mxu0 %v1286
      %1534 = vmatprep.subr.bf16.mxu0 %v1283
      %1535 = vmatpush1.bf16.msra.mxu0 %v1282
      %1536 = vmatprep.subr.bf16.mxu0 %v1279
      %1537 = vmatpush1.bf16.msra.mxu0 %v1278
      %1538 = vmatprep.subr.bf16.mxu0 %v1275
      %1539 = vmatpush1.bf16.msra.mxu0 %v1274
      %1540 = vmatprep.subr.bf16.mxu0 %v1271
      %1541 = vmatpush1.bf16.msra.mxu0 %v1270
      %1542 = vmatprep.subr.bf16.mxu0 %v1331
      %1543 = vmatpush2.bf16.msra.mxu0 %v1330
      %1544 = vmatprep.subr.bf16.mxu0 %v1327
      %1545 = vmatpush2.bf16.msra.mxu0 %v1326
      %1546 = vmatprep.subr.bf16.mxu0 %v1323
      %1547 = vmatpush2.bf16.msra.mxu0 %v1322
      %1548 = vmatprep.subr.bf16.mxu0 %v1319
      %1549 = vmatpush2.bf16.msra.mxu0 %v1318
      %1550 = vmatprep.subr.bf16.mxu0 %v1315
      %1551 = vmatpush2.bf16.msra.mxu0 %v1314
      %1552 = vmatprep.subr.bf16.mxu0 %v1311
      %1553 = vmatpush2.bf16.msra.mxu0 %v1310
      %1554 = vmatprep.subr.bf16.mxu0 %v1307
      %1555 = vmatpush2.bf16.msra.mxu0 %v1306
      %1556 = vmatprep.subr.bf16.mxu0 %v1303
      %1557 = vmatpush2.bf16.msra.mxu0 %v1302
      %1558 = vmatprep.mubr.bf16.mxu0 %v719
      %1559 = vmatmul.mubr.bf16.gmra.mxu0 %v718
      %v1560 = vpop.f32.mrf.mxu0
      %v1561 = vadd.f32 0.0, %v1560
      %v1562 = vpop.f32.mrf.mxu0
      %v1563 = vadd.f32 0.0, %v1562
      %v1564 = vpop.f32.mrf.mxu0
      %v1565 = vadd.f32 0.0, %v1564
      %v1566 = vpop.f32.mrf.mxu0
      %v1567 = vadd.f32 0.0, %v1566
      %1568 = vmatprep.mubr.bf16.mxu0 %v723
      %1569 = vmatmul.mubr.bf16.gmra.mxu0 %v722
      %v1570 = vpop.f32.mrf.mxu0
      %v1571 = vadd.f32 0.0, %v1570
      %v1572 = vpop.f32.mrf.mxu0
      %v1573 = vadd.f32 0.0, %v1572
      %v1574 = vpop.f32.mrf.mxu0
      %v1575 = vadd.f32 0.0, %v1574
      %v1576 = vpop.f32.mrf.mxu0
      %v1577 = vadd.f32 0.0, %v1576
      %1578 = vmatprep.mubr.bf16.mxu0 %v727
      %1579 = vmatmul.mubr.bf16.gmra.mxu0 %v726
      %v1580 = vpop.f32.mrf.mxu0
      %v1581 = vadd.f32 0.0, %v1580
      %v1582 = vpop.f32.mrf.mxu0
      %v1583 = vadd.f32 0.0, %v1582
      %v1584 = vpop.f32.mrf.mxu0
      %v1585 = vadd.f32 0.0, %v1584
      %v1586 = vpop.f32.mrf.mxu0
      %v1587 = vadd.f32 0.0, %v1586
      %1588 = vmatprep.mubr.bf16.mxu0 %v731
      %1589 = vmatmul.mubr.bf16.gmra.mxu0 %v730
      %v1590 = vpop.f32.mrf.mxu0
      %v1591 = vadd.f32 0.0, %v1590
      %v1592 = vpop.f32.mrf.mxu0
      %v1593 = vadd.f32 0.0, %v1592
      %v1594 = vpop.f32.mrf.mxu0
      %v1595 = vadd.f32 0.0, %v1594
      %v1596 = vpop.f32.mrf.mxu0
      %v1597 = vadd.f32 0.0, %v1596
      %1598 = vmatprep.mubr.bf16.mxu0 %v735
      %1599 = vmatmul.mubr.bf16.gmra.mxu0 %v734
      %v1600 = vpop.f32.mrf.mxu0
      %v1601 = vadd.f32 0.0, %v1600
      %v1602 = vpop.f32.mrf.mxu0
      %v1603 = vadd.f32 0.0, %v1602
      %v1604 = vpop.f32.mrf.mxu0
      %v1605 = vadd.f32 0.0, %v1604
      %v1606 = vpop.f32.mrf.mxu0
      %v1607 = vadd.f32 0.0, %v1606
      %1608 = vmatprep.mubr.bf16.mxu0 %v739
      %1609 = vmatmul.mubr.bf16.gmra.mxu0 %v738
      %v1610 = vpop.f32.mrf.mxu0
      %v1611 = vadd.f32 0.0, %v1610
      %v1612 = vpop.f32.mrf.mxu0
      %v1613 = vadd.f32 0.0, %v1612
      %v1614 = vpop.f32.mrf.mxu0
      %v1615 = vadd.f32 0.0, %v1614
      %v1616 = vpop.f32.mrf.mxu0
      %v1617 = vadd.f32 0.0, %v1616
      %1618 = vmatprep.mubr.bf16.mxu0 %v743
      %1619 = vmatmul.mubr.bf16.gmra.mxu0 %v742
      %v1620 = vpop.f32.mrf.mxu0
      %v1621 = vadd.f32 0.0, %v1620
      %v1622 = vpop.f32.mrf.mxu0
      %v1623 = vadd.f32 0.0, %v1622
      %v1624 = vpop.f32.mrf.mxu0
      %v1625 = vadd.f32 0.0, %v1624
      %v1626 = vpop.f32.mrf.mxu0
      %v1627 = vadd.f32 0.0, %v1626
      %1628 = vmatprep.mubr.bf16.mxu0 %v747
      %1629 = vmatmul.mubr.bf16.gmra.mxu0 %v746
      %v1630 = vpop.f32.mrf.mxu0
      %v1631 = vadd.f32 0.0, %v1630
      %v1632 = vpop.f32.mrf.mxu0
      %v1633 = vadd.f32 0.0, %v1632
      %v1634 = vpop.f32.mrf.mxu0
      %v1635 = vadd.f32 0.0, %v1634
      %v1636 = vpop.f32.mrf.mxu0
      %v1637 = vadd.f32 0.0, %v1636
      %1638 = vmatprep.mubr.bf16.mxu0 %v751
      %1639 = vmatmul.mubr.bf16.gmra.mxu0 %v750
      %v1640 = vpop.f32.mrf.mxu0
      %v1641 = vadd.f32 0.0, %v1640
      %v1642 = vpop.f32.mrf.mxu0
      %v1643 = vadd.f32 0.0, %v1642
      %v1644 = vpop.f32.mrf.mxu0
      %v1645 = vadd.f32 0.0, %v1644
      %v1646 = vpop.f32.mrf.mxu0
      %v1647 = vadd.f32 0.0, %v1646
      %1648 = vmatprep.mubr.bf16.mxu0 %v755
      %1649 = vmatmul.mubr.bf16.gmra.mxu0 %v754
      %v1650 = vpop.f32.mrf.mxu0
      %v1651 = vadd.f32 0.0, %v1650
      %v1652 = vpop.f32.mrf.mxu0
      %v1653 = vadd.f32 0.0, %v1652
      %v1654 = vpop.f32.mrf.mxu0
      %v1655 = vadd.f32 0.0, %v1654
      %v1656 = vpop.f32.mrf.mxu0
      %v1657 = vadd.f32 0.0, %v1656
      %1658 = vdwg.mxu0
      %1659 = vmatprep.subr.bf16.mxu0 %v1363
      %1660 = vmatpush1.bf16.msra.mxu0 %v1362
      %1661 = vmatprep.subr.bf16.mxu0 %v1359
      %1662 = vmatpush1.bf16.msra.mxu0 %v1358
      %1663 = vmatprep.subr.bf16.mxu0 %v1355
      %1664 = vmatpush1.bf16.msra.mxu0 %v1354
      %1665 = vmatprep.subr.bf16.mxu0 %v1351
      %1666 = vmatpush1.bf16.msra.mxu0 %v1350
      %1667 = vmatprep.subr.bf16.mxu0 %v1347
      %1668 = vmatpush1.bf16.msra.mxu0 %v1346
      %1669 = vmatprep.subr.bf16.mxu0 %v1343
      %1670 = vmatpush1.bf16.msra.mxu0 %v1342
      %1671 = vmatprep.subr.bf16.mxu0 %v1339
      %1672 = vmatpush1.bf16.msra.mxu0 %v1338
      %1673 = vmatprep.subr.bf16.mxu0 %v1335
      %1674 = vmatpush1.bf16.msra.mxu0 %v1334
      %1675 = vmatprep.subr.bf16.mxu0 %v1395
      %1676 = vmatpush2.bf16.msra.mxu0 %v1394
      %1677 = vmatprep.subr.bf16.mxu0 %v1391
      %1678 = vmatpush2.bf16.msra.mxu0 %v1390
      %1679 = vmatprep.subr.bf16.mxu0 %v1387
      %1680 = vmatpush2.bf16.msra.mxu0 %v1386
      %1681 = vmatprep.subr.bf16.mxu0 %v1383
      %1682 = vmatpush2.bf16.msra.mxu0 %v1382
      %1683 = vmatprep.subr.bf16.mxu0 %v1379
      %1684 = vmatpush2.bf16.msra.mxu0 %v1378
      %1685 = vmatprep.subr.bf16.mxu0 %v1375
      %1686 = vmatpush2.bf16.msra.mxu0 %v1374
      %1687 = vmatprep.subr.bf16.mxu0 %v1371
      %1688 = vmatpush2.bf16.msra.mxu0 %v1370
      %1689 = vmatprep.subr.bf16.mxu0 %v1367
      %1690 = vmatpush2.bf16.msra.mxu0 %v1366
      %1691 = vmatprep.mubr.bf16.mxu0 %v721
      %1692 = vmatmul.mubr.bf16.gmra.mxu0 %v720
      %v1693 = vpop.f32.mrf.mxu0
      %v1694 = vadd.f32 %v1561, %v1693
      %v1695 = vpop.f32.mrf.mxu0
      %v1696 = vadd.f32 %v1563, %v1695
      %v1697 = vpop.f32.mrf.mxu0
      %v1698 = vadd.f32 %v1565, %v1697
      %v1699 = vpop.f32.mrf.mxu0
      %v1700 = vadd.f32 %v1567, %v1699
      %1701 = vmatprep.mubr.bf16.mxu0 %v725
      %1702 = vmatmul.mubr.bf16.gmra.mxu0 %v724
      %v1703 = vpop.f32.mrf.mxu0
      %v1704 = vadd.f32 %v1571, %v1703
      %v1705 = vpop.f32.mrf.mxu0
      %v1706 = vadd.f32 %v1573, %v1705
      %v1707 = vpop.f32.mrf.mxu0
      %v1708 = vadd.f32 %v1575, %v1707
      %v1709 = vpop.f32.mrf.mxu0
      %v1710 = vadd.f32 %v1577, %v1709
      %1711 = vmatprep.mubr.bf16.mxu0 %v729
      %1712 = vmatmul.mubr.bf16.gmra.mxu0 %v728
      %v1713 = vpop.f32.mrf.mxu0
      %v1714 = vadd.f32 %v1581, %v1713
      %v1715 = vpop.f32.mrf.mxu0
      %v1716 = vadd.f32 %v1583, %v1715
      %v1717 = vpop.f32.mrf.mxu0
      %v1718 = vadd.f32 %v1585, %v1717
      %v1719 = vpop.f32.mrf.mxu0
      %v1720 = vadd.f32 %v1587, %v1719
      %1721 = vmatprep.mubr.bf16.mxu0 %v733
      %1722 = vmatmul.mubr.bf16.gmra.mxu0 %v732
      %v1723 = vpop.f32.mrf.mxu0
      %v1724 = vadd.f32 %v1591, %v1723
      %v1725 = vpop.f32.mrf.mxu0
      %v1726 = vadd.f32 %v1593, %v1725
      %v1727 = vpop.f32.mrf.mxu0
      %v1728 = vadd.f32 %v1595, %v1727
      %v1729 = vpop.f32.mrf.mxu0
      %v1730 = vadd.f32 %v1597, %v1729
      %1731 = vmatprep.mubr.bf16.mxu0 %v737
      %1732 = vmatmul.mubr.bf16.gmra.mxu0 %v736
      %v1733 = vpop.f32.mrf.mxu0
      %v1734 = vadd.f32 %v1601, %v1733
      %v1735 = vpop.f32.mrf.mxu0
      %v1736 = vadd.f32 %v1603, %v1735
      %v1737 = vpop.f32.mrf.mxu0
      %v1738 = vadd.f32 %v1605, %v1737
      %v1739 = vpop.f32.mrf.mxu0
      %v1740 = vadd.f32 %v1607, %v1739
      %1741 = vmatprep.mubr.bf16.mxu0 %v741
      %1742 = vmatmul.mubr.bf16.gmra.mxu0 %v740
      %v1743 = vpop.f32.mrf.mxu0
      %v1744 = vadd.f32 %v1611, %v1743
      %v1745 = vpop.f32.mrf.mxu0
      %v1746 = vadd.f32 %v1613, %v1745
      %v1747 = vpop.f32.mrf.mxu0
      %v1748 = vadd.f32 %v1615, %v1747
      %v1749 = vpop.f32.mrf.mxu0
      %v1750 = vadd.f32 %v1617, %v1749
      %1751 = vmatprep.mubr.bf16.mxu0 %v745
      %1752 = vmatmul.mubr.bf16.gmra.mxu0 %v744
      %v1753 = vpop.f32.mrf.mxu0
      %v1754 = vadd.f32 %v1621, %v1753
      %v1755 = vpop.f32.mrf.mxu0
      %v1756 = vadd.f32 %v1623, %v1755
      %v1757 = vpop.f32.mrf.mxu0
      %v1758 = vadd.f32 %v1625, %v1757
      %v1759 = vpop.f32.mrf.mxu0
      %v1760 = vadd.f32 %v1627, %v1759
      %1761 = vmatprep.mubr.bf16.mxu0 %v749
      %1762 = vmatmul.mubr.bf16.gmra.mxu0 %v748
      %v1763 = vpop.f32.mrf.mxu0
      %v1764 = vadd.f32 %v1631, %v1763
      %v1765 = vpop.f32.mrf.mxu0
      %v1766 = vadd.f32 %v1633, %v1765
      %v1767 = vpop.f32.mrf.mxu0
      %v1768 = vadd.f32 %v1635, %v1767
      %v1769 = vpop.f32.mrf.mxu0
      %v1770 = vadd.f32 %v1637, %v1769
      %1771 = vmatprep.mubr.bf16.mxu0 %v753
      %1772 = vmatmul.mubr.bf16.gmra.mxu0 %v752
      %v1773 = vpop.f32.mrf.mxu0
      %v1774 = vadd.f32 %v1641, %v1773
      %v1775 = vpop.f32.mrf.mxu0
      %v1776 = vadd.f32 %v1643, %v1775
      %v1777 = vpop.f32.mrf.mxu0
      %v1778 = vadd.f32 %v1645, %v1777
      %v1779 = vpop.f32.mrf.mxu0
      %v1780 = vadd.f32 %v1647, %v1779
      %1781 = vmatprep.mubr.bf16.mxu0 %v757
      %1782 = vmatmul.mubr.bf16.gmra.mxu0 %v756
      %v1783 = vpop.f32.mrf.mxu0
      %v1784 = vadd.f32 %v1651, %v1783
      %v1785 = vpop.f32.mrf.mxu0
      %v1786 = vadd.f32 %v1653, %v1785
      %v1787 = vpop.f32.mrf.mxu0
      %v1788 = vadd.f32 %v1655, %v1787
      %v1789 = vpop.f32.mrf.mxu0
      %v1790 = vadd.f32 %v1657, %v1789
      %1791 = vdwg.mxu0
      %1792 = vmatprep.subr.bf16.mxu0 %v1301
      %1793 = vmatpush1.bf16.msra.mxu0 %v1300
      %1794 = vmatprep.subr.bf16.mxu0 %v1297
      %1795 = vmatpush1.bf16.msra.mxu0 %v1296
      %1796 = vmatprep.subr.bf16.mxu0 %v1293
      %1797 = vmatpush1.bf16.msra.mxu0 %v1292
      %1798 = vmatprep.subr.bf16.mxu0 %v1289
      %1799 = vmatpush1.bf16.msra.mxu0 %v1288
      %1800 = vmatprep.subr.bf16.mxu0 %v1285
      %1801 = vmatpush1.bf16.msra.mxu0 %v1284
      %1802 = vmatprep.subr.bf16.mxu0 %v1281
      %1803 = vmatpush1.bf16.msra.mxu0 %v1280
      %1804 = vmatprep.subr.bf16.mxu0 %v1277
      %1805 = vmatpush1.bf16.msra.mxu0 %v1276
      %1806 = vmatprep.subr.bf16.mxu0 %v1273
      %1807 = vmatpush1.bf16.msra.mxu0 %v1272
      %1808 = vmatprep.subr.bf16.mxu0 %v1333
      %1809 = vmatpush2.bf16.msra.mxu0 %v1332
      %1810 = vmatprep.subr.bf16.mxu0 %v1329
      %1811 = vmatpush2.bf16.msra.mxu0 %v1328
      %1812 = vmatprep.subr.bf16.mxu0 %v1325
      %1813 = vmatpush2.bf16.msra.mxu0 %v1324
      %1814 = vmatprep.subr.bf16.mxu0 %v1321
      %1815 = vmatpush2.bf16.msra.mxu0 %v1320
      %1816 = vmatprep.subr.bf16.mxu0 %v1317
      %1817 = vmatpush2.bf16.msra.mxu0 %v1316
      %1818 = vmatprep.subr.bf16.mxu0 %v1313
      %1819 = vmatpush2.bf16.msra.mxu0 %v1312
      %1820 = vmatprep.subr.bf16.mxu0 %v1309
      %1821 = vmatpush2.bf16.msra.mxu0 %v1308
      %1822 = vmatprep.subr.bf16.mxu0 %v1305
      %1823 = vmatpush2.bf16.msra.mxu0 %v1304
      %1824 = vmatprep.mubr.bf16.mxu0 %v719
      %1825 = vmatmul.mubr.bf16.gmra.mxu0 %v718
      %v1826 = vpop.f32.mrf.mxu0
      %v1827 = vadd.f32 0.0, %v1826
      %v1828 = vpop.f32.mrf.mxu0
      %v1829 = vadd.f32 0.0, %v1828
      %v1830 = vpop.f32.mrf.mxu0
      %v1831 = vadd.f32 0.0, %v1830
      %v1832 = vpop.f32.mrf.mxu0
      %v1833 = vadd.f32 0.0, %v1832
      %1834 = vmatprep.mubr.bf16.mxu0 %v723
      %1835 = vmatmul.mubr.bf16.gmra.mxu0 %v722
      %v1836 = vpop.f32.mrf.mxu0
      %v1837 = vadd.f32 0.0, %v1836
      %v1838 = vpop.f32.mrf.mxu0
      %v1839 = vadd.f32 0.0, %v1838
      %v1840 = vpop.f32.mrf.mxu0
      %v1841 = vadd.f32 0.0, %v1840
      %v1842 = vpop.f32.mrf.mxu0
      %v1843 = vadd.f32 0.0, %v1842
      %1844 = vmatprep.mubr.bf16.mxu0 %v727
      %1845 = vmatmul.mubr.bf16.gmra.mxu0 %v726
      %v1846 = vpop.f32.mrf.mxu0
      %v1847 = vadd.f32 0.0, %v1846
      %v1848 = vpop.f32.mrf.mxu0
      %v1849 = vadd.f32 0.0, %v1848
      %v1850 = vpop.f32.mrf.mxu0
      %v1851 = vadd.f32 0.0, %v1850
      %v1852 = vpop.f32.mrf.mxu0
      %v1853 = vadd.f32 0.0, %v1852
      %1854 = vmatprep.mubr.bf16.mxu0 %v731
      %1855 = vmatmul.mubr.bf16.gmra.mxu0 %v730
      %v1856 = vpop.f32.mrf.mxu0
      %v1857 = vadd.f32 0.0, %v1856
      %v1858 = vpop.f32.mrf.mxu0
      %v1859 = vadd.f32 0.0, %v1858
      %v1860 = vpop.f32.mrf.mxu0
      %v1861 = vadd.f32 0.0, %v1860
      %v1862 = vpop.f32.mrf.mxu0
      %v1863 = vadd.f32 0.0, %v1862
      %1864 = vmatprep.mubr.bf16.mxu0 %v735
      %1865 = vmatmul.mubr.bf16.gmra.mxu0 %v734
      %v1866 = vpop.f32.mrf.mxu0
      %v1867 = vadd.f32 0.0, %v1866
      %v1868 = vpop.f32.mrf.mxu0
      %v1869 = vadd.f32 0.0, %v1868
      %v1870 = vpop.f32.mrf.mxu0
      %v1871 = vadd.f32 0.0, %v1870
      %v1872 = vpop.f32.mrf.mxu0
      %v1873 = vadd.f32 0.0, %v1872
      %1874 = vmatprep.mubr.bf16.mxu0 %v739
      %1875 = vmatmul.mubr.bf16.gmra.mxu0 %v738
      %v1876 = vpop.f32.mrf.mxu0
      %v1877 = vadd.f32 0.0, %v1876
      %v1878 = vpop.f32.mrf.mxu0
      %v1879 = vadd.f32 0.0, %v1878
      %v1880 = vpop.f32.mrf.mxu0
      %v1881 = vadd.f32 0.0, %v1880
      %v1882 = vpop.f32.mrf.mxu0
      %v1883 = vadd.f32 0.0, %v1882
      %1884 = vmatprep.mubr.bf16.mxu0 %v743
      %1885 = vmatmul.mubr.bf16.gmra.mxu0 %v742
      %v1886 = vpop.f32.mrf.mxu0
      %v1887 = vadd.f32 0.0, %v1886
      %v1888 = vpop.f32.mrf.mxu0
      %v1889 = vadd.f32 0.0, %v1888
      %v1890 = vpop.f32.mrf.mxu0
      %v1891 = vadd.f32 0.0, %v1890
      %v1892 = vpop.f32.mrf.mxu0
      %v1893 = vadd.f32 0.0, %v1892
      %1894 = vmatprep.mubr.bf16.mxu0 %v747
      %1895 = vmatmul.mubr.bf16.gmra.mxu0 %v746
      %v1896 = vpop.f32.mrf.mxu0
      %v1897 = vadd.f32 0.0, %v1896
      %v1898 = vpop.f32.mrf.mxu0
      %v1899 = vadd.f32 0.0, %v1898
      %v1900 = vpop.f32.mrf.mxu0
      %v1901 = vadd.f32 0.0, %v1900
      %v1902 = vpop.f32.mrf.mxu0
      %v1903 = vadd.f32 0.0, %v1902
      %1904 = vmatprep.mubr.bf16.mxu0 %v751
      %1905 = vmatmul.mubr.bf16.gmra.mxu0 %v750
      %v1906 = vpop.f32.mrf.mxu0
      %v1907 = vadd.f32 0.0, %v1906
      %v1908 = vpop.f32.mrf.mxu0
      %v1909 = vadd.f32 0.0, %v1908
      %v1910 = vpop.f32.mrf.mxu0
      %v1911 = vadd.f32 0.0, %v1910
      %v1912 = vpop.f32.mrf.mxu0
      %v1913 = vadd.f32 0.0, %v1912
      %1914 = vmatprep.mubr.bf16.mxu0 %v755
      %1915 = vmatmul.mubr.bf16.gmra.mxu0 %v754
      %v1916 = vpop.f32.mrf.mxu0
      %v1917 = vadd.f32 0.0, %v1916
      %v1918 = vpop.f32.mrf.mxu0
      %v1919 = vadd.f32 0.0, %v1918
      %v1920 = vpop.f32.mrf.mxu0
      %v1921 = vadd.f32 0.0, %v1920
      %v1922 = vpop.f32.mrf.mxu0
      %v1923 = vadd.f32 0.0, %v1922
      %1924 = vdwg.mxu0
      %1925 = vmatprep.subr.bf16.mxu0 %v1365
      %1926 = vmatpush1.bf16.msra.mxu0 %v1364
      %1927 = vmatprep.subr.bf16.mxu0 %v1361
      %1928 = vmatpush1.bf16.msra.mxu0 %v1360
      %1929 = vmatprep.subr.bf16.mxu0 %v1357
      %1930 = vmatpush1.bf16.msra.mxu0 %v1356
      %1931 = vmatprep.subr.bf16.mxu0 %v1353
      %1932 = vmatpush1.bf16.msra.mxu0 %v1352
      %1933 = vmatprep.subr.bf16.mxu0 %v1349
      %1934 = vmatpush1.bf16.msra.mxu0 %v1348
      %1935 = vmatprep.subr.bf16.mxu0 %v1345
      %1936 = vmatpush1.bf16.msra.mxu0 %v1344
      %1937 = vmatprep.subr.bf16.mxu0 %v1341
      %1938 = vmatpush1.bf16.msra.mxu0 %v1340
      %1939 = vmatprep.subr.bf16.mxu0 %v1337
      %1940 = vmatpush1.bf16.msra.mxu0 %v1336
      %1941 = vmatprep.subr.bf16.mxu0 %v1397
      %1942 = vmatpush2.bf16.msra.mxu0 %v1396
      %1943 = vmatprep.subr.bf16.mxu0 %v1393
      %1944 = vmatpush2.bf16.msra.mxu0 %v1392
      %1945 = vmatprep.subr.bf16.mxu0 %v1389
      %1946 = vmatpush2.bf16.msra.mxu0 %v1388
      %1947 = vmatprep.subr.bf16.mxu0 %v1385
      %1948 = vmatpush2.bf16.msra.mxu0 %v1384
      %1949 = vmatprep.subr.bf16.mxu0 %v1381
      %1950 = vmatpush2.bf16.msra.mxu0 %v1380
      %1951 = vmatprep.subr.bf16.mxu0 %v1377
      %1952 = vmatpush2.bf16.msra.mxu0 %v1376
      %1953 = vmatprep.subr.bf16.mxu0 %v1373
      %1954 = vmatpush2.bf16.msra.mxu0 %v1372
      %1955 = vmatprep.subr.bf16.mxu0 %v1369
      %1956 = vmatpush2.bf16.msra.mxu0 %v1368
      %1957 = vmatprep.mubr.bf16.mxu0 %v721
      %1958 = vmatmul.mubr.bf16.gmra.mxu0 %v720
      %v1959 = vpop.f32.mrf.mxu0
      %v1960 = vadd.f32 %v1827, %v1959
      %v1961 = vpop.f32.mrf.mxu0
      %v1962 = vadd.f32 %v1829, %v1961
      %v1963 = vpop.f32.mrf.mxu0
      %v1964 = vadd.f32 %v1831, %v1963
      %v1965 = vpop.f32.mrf.mxu0
      %v1966 = vadd.f32 %v1833, %v1965
      %1967 = vmatprep.mubr.bf16.mxu0 %v725
      %1968 = vmatmul.mubr.bf16.gmra.mxu0 %v724
      %v1969 = vpop.f32.mrf.mxu0
      %v1970 = vadd.f32 %v1837, %v1969
      %v1971 = vpop.f32.mrf.mxu0
      %v1972 = vadd.f32 %v1839, %v1971
      %v1973 = vpop.f32.mrf.mxu0
      %v1974 = vadd.f32 %v1841, %v1973
      %v1975 = vpop.f32.mrf.mxu0
      %v1976 = vadd.f32 %v1843, %v1975
      %1977 = vmatprep.mubr.bf16.mxu0 %v729
      %1978 = vmatmul.mubr.bf16.gmra.mxu0 %v728
      %v1979 = vpop.f32.mrf.mxu0
      %v1980 = vadd.f32 %v1847, %v1979
      %v1981 = vpop.f32.mrf.mxu0
      %v1982 = vadd.f32 %v1849, %v1981
      %v1983 = vpop.f32.mrf.mxu0
      %v1984 = vadd.f32 %v1851, %v1983
      %v1985 = vpop.f32.mrf.mxu0
      %v1986 = vadd.f32 %v1853, %v1985
      %1987 = vmatprep.mubr.bf16.mxu0 %v733
      %1988 = vmatmul.mubr.bf16.gmra.mxu0 %v732
      %v1989 = vpop.f32.mrf.mxu0
      %v1990 = vadd.f32 %v1857, %v1989
      %v1991 = vpop.f32.mrf.mxu0
      %v1992 = vadd.f32 %v1859, %v1991
      %v1993 = vpop.f32.mrf.mxu0
      %v1994 = vadd.f32 %v1861, %v1993
      %v1995 = vpop.f32.mrf.mxu0
      %v1996 = vadd.f32 %v1863, %v1995
      %1997 = vmatprep.mubr.bf16.mxu0 %v737
      %1998 = vmatmul.mubr.bf16.gmra.mxu0 %v736
      %v1999 = vpop.f32.mrf.mxu0
      %v2000 = vadd.f32 %v1867, %v1999
      %v2001 = vpop.f32.mrf.mxu0
      %v2002 = vadd.f32 %v1869, %v2001
      %v2003 = vpop.f32.mrf.mxu0
      %v2004 = vadd.f32 %v1871, %v2003
      %v2005 = vpop.f32.mrf.mxu0
      %v2006 = vadd.f32 %v1873, %v2005
      %2007 = vmatprep.mubr.bf16.mxu0 %v741
      %2008 = vmatmul.mubr.bf16.gmra.mxu0 %v740
      %v2009 = vpop.f32.mrf.mxu0
      %v2010 = vadd.f32 %v1877, %v2009
      %v2011 = vpop.f32.mrf.mxu0
      %v2012 = vadd.f32 %v1879, %v2011
      %v2013 = vpop.f32.mrf.mxu0
      %v2014 = vadd.f32 %v1881, %v2013
      %v2015 = vpop.f32.mrf.mxu0
      %v2016 = vadd.f32 %v1883, %v2015
      %2017 = vmatprep.mubr.bf16.mxu0 %v745
      %2018 = vmatmul.mubr.bf16.gmra.mxu0 %v744
      %v2019 = vpop.f32.mrf.mxu0
      %v2020 = vadd.f32 %v1887, %v2019
      %v2021 = vpop.f32.mrf.mxu0
      %v2022 = vadd.f32 %v1889, %v2021
      %v2023 = vpop.f32.mrf.mxu0
      %v2024 = vadd.f32 %v1891, %v2023
      %v2025 = vpop.f32.mrf.mxu0
      %v2026 = vadd.f32 %v1893, %v2025
      %2027 = vmatprep.mubr.bf16.mxu0 %v749
      %2028 = vmatmul.mubr.bf16.gmra.mxu0 %v748
      %v2029 = vpop.f32.mrf.mxu0
      %v2030 = vadd.f32 %v1897, %v2029
      %v2031 = vpop.f32.mrf.mxu0
      %v2032 = vadd.f32 %v1899, %v2031
      %v2033 = vpop.f32.mrf.mxu0
      %v2034 = vadd.f32 %v1901, %v2033
      %v2035 = vpop.f32.mrf.mxu0
      %v2036 = vadd.f32 %v1903, %v2035
      %2037 = vmatprep.mubr.bf16.mxu0 %v753
      %2038 = vmatmul.mubr.bf16.gmra.mxu0 %v752
      %v2039 = vpop.f32.mrf.mxu0
      %v2040 = vadd.f32 %v1907, %v2039
      %v2041 = vpop.f32.mrf.mxu0
      %v2042 = vadd.f32 %v1909, %v2041
      %v2043 = vpop.f32.mrf.mxu0
      %v2044 = vadd.f32 %v1911, %v2043
      %v2045 = vpop.f32.mrf.mxu0
      %v2046 = vadd.f32 %v1913, %v2045
      %2047 = vmatprep.mubr.bf16.mxu0 %v757
      %2048 = vmatmul.mubr.bf16.gmra.mxu0 %v756
      %v2049 = vpop.f32.mrf.mxu0
      %v2050 = vadd.f32 %v1917, %v2049
      %v2051 = vpop.f32.mrf.mxu0
      %v2052 = vadd.f32 %v1919, %v2051
      %v2053 = vpop.f32.mrf.mxu0
      %v2054 = vadd.f32 %v1921, %v2053
      %v2055 = vpop.f32.mrf.mxu0
      %v2056 = vadd.f32 %v1923, %v2055
      %2057 = vdwg.mxu0
      %v2058 = vmul.f32 %v1694, %v1694
      %v2059 = vmul.f32 %v1696, %v1696
      %v2060 = vmul.f32 %v1698, %v1698
      %v2061 = vmul.f32 %v1700, %v1700
      %v2062 = vmul.f32 %v1704, %v1704
      %v2063 = vmul.f32 %v1706, %v1706
      %v2064 = vmul.f32 %v1708, %v1708
      %v2065 = vmul.f32 %v1710, %v1710
      %v2066 = vmul.f32 %v1714, %v1714
      %v2067 = vmul.f32 %v1716, %v1716
      %v2068 = vmul.f32 %v1718, %v1718
      %v2069 = vmul.f32 %v1720, %v1720
      %v2070 = vmul.f32 %v1724, %v1724
      %v2071 = vmul.f32 %v1726, %v1726
      %v2072 = vmul.f32 %v1728, %v1728
      %v2073 = vmul.f32 %v1730, %v1730
      %v2074 = vmul.f32 %v1734, %v1734
      %v2075 = vmul.f32 %v1736, %v1736
      %v2076 = vmul.f32 %v1738, %v1738
      %v2077 = vmul.f32 %v1740, %v1740
      %v2078 = vmul.f32 %v1744, %v1744
      %v2079 = vmul.f32 %v1746, %v1746
      %v2080 = vmul.f32 %v1748, %v1748
      %v2081 = vmul.f32 %v1750, %v1750
      %v2082 = vmul.f32 %v1754, %v1754
      %v2083 = vmul.f32 %v1756, %v1756
      %v2084 = vmul.f32 %v1758, %v1758
      %v2085 = vmul.f32 %v1760, %v1760
      %v2086 = vmul.f32 %v1764, %v1764
      %v2087 = vmul.f32 %v1766, %v1766
      %v2088 = vmul.f32 %v1768, %v1768
      %v2089 = vmul.f32 %v1770, %v1770
      %v2090 = vmul.f32 %v1774, %v1774
      %v2091 = vmul.f32 %v1776, %v1776
      %v2092 = vmul.f32 %v1778, %v1778
      %v2093 = vmul.f32 %v1780, %v1780
      %v2094 = vmul.f32 %v1784, %v1784
      %v2095 = vmul.f32 %v1786, %v1786
      %v2096 = vmul.f32 %v1788, %v1788
      %v2097 = vmul.f32 %v1790, %v1790
      %v2098 = vmul.f32 %v1960, %v1960
      %v2099 = vmul.f32 %v1962, %v1962
      %v2100 = vmul.f32 %v1964, %v1964
      %v2101 = vmul.f32 %v1966, %v1966
      %v2102 = vmul.f32 %v1970, %v1970
      %v2103 = vmul.f32 %v1972, %v1972
      %v2104 = vmul.f32 %v1974, %v1974
      %v2105 = vmul.f32 %v1976, %v1976
      %v2106 = vmul.f32 %v1980, %v1980
      %v2107 = vmul.f32 %v1982, %v1982
      %v2108 = vmul.f32 %v1984, %v1984
      %v2109 = vmul.f32 %v1986, %v1986
      %v2110 = vmul.f32 %v1990, %v1990
      %v2111 = vmul.f32 %v1992, %v1992
      %v2112 = vmul.f32 %v1994, %v1994
      %v2113 = vmul.f32 %v1996, %v1996
      %v2114 = vmul.f32 %v2000, %v2000
      %v2115 = vmul.f32 %v2002, %v2002
      %v2116 = vmul.f32 %v2004, %v2004
      %v2117 = vmul.f32 %v2006, %v2006
      %v2118 = vmul.f32 %v2010, %v2010
      %v2119 = vmul.f32 %v2012, %v2012
      %v2120 = vmul.f32 %v2014, %v2014
      %v2121 = vmul.f32 %v2016, %v2016
      %v2122 = vmul.f32 %v2020, %v2020
      %v2123 = vmul.f32 %v2022, %v2022
      %v2124 = vmul.f32 %v2024, %v2024
      %v2125 = vmul.f32 %v2026, %v2026
      %v2126 = vmul.f32 %v2030, %v2030
      %v2127 = vmul.f32 %v2032, %v2032
      %v2128 = vmul.f32 %v2034, %v2034
      %v2129 = vmul.f32 %v2036, %v2036
      %v2130 = vmul.f32 %v2040, %v2040
      %v2131 = vmul.f32 %v2042, %v2042
      %v2132 = vmul.f32 %v2044, %v2044
      %v2133 = vmul.f32 %v2046, %v2046
      %v2134 = vmul.f32 %v2050, %v2050
      %v2135 = vmul.f32 %v2052, %v2052
      %v2136 = vmul.f32 %v2054, %v2054
      %v2137 = vmul.f32 %v2056, %v2056
      %v2138 = vadd.f32 %v2058, %v2098
      %v2139 = vadd.f32 %v2059, %v2099
      %v2140 = vadd.f32 %v2060, %v2100
      %v2141 = vadd.f32 %v2061, %v2101
      %v2142 = vadd.f32 %v2062, %v2102
      %v2143 = vadd.f32 %v2063, %v2103
      %v2144 = vadd.f32 %v2064, %v2104
      %v2145 = vadd.f32 %v2065, %v2105
      %v2146 = vadd.f32 %v2066, %v2106
      %v2147 = vadd.f32 %v2067, %v2107
      %v2148 = vadd.f32 %v2068, %v2108
      %v2149 = vadd.f32 %v2069, %v2109
      %v2150 = vadd.f32 %v2070, %v2110
      %v2151 = vadd.f32 %v2071, %v2111
      %v2152 = vadd.f32 %v2072, %v2112
      %v2153 = vadd.f32 %v2073, %v2113
      %v2154 = vadd.f32 %v2074, %v2114
      %v2155 = vadd.f32 %v2075, %v2115
      %v2156 = vadd.f32 %v2076, %v2116
      %v2157 = vadd.f32 %v2077, %v2117
      %v2158 = vadd.f32 %v2078, %v2118
      %v2159 = vadd.f32 %v2079, %v2119
      %v2160 = vadd.f32 %v2080, %v2120
      %v2161 = vadd.f32 %v2081, %v2121
      %v2162 = vadd.f32 %v2082, %v2122
      %v2163 = vadd.f32 %v2083, %v2123
      %v2164 = vadd.f32 %v2084, %v2124
      %v2165 = vadd.f32 %v2085, %v2125
      %v2166 = vadd.f32 %v2086, %v2126
      %v2167 = vadd.f32 %v2087, %v2127
      %v2168 = vadd.f32 %v2088, %v2128
      %v2169 = vadd.f32 %v2089, %v2129
      %v2170 = vadd.f32 %v2090, %v2130
      %v2171 = vadd.f32 %v2091, %v2131
      %v2172 = vadd.f32 %v2092, %v2132
      %v2173 = vadd.f32 %v2093, %v2133
      %v2174 = vadd.f32 %v2094, %v2134
      %v2175 = vadd.f32 %v2095, %v2135
      %v2176 = vadd.f32 %v2096, %v2136
      %v2177 = vadd.f32 %v2097, %v2137
      %v2178 = vld [vmem:[%s2] sm:$0xff]
      %v2179 = vld [vmem:[%s2 + $0x8] sm:$0xff]
      %v2180 = vld [vmem:[%s2 + $0x10] sm:$0xff]
      %v2181 = vld [vmem:[%s2 + $0x18] sm:$0xff]
      %v2182 = vld [vmem:[%s2 + $0x20] sm:$0xff]
      %v2183 = vld [vmem:[%s2 + $0x28] sm:$0xff]
      %v2184 = vld [vmem:[%s2 + $0x30] sm:$0xff]
      %v2185 = vld [vmem:[%s2 + $0x38] sm:$0xff]
      %v2186 = vld [vmem:[%s2 + $0x40] sm:$0xff]
      %v2187 = vld [vmem:[%s2 + $0x48] sm:$0xff]
      %v2188 = vld [vmem:[%s2 + $0x50] sm:$0xff]
      %v2189 = vld [vmem:[%s2 + $0x58] sm:$0xff]
      %v2190 = vld [vmem:[%s2 + $0x60] sm:$0xff]
      %v2191 = vld [vmem:[%s2 + $0x68] sm:$0xff]
      %v2192 = vld [vmem:[%s2 + $0x70] sm:$0xff]
      %v2193 = vld [vmem:[%s2 + $0x78] sm:$0xff]
      %v2194 = vld [vmem:[%s2 + $0x80] sm:$0xff]
      %v2195 = vld [vmem:[%s2 + $0x88] sm:$0xff]
      %v2196 = vld [vmem:[%s2 + $0x90] sm:$0xff]
      %v2197 = vld [vmem:[%s2 + $0x98] sm:$0xff]
      %v2198 = vld [vmem:[%s2 + $0xa0] sm:$0xff]
      %v2199 = vld [vmem:[%s2 + $0xa8] sm:$0xff]
      %v2200 = vld [vmem:[%s2 + $0xb0] sm:$0xff]
      %v2201 = vld [vmem:[%s2 + $0xb8] sm:$0xff]
      %v2202 = vld [vmem:[%s2 + $0xc0] sm:$0xff]
      %v2203 = vld [vmem:[%s2 + $0xc8] sm:$0xff]
      %v2204 = vld [vmem:[%s2 + $0xd0] sm:$0xff]
      %v2205 = vld [vmem:[%s2 + $0xd8] sm:$0xff]
      %v2206 = vld [vmem:[%s2 + $0xe0] sm:$0xff]
      %v2207 = vld [vmem:[%s2 + $0xe8] sm:$0xff]
      %v2208 = vld [vmem:[%s2 + $0xf0] sm:$0xff]
      %v2209 = vld [vmem:[%s2 + $0xf8] sm:$0xff]
      %2210 = vmatprep.subr.mxu0 0.0
      %2211 = vmatpush1.msra.mxu0 %v2193
      %2212 = vmatprep.subr.mxu0 0.0
      %2213 = vmatpush1.msra.mxu0 %v2192
      %2214 = vmatprep.subr.mxu0 0.0
      %2215 = vmatpush1.msra.mxu0 %v2191
      %2216 = vmatprep.subr.mxu0 0.0
      %2217 = vmatpush1.msra.mxu0 %v2190
      %2218 = vmatprep.subr.mxu0 0.0
      %2219 = vmatpush1.msra.mxu0 %v2189
      %2220 = vmatprep.subr.mxu0 0.0
      %2221 = vmatpush1.msra.mxu0 %v2188
      %2222 = vmatprep.subr.mxu0 0.0
      %2223 = vmatpush1.msra.mxu0 %v2187
      %2224 = vmatprep.subr.mxu0 0.0
      %2225 = vmatpush1.msra.mxu0 %v2186
      %2226 = vmatprep.subr.mxu0 0.0
      %2227 = vmatpush1.msra.mxu0 %v2185
      %2228 = vmatprep.subr.mxu0 0.0
      %2229 = vmatpush1.msra.mxu0 %v2184
      %2230 = vmatprep.subr.mxu0 0.0
      %2231 = vmatpush1.msra.mxu0 %v2183
      %2232 = vmatprep.subr.mxu0 0.0
      %2233 = vmatpush1.msra.mxu0 %v2182
      %2234 = vmatprep.subr.mxu0 0.0
      %2235 = vmatpush1.msra.mxu0 %v2181
      %2236 = vmatprep.subr.mxu0 0.0
      %2237 = vmatpush1.msra.mxu0 %v2180
      %2238 = vmatprep.subr.mxu0 0.0
      %2239 = vmatpush1.msra.mxu0 %v2179
      %2240 = vmatprep.subr.mxu0 0.0
      %2241 = vmatpush1.msra.mxu0 %v2178
      %2242 = vmatprep.subr.mxu0 0.0
      %2243 = vmatpush2.msra.mxu0 %v2209
      %2244 = vmatprep.subr.mxu0 0.0
      %2245 = vmatpush2.msra.mxu0 %v2208
      %2246 = vmatprep.subr.mxu0 0.0
      %2247 = vmatpush2.msra.mxu0 %v2207
      %2248 = vmatprep.subr.mxu0 0.0
      %2249 = vmatpush2.msra.mxu0 %v2206
      %2250 = vmatprep.subr.mxu0 0.0
      %2251 = vmatpush2.msra.mxu0 %v2205
      %2252 = vmatprep.subr.mxu0 0.0
      %2253 = vmatpush2.msra.mxu0 %v2204
      %2254 = vmatprep.subr.mxu0 0.0
      %2255 = vmatpush2.msra.mxu0 %v2203
      %2256 = vmatprep.subr.mxu0 0.0
      %2257 = vmatpush2.msra.mxu0 %v2202
      %2258 = vmatprep.subr.mxu0 0.0
      %2259 = vmatpush2.msra.mxu0 %v2201
      %2260 = vmatprep.subr.mxu0 0.0
      %2261 = vmatpush2.msra.mxu0 %v2200
      %2262 = vmatprep.subr.mxu0 0.0
      %2263 = vmatpush2.msra.mxu0 %v2199
      %2264 = vmatprep.subr.mxu0 0.0
      %2265 = vmatpush2.msra.mxu0 %v2198
      %2266 = vmatprep.subr.mxu0 0.0
      %2267 = vmatpush2.msra.mxu0 %v2197
      %2268 = vmatprep.subr.mxu0 0.0
      %2269 = vmatpush2.msra.mxu0 %v2196
      %2270 = vmatprep.subr.mxu0 0.0
      %2271 = vmatpush2.msra.mxu0 %v2195
      %2272 = vmatprep.subr.mxu0 0.0
      %2273 = vmatpush2.msra.mxu0 %v2194
      %2274 = vmatprep.mubr.f32.mxu0 %v2139
      %2275 = vmatmul.mubr.f32.gmra.mxu0 %v2138
      %v2276 = vpop.f32.mrf.mxu0
      %v2277 = vadd.f32 0.0, %v2276
      %v2278 = vpop.f32.mrf.mxu0
      %2279 = vmatprep.mubr.f32.mxu0 %v2141
      %2280 = vmatmul.mubr.f32.gmra.mxu0 %v2140
      %v2281 = vpop.f32.mrf.mxu0
      %v2282 = vadd.f32 0.0, %v2281
      %v2283 = vpop.f32.mrf.mxu0
      %2284 = vmatprep.mubr.f32.mxu0 %v2143
      %2285 = vmatmul.mubr.f32.gmra.mxu0 %v2142
      %v2286 = vpop.f32.mrf.mxu0
      %v2287 = vadd.f32 0.0, %v2286
      %v2288 = vpop.f32.mrf.mxu0
      %2289 = vmatprep.mubr.f32.mxu0 %v2145
      %2290 = vmatmul.mubr.f32.gmra.mxu0 %v2144
      %v2291 = vpop.f32.mrf.mxu0
      %v2292 = vadd.f32 0.0, %v2291
      %v2293 = vpop.f32.mrf.mxu0
      %2294 = vmatprep.mubr.f32.mxu0 %v2147
      %2295 = vmatmul.mubr.f32.gmra.mxu0 %v2146
      %v2296 = vpop.f32.mrf.mxu0
      %v2297 = vadd.f32 0.0, %v2296
      %v2298 = vpop.f32.mrf.mxu0
      %2299 = vmatprep.mubr.f32.mxu0 %v2149
      %2300 = vmatmul.mubr.f32.gmra.mxu0 %v2148
      %v2301 = vpop.f32.mrf.mxu0
      %v2302 = vadd.f32 0.0, %v2301
      %v2303 = vpop.f32.mrf.mxu0
      %2304 = vmatprep.mubr.f32.mxu0 %v2151
      %2305 = vmatmul.mubr.f32.gmra.mxu0 %v2150
      %v2306 = vpop.f32.mrf.mxu0
      %v2307 = vadd.f32 0.0, %v2306
      %v2308 = vpop.f32.mrf.mxu0
      %2309 = vmatprep.mubr.f32.mxu0 %v2153
      %2310 = vmatmul.mubr.f32.gmra.mxu0 %v2152
      %v2311 = vpop.f32.mrf.mxu0
      %v2312 = vadd.f32 0.0, %v2311
      %v2313 = vpop.f32.mrf.mxu0
      %2314 = vmatprep.mubr.f32.mxu0 %v2155
      %2315 = vmatmul.mubr.f32.gmra.mxu0 %v2154
      %v2316 = vpop.f32.mrf.mxu0
      %v2317 = vadd.f32 0.0, %v2316
      %v2318 = vpop.f32.mrf.mxu0
      %2319 = vmatprep.mubr.f32.mxu0 %v2157
      %2320 = vmatmul.mubr.f32.gmra.mxu0 %v2156
      %v2321 = vpop.f32.mrf.mxu0
      %v2322 = vadd.f32 0.0, %v2321
      %v2323 = vpop.f32.mrf.mxu0
      %2324 = vmatprep.mubr.f32.mxu0 %v2159
      %2325 = vmatmul.mubr.f32.gmra.mxu0 %v2158
      %v2326 = vpop.f32.mrf.mxu0
      %v2327 = vadd.f32 0.0, %v2326
      %v2328 = vpop.f32.mrf.mxu0
      %2329 = vmatprep.mubr.f32.mxu0 %v2161
      %2330 = vmatmul.mubr.f32.gmra.mxu0 %v2160
      %v2331 = vpop.f32.mrf.mxu0
      %v2332 = vadd.f32 0.0, %v2331
      %v2333 = vpop.f32.mrf.mxu0
      %2334 = vmatprep.mubr.f32.mxu0 %v2163
      %2335 = vmatmul.mubr.f32.gmra.mxu0 %v2162
      %v2336 = vpop.f32.mrf.mxu0
      %v2337 = vadd.f32 0.0, %v2336
      %v2338 = vpop.f32.mrf.mxu0
      %2339 = vmatprep.mubr.f32.mxu0 %v2165
      %2340 = vmatmul.mubr.f32.gmra.mxu0 %v2164
      %v2341 = vpop.f32.mrf.mxu0
      %v2342 = vadd.f32 0.0, %v2341
      %v2343 = vpop.f32.mrf.mxu0
      %2344 = vmatprep.mubr.f32.mxu0 %v2167
      %2345 = vmatmul.mubr.f32.gmra.mxu0 %v2166
      %v2346 = vpop.f32.mrf.mxu0
      %v2347 = vadd.f32 0.0, %v2346
      %v2348 = vpop.f32.mrf.mxu0
      %2349 = vmatprep.mubr.f32.mxu0 %v2169
      %2350 = vmatmul.mubr.f32.gmra.mxu0 %v2168
      %v2351 = vpop.f32.mrf.mxu0
      %v2352 = vadd.f32 0.0, %v2351
      %v2353 = vpop.f32.mrf.mxu0
      %2354 = vmatprep.mubr.f32.mxu0 %v2171
      %2355 = vmatmul.mubr.f32.gmra.mxu0 %v2170
      %v2356 = vpop.f32.mrf.mxu0
      %v2357 = vadd.f32 0.0, %v2356
      %v2358 = vpop.f32.mrf.mxu0
      %2359 = vmatprep.mubr.f32.mxu0 %v2173
      %2360 = vmatmul.mubr.f32.gmra.mxu0 %v2172
      %v2361 = vpop.f32.mrf.mxu0
      %v2362 = vadd.f32 0.0, %v2361
      %v2363 = vpop.f32.mrf.mxu0
      %2364 = vmatprep.mubr.f32.mxu0 %v2175
      %2365 = vmatmul.mubr.f32.gmra.mxu0 %v2174
      %v2366 = vpop.f32.mrf.mxu0
      %v2367 = vadd.f32 0.0, %v2366
      %v2368 = vpop.f32.mrf.mxu0
      %2369 = vmatprep.mubr.f32.mxu0 %v2177
      %2370 = vmatmul.mubr.f32.gmra.mxu0 %v2176
      %v2371 = vpop.f32.mrf.mxu0
      %v2372 = vadd.f32 0.0, %v2371
      %v2373 = vpop.f32.mrf.mxu0
      %2374 = vdwg.mxu0
      %v2375 = vmax.f32 %v2277, 1e-10
      %v2376 = vmax.f32 %v2282, 1e-10
      %v2377 = vmax.f32 %v2287, 1e-10
      %v2378 = vmax.f32 %v2292, 1e-10
      %v2379 = vmax.f32 %v2297, 1e-10
      %v2380 = vmax.f32 %v2302, 1e-10
      %v2381 = vmax.f32 %v2307, 1e-10
      %v2382 = vmax.f32 %v2312, 1e-10
      %v2383 = vmax.f32 %v2317, 1e-10
      %v2384 = vmax.f32 %v2322, 1e-10
      %v2385 = vmax.f32 %v2327, 1e-10
      %v2386 = vmax.f32 %v2332, 1e-10
      %v2387 = vmax.f32 %v2337, 1e-10
      %v2388 = vmax.f32 %v2342, 1e-10
      %v2389 = vmax.f32 %v2347, 1e-10
      %v2390 = vmax.f32 %v2352, 1e-10
      %v2391 = vmax.f32 %v2357, 1e-10
      %v2392 = vmax.f32 %v2362, 1e-10
      %v2393 = vmax.f32 %v2367, 1e-10
      %v2394 = vmax.f32 %v2372, 1e-10
      %v2395 = vlog2.pop %v2375
      %v2396 = vmul.f32 %v2395, 0.6931472
      %v2397 = vlog2.pop %v2376
      %v2398 = vmul.f32 %v2397, 0.6931472
      %v2399 = vlog2.pop %v2377
      %v2400 = vmul.f32 %v2399, 0.6931472
      %v2401 = vlog2.pop %v2378
      %v2402 = vmul.f32 %v2401, 0.6931472
      %v2403 = vlog2.pop %v2379
      %v2404 = vmul.f32 %v2403, 0.6931472
      %v2405 = vlog2.pop %v2380
      %v2406 = vmul.f32 %v2405, 0.6931472
      %v2407 = vlog2.pop %v2381
      %v2408 = vmul.f32 %v2407, 0.6931472
      %v2409 = vlog2.pop %v2382
      %v2410 = vmul.f32 %v2409, 0.6931472
      %v2411 = vlog2.pop %v2383
      %v2412 = vmul.f32 %v2411, 0.6931472
      %v2413 = vlog2.pop %v2384
      %v2414 = vmul.f32 %v2413, 0.6931472
      %v2415 = vlog2.pop %v2385
      %v2416 = vmul.f32 %v2415, 0.6931472
      %v2417 = vlog2.pop %v2386
      %v2418 = vmul.f32 %v2417, 0.6931472
      %v2419 = vlog2.pop %v2387
      %v2420 = vmul.f32 %v2419, 0.6931472
      %v2421 = vlog2.pop %v2388
      %v2422 = vmul.f32 %v2421, 0.6931472
      %v2423 = vlog2.pop %v2389
      %v2424 = vmul.f32 %v2423, 0.6931472
      %v2425 = vlog2.pop %v2390
      %v2426 = vmul.f32 %v2425, 0.6931472
      %v2427 = vlog2.pop %v2391
      %v2428 = vmul.f32 %v2427, 0.6931472
      %v2429 = vlog2.pop %v2392
      %v2430 = vmul.f32 %v2429, 0.6931472
      %v2431 = vlog2.pop %v2393
      %v2432 = vmul.f32 %v2431, 0.6931472
      %v2433 = vlog2.pop %v2394
      %v2434 = vmul.f32 %v2433, 0.6931472
      %v2435 = vmul.f32 %v2396, 0.4342945
      %v2436 = vmul.f32 %v2398, 0.4342945
      %v2437 = vmul.f32 %v2400, 0.4342945
      %v2438 = vmul.f32 %v2402, 0.4342945
      %v2439 = vmul.f32 %v2404, 0.4342945
      %v2440 = vmul.f32 %v2406, 0.4342945
      %v2441 = vmul.f32 %v2408, 0.4342945
      %v2442 = vmul.f32 %v2410, 0.4342945
      %v2443 = vmul.f32 %v2412, 0.4342945
      %v2444 = vmul.f32 %v2414, 0.4342945
      %v2445 = vmul.f32 %v2416, 0.4342945
      %v2446 = vmul.f32 %v2418, 0.4342945
      %v2447 = vmul.f32 %v2420, 0.4342945
      %v2448 = vmul.f32 %v2422, 0.4342945
      %v2449 = vmul.f32 %v2424, 0.4342945
      %v2450 = vmul.f32 %v2426, 0.4342945
      %v2451 = vmul.f32 %v2428, 0.4342945
      %v2452 = vmul.f32 %v2430, 0.4342945
      %v2453 = vmul.f32 %v2432, 0.4342945
      %v2454 = vmul.f32 %v2434, 0.4342945
      %v2455 = vmul.f32 %v2435, 10.0
      %v2456 = vmul.f32 %v2436, 10.0
      %v2457 = vmul.f32 %v2437, 10.0
      %v2458 = vmul.f32 %v2438, 10.0
      %v2459 = vmul.f32 %v2439, 10.0
      %v2460 = vmul.f32 %v2440, 10.0
      %v2461 = vmul.f32 %v2441, 10.0
      %v2462 = vmul.f32 %v2442, 10.0
      %v2463 = vmul.f32 %v2443, 10.0
      %v2464 = vmul.f32 %v2444, 10.0
      %v2465 = vmul.f32 %v2445, 10.0
      %v2466 = vmul.f32 %v2446, 10.0
      %v2467 = vmul.f32 %v2447, 10.0
      %v2468 = vmul.f32 %v2448, 10.0
      %v2469 = vmul.f32 %v2449, 10.0
      %v2470 = vmul.f32 %v2450, 10.0
      %v2471 = vmul.f32 %v2451, 10.0
      %v2472 = vmul.f32 %v2452, 10.0
      %v2473 = vmul.f32 %v2453, 10.0
      %v2474 = vmul.f32 %v2454, 10.0
      %2475 = vmax.xlane.f32.xlu0 %v2455
      %v2476 = vpop.xlane.xlu0 %2475
      %2477 = vmax.xlane.f32.xlu0 %v2456
      %v2478 = vpop.xlane.xlu0 %2477
      %2479 = vmax.xlane.f32.xlu0 %v2457
      %v2480 = vpop.xlane.xlu0 %2479
      %2481 = vmax.xlane.f32.xlu0 %v2458
      %v2482 = vpop.xlane.xlu0 %2481
      %2483 = vmax.xlane.f32.xlu0 %v2459
      %v2484 = vpop.xlane.xlu0 %2483
      %2485 = vmax.xlane.f32.xlu0 %v2460
      %v2486 = vpop.xlane.xlu0 %2485
      %2487 = vmax.xlane.f32.xlu0 %v2461
      %v2488 = vpop.xlane.xlu0 %2487
      %2489 = vmax.xlane.f32.xlu0 %v2462
      %v2490 = vpop.xlane.xlu0 %2489
      %2491 = vmax.xlane.f32.xlu0 %v2463
      %v2492 = vpop.xlane.xlu0 %2491
      %2493 = vmax.xlane.f32.xlu0 %v2464
      %v2494 = vpop.xlane.xlu0 %2493
      %2495 = vmax.xlane.f32.xlu0 %v2465
      %v2496 = vpop.xlane.xlu0 %2495
      %2497 = vmax.xlane.f32.xlu0 %v2466
      %v2498 = vpop.xlane.xlu0 %2497
      %2499 = vmax.xlane.f32.xlu0 %v2467
      %v2500 = vpop.xlane.xlu0 %2499
      %2501 = vmax.xlane.f32.xlu0 %v2468
      %v2502 = vpop.xlane.xlu0 %2501
      %2503 = vmax.xlane.f32.xlu0 %v2469
      %v2504 = vpop.xlane.xlu0 %2503
      %2505 = vmax.xlane.f32.xlu0 %v2470
      %v2506 = vpop.xlane.xlu0 %2505
      %2507 = vmax.xlane.f32.xlu0 %v2471
      %v2508 = vpop.xlane.xlu0 %2507
      %2509 = vmax.xlane.f32.xlu0 %v2472
      %v2510 = vpop.xlane.xlu0 %2509
      %2511 = vmax.xlane.f32.xlu0 %v2473
      %v2512 = vpop.xlane.xlu0 %2511
      %2513 = vmax.xlane.f32.xlu0 %v2474
      %v2514 = vpop.xlane.xlu0 %2513
      %v2515 = vmax.f32 %v2476, %v2478
      %v2516 = vmax.f32 %v2515, %v2480
      %v2517 = vmax.f32 %v2516, %v2482
      %v2518 = vrot.slane %v2517, 4
      %v2519 = vmax.f32 %v2517, %v2518
      %v2520 = vrot.slane %v2519, 2
      %v2521 = vmax.f32 %v2519, %v2520
      %v2522 = vrot.slane %v2521, 1
      %v2523 = vmax.f32 %v2521, %v2522
      %v2524 = vmax.f32 %v2484, %v2486
      %v2525 = vmax.f32 %v2524, %v2488
      %v2526 = vmax.f32 %v2525, %v2490
      %v2527 = vrot.slane %v2526, 4
      %v2528 = vmax.f32 %v2526, %v2527
      %v2529 = vrot.slane %v2528, 2
      %v2530 = vmax.f32 %v2528, %v2529
      %v2531 = vrot.slane %v2530, 1
      %v2532 = vmax.f32 %v2530, %v2531
      %v2533 = vmax.f32 %v2492, %v2494
      %v2534 = vmax.f32 %v2533, %v2496
      %v2535 = vmax.f32 %v2534, %v2498
      %v2536 = vrot.slane %v2535, 4
      %v2537 = vmax.f32 %v2535, %v2536
      %v2538 = vrot.slane %v2537, 2
      %v2539 = vmax.f32 %v2537, %v2538
      %v2540 = vrot.slane %v2539, 1
      %v2541 = vmax.f32 %v2539, %v2540
      %v2542 = vmax.f32 %v2500, %v2502
      %v2543 = vmax.f32 %v2542, %v2504
      %v2544 = vmax.f32 %v2543, %v2506
      %v2545 = vrot.slane %v2544, 4
      %v2546 = vmax.f32 %v2544, %v2545
      %v2547 = vrot.slane %v2546, 2
      %v2548 = vmax.f32 %v2546, %v2547
      %v2549 = vrot.slane %v2548, 1
      %v2550 = vmax.f32 %v2548, %v2549
      %v2551 = vmax.f32 %v2508, %v2510
      %v2552 = vmax.f32 %v2551, %v2512
      %v2553 = vmax.f32 %v2552, %v2514
      %v2554 = vrot.slane %v2553, 4
      %v2555 = vmax.f32 %v2553, %v2554
      %v2556 = vrot.slane %v2555, 2
      %v2557 = vmax.f32 %v2555, %v2556
      %v2558 = vrot.slane %v2557, 1
      %v2559 = vmax.f32 %v2557, %v2558
      %v2560 = vsub.f32 %v2523, 80.0
      %v2561 = vsub.f32 %v2532, 80.0
      %v2562 = vsub.f32 %v2541, 80.0
      %v2563 = vsub.f32 %v2550, 80.0
      %v2564 = vsub.f32 %v2559, 80.0
      %v2565 = vmax.f32 %v2455, %v2560
      %v2566 = vmax.f32 %v2456, %v2560
      %v2567 = vmax.f32 %v2457, %v2560
      %v2568 = vmax.f32 %v2458, %v2560
      %v2569 = vmax.f32 %v2459, %v2561
      %v2570 = vmax.f32 %v2460, %v2561
      %v2571 = vmax.f32 %v2461, %v2561
      %v2572 = vmax.f32 %v2462, %v2561
      %v2573 = vmax.f32 %v2463, %v2562
      %v2574 = vmax.f32 %v2464, %v2562
      %v2575 = vmax.f32 %v2465, %v2562
      %v2576 = vmax.f32 %v2466, %v2562
      %v2577 = vmax.f32 %v2467, %v2563
      %v2578 = vmax.f32 %v2468, %v2563
      %v2579 = vmax.f32 %v2469, %v2563
      %v2580 = vmax.f32 %v2470, %v2563
      %v2581 = vmax.f32 %v2471, %v2564
      %v2582 = vmax.f32 %v2472, %v2564
      %v2583 = vmax.f32 %v2473, %v2564
      %v2584 = vmax.f32 %v2474, %v2564
      %v2585 = vld [vmem:[%s3] sm:$0xff]
      %v2586 = vld [vmem:[%s3 + $0x8] sm:$0xff]
      %v2587 = vld [vmem:[%s3 + $0x10] sm:$0xff]
      %v2588 = vld [vmem:[%s3 + $0x18] sm:$0xff]
      %v2589 = vld [vmem:[%s3 + $0x20] sm:$0xff]
      %v2590 = vld [vmem:[%s3 + $0x28] sm:$0xff]
      %v2591 = vld [vmem:[%s3 + $0x30] sm:$0xff]
      %v2592 = vld [vmem:[%s3 + $0x38] sm:$0xff]
      %v2593 = vld [vmem:[%s3 + $0x40] sm:$0xff]
      %v2594 = vld [vmem:[%s3 + $0x48] sm:$0xff]
      %v2595 = vld [vmem:[%s3 + $0x50] sm:$0xff]
      %v2596 = vld [vmem:[%s3 + $0x58] sm:$0xff]
      %v2597 = vld [vmem:[%s3 + $0x60] sm:$0xff]
      %v2598 = vld [vmem:[%s3 + $0x68] sm:$0xff]
      %v2599 = vld [vmem:[%s3 + $0x70] sm:$0xff]
      %v2600 = vld [vmem:[%s3 + $0x78] sm:$0xff]
      %2601 = vmatprep.subr.mxu0 0.0
      %2602 = vmatpush1.msra.mxu0 %v2600
      %2603 = vmatprep.subr.mxu0 0.0
      %2604 = vmatpush1.msra.mxu0 %v2599
      %2605 = vmatprep.subr.mxu0 0.0
      %2606 = vmatpush1.msra.mxu0 %v2598
      %2607 = vmatprep.subr.mxu0 0.0
      %2608 = vmatpush1.msra.mxu0 %v2597
      %2609 = vmatprep.subr.mxu0 0.0
      %2610 = vmatpush1.msra.mxu0 %v2596
      %2611 = vmatprep.subr.mxu0 0.0
      %2612 = vmatpush1.msra.mxu0 %v2595
      %2613 = vmatprep.subr.mxu0 0.0
      %2614 = vmatpush1.msra.mxu0 %v2594
      %2615 = vmatprep.subr.mxu0 0.0
      %2616 = vmatpush1.msra.mxu0 %v2593
      %2617 = vmatprep.subr.mxu0 0.0
      %2618 = vmatpush1.msra.mxu0 %v2592
      %2619 = vmatprep.subr.mxu0 0.0
      %2620 = vmatpush1.msra.mxu0 %v2591
      %2621 = vmatprep.subr.mxu0 0.0
      %2622 = vmatpush1.msra.mxu0 %v2590
      %2623 = vmatprep.subr.mxu0 0.0
      %2624 = vmatpush1.msra.mxu0 %v2589
      %2625 = vmatprep.subr.mxu0 0.0
      %2626 = vmatpush1.msra.mxu0 %v2588
      %2627 = vmatprep.subr.mxu0 0.0
      %2628 = vmatpush1.msra.mxu0 %v2587
      %2629 = vmatprep.subr.mxu0 0.0
      %2630 = vmatpush1.msra.mxu0 %v2586
      %2631 = vmatprep.subr.mxu0 0.0
      %2632 = vmatpush1.msra.mxu0 %v2585
      %2633 = vmatprep.subr.mxu0 0.0
      %2634 = vmatpush2.msra.mxu0 0.0
      %2635 = vmatprep.subr.mxu0 0.0
      %2636 = vmatpush2.msra.mxu0 0.0
      %2637 = vmatprep.subr.mxu0 0.0
      %2638 = vmatpush2.msra.mxu0 0.0
      %2639 = vmatprep.subr.mxu0 0.0
      %2640 = vmatpush2.msra.mxu0 0.0
      %2641 = vmatprep.subr.mxu0 0.0
      %2642 = vmatpush2.msra.mxu0 0.0
      %2643 = vmatprep.subr.mxu0 0.0
      %2644 = vmatpush2.msra.mxu0 0.0
      %2645 = vmatprep.subr.mxu0 0.0
      %2646 = vmatpush2.msra.mxu0 0.0
      %2647 = vmatprep.subr.mxu0 0.0
      %2648 = vmatpush2.msra.mxu0 0.0
      %2649 = vmatprep.subr.mxu0 0.0
      %2650 = vmatpush2.msra.mxu0 0.0
      %2651 = vmatprep.subr.mxu0 0.0
      %2652 = vmatpush2.msra.mxu0 0.0
      %2653 = vmatprep.subr.mxu0 0.0
      %2654 = vmatpush2.msra.mxu0 0.0
      %2655 = vmatprep.subr.mxu0 0.0
      %2656 = vmatpush2.msra.mxu0 0.0
      %2657 = vmatprep.subr.mxu0 0.0
      %2658 = vmatpush2.msra.mxu0 0.0
      %2659 = vmatprep.subr.mxu0 0.0
      %2660 = vmatpush2.msra.mxu0 0.0
      %2661 = vmatprep.subr.mxu0 0.0
      %2662 = vmatpush2.msra.mxu0 0.0
      %2663 = vmatprep.subr.mxu0 0.0
      %2664 = vmatpush2.msra.mxu0 0.0
      %2665 = vmatprep.mubr.f32.mxu0 0.0
      %2666 = vmatmul.mubr.f32.gmra.mxu0 %v2565
      %v2667 = vpop.f32.mrf.mxu0
      %v2668 = vadd.f32 0.0, %v2667
      %v2669 = vpop.f32.mrf.mxu0
      %2670 = vmatprep.mubr.f32.mxu0 0.0
      %2671 = vmatmul.mubr.f32.gmra.mxu0 %v2566
      %v2672 = vpop.f32.mrf.mxu0
      %v2673 = vadd.f32 0.0, %v2672
      %v2674 = vpop.f32.mrf.mxu0
      %2675 = vmatprep.mubr.f32.mxu0 0.0
      %2676 = vmatmul.mubr.f32.gmra.mxu0 %v2567
      %v2677 = vpop.f32.mrf.mxu0
      %v2678 = vadd.f32 0.0, %v2677
      %v2679 = vpop.f32.mrf.mxu0
      %2680 = vmatprep.mubr.f32.mxu0 0.0
      %2681 = vmatmul.mubr.f32.gmra.mxu0 %v2568
      %v2682 = vpop.f32.mrf.mxu0
      %v2683 = vadd.f32 0.0, %v2682
      %v2684 = vpop.f32.mrf.mxu0
      %2685 = vmatprep.mubr.f32.mxu0 0.0
      %2686 = vmatmul.mubr.f32.gmra.mxu0 %v2569
      %v2687 = vpop.f32.mrf.mxu0
      %v2688 = vadd.f32 0.0, %v2687
      %v2689 = vpop.f32.mrf.mxu0
      %2690 = vmatprep.mubr.f32.mxu0 0.0
      %2691 = vmatmul.mubr.f32.gmra.mxu0 %v2570
      %v2692 = vpop.f32.mrf.mxu0
      %v2693 = vadd.f32 0.0, %v2692
      %v2694 = vpop.f32.mrf.mxu0
      %2695 = vmatprep.mubr.f32.mxu0 0.0
      %2696 = vmatmul.mubr.f32.gmra.mxu0 %v2571
      %v2697 = vpop.f32.mrf.mxu0
      %v2698 = vadd.f32 0.0, %v2697
      %v2699 = vpop.f32.mrf.mxu0
      %2700 = vmatprep.mubr.f32.mxu0 0.0
      %2701 = vmatmul.mubr.f32.gmra.mxu0 %v2572
      %v2702 = vpop.f32.mrf.mxu0
      %v2703 = vadd.f32 0.0, %v2702
      %v2704 = vpop.f32.mrf.mxu0
      %2705 = vmatprep.mubr.f32.mxu0 0.0
      %2706 = vmatmul.mubr.f32.gmra.mxu0 %v2573
      %v2707 = vpop.f32.mrf.mxu0
      %v2708 = vadd.f32 0.0, %v2707
      %v2709 = vpop.f32.mrf.mxu0
      %2710 = vmatprep.mubr.f32.mxu0 0.0
      %2711 = vmatmul.mubr.f32.gmra.mxu0 %v2574
      %v2712 = vpop.f32.mrf.mxu0
      %v2713 = vadd.f32 0.0, %v2712
      %v2714 = vpop.f32.mrf.mxu0
      %2715 = vmatprep.mubr.f32.mxu0 0.0
      %2716 = vmatmul.mubr.f32.gmra.mxu0 %v2575
      %v2717 = vpop.f32.mrf.mxu0
      %v2718 = vadd.f32 0.0, %v2717
      %v2719 = vpop.f32.mrf.mxu0
      %2720 = vmatprep.mubr.f32.mxu0 0.0
      %2721 = vmatmul.mubr.f32.gmra.mxu0 %v2576
      %v2722 = vpop.f32.mrf.mxu0
      %v2723 = vadd.f32 0.0, %v2722
      %v2724 = vpop.f32.mrf.mxu0
      %2725 = vmatprep.mubr.f32.mxu0 0.0
      %2726 = vmatmul.mubr.f32.gmra.mxu0 %v2577
      %v2727 = vpop.f32.mrf.mxu0
      %v2728 = vadd.f32 0.0, %v2727
      %v2729 = vpop.f32.mrf.mxu0
      %2730 = vmatprep.mubr.f32.mxu0 0.0
      %2731 = vmatmul.mubr.f32.gmra.mxu0 %v2578
      %v2732 = vpop.f32.mrf.mxu0
      %v2733 = vadd.f32 0.0, %v2732
      %v2734 = vpop.f32.mrf.mxu0
      %2735 = vmatprep.mubr.f32.mxu0 0.0
      %2736 = vmatmul.mubr.f32.gmra.mxu0 %v2579
      %v2737 = vpop.f32.mrf.mxu0
      %v2738 = vadd.f32 0.0, %v2737
      %v2739 = vpop.f32.mrf.mxu0
      %2740 = vmatprep.mubr.f32.mxu0 0.0
      %2741 = vmatmul.mubr.f32.gmra.mxu0 %v2580
      %v2742 = vpop.f32.mrf.mxu0
      %v2743 = vadd.f32 0.0, %v2742
      %v2744 = vpop.f32.mrf.mxu0
      %2745 = vmatprep.mubr.f32.mxu0 0.0
      %2746 = vmatmul.mubr.f32.gmra.mxu0 %v2581
      %v2747 = vpop.f32.mrf.mxu0
      %v2748 = vadd.f32 0.0, %v2747
      %v2749 = vpop.f32.mrf.mxu0
      %2750 = vmatprep.mubr.f32.mxu0 0.0
      %2751 = vmatmul.mubr.f32.gmra.mxu0 %v2582
      %v2752 = vpop.f32.mrf.mxu0
      %v2753 = vadd.f32 0.0, %v2752
      %v2754 = vpop.f32.mrf.mxu0
      %2755 = vmatprep.mubr.f32.mxu0 0.0
      %2756 = vmatmul.mubr.f32.gmra.mxu0 %v2583
      %v2757 = vpop.f32.mrf.mxu0
      %v2758 = vadd.f32 0.0, %v2757
      %v2759 = vpop.f32.mrf.mxu0
      %2760 = vmatprep.mubr.f32.mxu0 0.0
      %2761 = vmatmul.mubr.f32.gmra.mxu0 %v2584
      %v2762 = vpop.f32.mrf.mxu0
      %v2763 = vadd.f32 0.0, %v2762
      %v2764 = vpop.f32.mrf.mxu0
      %2765 = vdwg.mxu0
      %2766 = vxpose.xlu0.b32.start [1/16] %v2668, 128
      %2767 = vxpose.xlu0.b32.cont [2/16] %v2673, 128
      %2768 = vxpose.xlu0.b32.cont [3/16] 0.0, 128
      %2769 = vxpose.xlu0.b32.cont [4/16] 0.0, 128
      %2770 = vxpose.xlu0.b32.cont [5/16] 0.0, 128
      %2771 = vxpose.xlu0.b32.cont [6/16] 0.0, 128
      %2772 = vxpose.xlu0.b32.cont [7/16] 0.0, 128
      %2773 = vxpose.xlu0.b32.cont [8/16] 0.0, 128
      %2774 = vxpose.xlu0.b32.cont [9/16] 0.0, 128
      %2775 = vxpose.xlu0.b32.cont [10/16] 0.0, 128
      %2776 = vxpose.xlu0.b32.cont [11/16] 0.0, 128
      %2777 = vxpose.xlu0.b32.cont [12/16] 0.0, 128
      %2778 = vxpose.xlu0.b32.cont [13/16] 0.0, 128
      %2779 = vxpose.xlu0.b32.cont [14/16] 0.0, 128
      %2780 = vxpose.xlu0.b32.cont [15/16] 0.0, 128
      %2781 = vxpose.xlu0.b32.end [16/16] 0.0, 128
      %v2782 = vpop.trf.xlu0
      %v2783 = vpop.trf.xlu0
      %v2784 = vpop.trf.xlu0
      %v2785 = vpop.trf.xlu0
      %v2786 = vpop.trf.xlu0
      %v2787 = vpop.trf.xlu0
      %v2788 = vpop.trf.xlu0
      %v2789 = vpop.trf.xlu0
      %v2790 = vpop.trf.xlu0
      %v2791 = vpop.trf.xlu0
      %v2792 = vpop.trf.xlu0
      %v2793 = vpop.trf.xlu0
      %v2794 = vpop.trf.xlu0
      %v2795 = vpop.trf.xlu0
      %v2796 = vpop.trf.xlu0
      %v2797 = vpop.trf.xlu0
      %2798 = vxpose.xlu0.b32.start [1/16] %v2678, 128
      %2799 = vxpose.xlu0.b32.cont [2/16] %v2683, 128
      %2800 = vxpose.xlu0.b32.cont [3/16] 0.0, 128
      %2801 = vxpose.xlu0.b32.cont [4/16] 0.0, 128
      %2802 = vxpose.xlu0.b32.cont [5/16] 0.0, 128
      %2803 = vxpose.xlu0.b32.cont [6/16] 0.0, 128
      %2804 = vxpose.xlu0.b32.cont [7/16] 0.0, 128
      %2805 = vxpose.xlu0.b32.cont [8/16] 0.0, 128
      %2806 = vxpose.xlu0.b32.cont [9/16] 0.0, 128
      %2807 = vxpose.xlu0.b32.cont [10/16] 0.0, 128
      %2808 = vxpose.xlu0.b32.cont [11/16] 0.0, 128
      %2809 = vxpose.xlu0.b32.cont [12/16] 0.0, 128
      %2810 = vxpose.xlu0.b32.cont [13/16] 0.0, 128
      %2811 = vxpose.xlu0.b32.cont [14/16] 0.0, 128
      %2812 = vxpose.xlu0.b32.cont [15/16] 0.0, 128
      %2813 = vxpose.xlu0.b32.end [16/16] 0.0, 128
      %v2814 = vpop.trf.xlu0
      %v2815 = vpop.trf.xlu0
      %v2816 = vpop.trf.xlu0
      %v2817 = vpop.trf.xlu0
      %v2818 = vpop.trf.xlu0
      %v2819 = vpop.trf.xlu0
      %v2820 = vpop.trf.xlu0
      %v2821 = vpop.trf.xlu0
      %v2822 = vpop.trf.xlu0
      %v2823 = vpop.trf.xlu0
      %v2824 = vpop.trf.xlu0
      %v2825 = vpop.trf.xlu0
      %v2826 = vpop.trf.xlu0
      %v2827 = vpop.trf.xlu0
      %v2828 = vpop.trf.xlu0
      %v2829 = vpop.trf.xlu0
      %2830 = vxpose.xlu0.b32.start [1/16] %v2688, 128
      %2831 = vxpose.xlu0.b32.cont [2/16] %v2693, 128
      %2832 = vxpose.xlu0.b32.cont [3/16] 0.0, 128
      %2833 = vxpose.xlu0.b32.cont [4/16] 0.0, 128
      %2834 = vxpose.xlu0.b32.cont [5/16] 0.0, 128
      %2835 = vxpose.xlu0.b32.cont [6/16] 0.0, 128
      %2836 = vxpose.xlu0.b32.cont [7/16] 0.0, 128
      %2837 = vxpose.xlu0.b32.cont [8/16] 0.0, 128
      %2838 = vxpose.xlu0.b32.cont [9/16] 0.0, 128
      %2839 = vxpose.xlu0.b32.cont [10/16] 0.0, 128
      %2840 = vxpose.xlu0.b32.cont [11/16] 0.0, 128
      %2841 = vxpose.xlu0.b32.cont [12/16] 0.0, 128
      %2842 = vxpose.xlu0.b32.cont [13/16] 0.0, 128
      %2843 = vxpose.xlu0.b32.cont [14/16] 0.0, 128
      %2844 = vxpose.xlu0.b32.cont [15/16] 0.0, 128
      %2845 = vxpose.xlu0.b32.end [16/16] 0.0, 128
      %v2846 = vpop.trf.xlu0
      %v2847 = vpop.trf.xlu0
      %v2848 = vpop.trf.xlu0
      %v2849 = vpop.trf.xlu0
      %v2850 = vpop.trf.xlu0
      %v2851 = vpop.trf.xlu0
      %v2852 = vpop.trf.xlu0
      %v2853 = vpop.trf.xlu0
      %v2854 = vpop.trf.xlu0
      %v2855 = vpop.trf.xlu0
      %v2856 = vpop.trf.xlu0
      %v2857 = vpop.trf.xlu0
      %v2858 = vpop.trf.xlu0
      %v2859 = vpop.trf.xlu0
      %v2860 = vpop.trf.xlu0
      %v2861 = vpop.trf.xlu0
      %2862 = vxpose.xlu0.b32.start [1/16] %v2698, 128
      %2863 = vxpose.xlu0.b32.cont [2/16] %v2703, 128
      %2864 = vxpose.xlu0.b32.cont [3/16] 0.0, 128
      %2865 = vxpose.xlu0.b32.cont [4/16] 0.0, 128
      %2866 = vxpose.xlu0.b32.cont [5/16] 0.0, 128
      %2867 = vxpose.xlu0.b32.cont [6/16] 0.0, 128
      %2868 = vxpose.xlu0.b32.cont [7/16] 0.0, 128
      %2869 = vxpose.xlu0.b32.cont [8/16] 0.0, 128
      %2870 = vxpose.xlu0.b32.cont [9/16] 0.0, 128
      %2871 = vxpose.xlu0.b32.cont [10/16] 0.0, 128
      %2872 = vxpose.xlu0.b32.cont [11/16] 0.0, 128
      %2873 = vxpose.xlu0.b32.cont [12/16] 0.0, 128
      %2874 = vxpose.xlu0.b32.cont [13/16] 0.0, 128
      %2875 = vxpose.xlu0.b32.cont [14/16] 0.0, 128
      %2876 = vxpose.xlu0.b32.cont [15/16] 0.0, 128
      %2877 = vxpose.xlu0.b32.end [16/16] 0.0, 128
      %v2878 = vpop.trf.xlu0
      %v2879 = vpop.trf.xlu0
      %v2880 = vpop.trf.xlu0
      %v2881 = vpop.trf.xlu0
      %v2882 = vpop.trf.xlu0
      %v2883 = vpop.trf.xlu0
      %v2884 = vpop.trf.xlu0
      %v2885 = vpop.trf.xlu0
      %v2886 = vpop.trf.xlu0
      %v2887 = vpop.trf.xlu0
      %v2888 = vpop.trf.xlu0
      %v2889 = vpop.trf.xlu0
      %v2890 = vpop.trf.xlu0
      %v2891 = vpop.trf.xlu0
      %v2892 = vpop.trf.xlu0
      %v2893 = vpop.trf.xlu0
      %2894 = vxpose.xlu0.b32.start [1/16] %v2708, 128
      %2895 = vxpose.xlu0.b32.cont [2/16] %v2713, 128
      %2896 = vxpose.xlu0.b32.cont [3/16] 0.0, 128
      %2897 = vxpose.xlu0.b32.cont [4/16] 0.0, 128
      %2898 = vxpose.xlu0.b32.cont [5/16] 0.0, 128
      %2899 = vxpose.xlu0.b32.cont [6/16] 0.0, 128
      %2900 = vxpose.xlu0.b32.cont [7/16] 0.0, 128
      %2901 = vxpose.xlu0.b32.cont [8/16] 0.0, 128
      %2902 = vxpose.xlu0.b32.cont [9/16] 0.0, 128
      %2903 = vxpose.xlu0.b32.cont [10/16] 0.0, 128
      %2904 = vxpose.xlu0.b32.cont [11/16] 0.0, 128
      %2905 = vxpose.xlu0.b32.cont [12/16] 0.0, 128
      %2906 = vxpose.xlu0.b32.cont [13/16] 0.0, 128
      %2907 = vxpose.xlu0.b32.cont [14/16] 0.0, 128
      %2908 = vxpose.xlu0.b32.cont [15/16] 0.0, 128
      %2909 = vxpose.xlu0.b32.end [16/16] 0.0, 128
      %v2910 = vpop.trf.xlu0
      %v2911 = vpop.trf.xlu0
      %v2912 = vpop.trf.xlu0
      %v2913 = vpop.trf.xlu0
      %v2914 = vpop.trf.xlu0
      %v2915 = vpop.trf.xlu0
      %v2916 = vpop.trf.xlu0
      %v2917 = vpop.trf.xlu0
      %v2918 = vpop.trf.xlu0
      %v2919 = vpop.trf.xlu0
      %v2920 = vpop.trf.xlu0
      %v2921 = vpop.trf.xlu0
      %v2922 = vpop.trf.xlu0
      %v2923 = vpop.trf.xlu0
      %v2924 = vpop.trf.xlu0
      %v2925 = vpop.trf.xlu0
      %2926 = vxpose.xlu0.b32.start [1/16] %v2718, 128
      %2927 = vxpose.xlu0.b32.cont [2/16] %v2723, 128
      %2928 = vxpose.xlu0.b32.cont [3/16] 0.0, 128
      %2929 = vxpose.xlu0.b32.cont [4/16] 0.0, 128
      %2930 = vxpose.xlu0.b32.cont [5/16] 0.0, 128
      %2931 = vxpose.xlu0.b32.cont [6/16] 0.0, 128
      %2932 = vxpose.xlu0.b32.cont [7/16] 0.0, 128
      %2933 = vxpose.xlu0.b32.cont [8/16] 0.0, 128
      %2934 = vxpose.xlu0.b32.cont [9/16] 0.0, 128
      %2935 = vxpose.xlu0.b32.cont [10/16] 0.0, 128
      %2936 = vxpose.xlu0.b32.cont [11/16] 0.0, 128
      %2937 = vxpose.xlu0.b32.cont [12/16] 0.0, 128
      %2938 = vxpose.xlu0.b32.cont [13/16] 0.0, 128
      %2939 = vxpose.xlu0.b32.cont [14/16] 0.0, 128
      %2940 = vxpose.xlu0.b32.cont [15/16] 0.0, 128
      %2941 = vxpose.xlu0.b32.end [16/16] 0.0, 128
      %v2942 = vpop.trf.xlu0
      %v2943 = vpop.trf.xlu0
      %v2944 = vpop.trf.xlu0
      %v2945 = vpop.trf.xlu0
      %v2946 = vpop.trf.xlu0
      %v2947 = vpop.trf.xlu0
      %v2948 = vpop.trf.xlu0
      %v2949 = vpop.trf.xlu0
      %v2950 = vpop.trf.xlu0
      %v2951 = vpop.trf.xlu0
      %v2952 = vpop.trf.xlu0
      %v2953 = vpop.trf.xlu0
      %v2954 = vpop.trf.xlu0
      %v2955 = vpop.trf.xlu0
      %v2956 = vpop.trf.xlu0
      %v2957 = vpop.trf.xlu0
      %2958 = vxpose.xlu0.b32.start [1/16] %v2728, 128
      %2959 = vxpose.xlu0.b32.cont [2/16] %v2733, 128
      %2960 = vxpose.xlu0.b32.cont [3/16] 0.0, 128
      %2961 = vxpose.xlu0.b32.cont [4/16] 0.0, 128
      %2962 = vxpose.xlu0.b32.cont [5/16] 0.0, 128
      %2963 = vxpose.xlu0.b32.cont [6/16] 0.0, 128
      %2964 = vxpose.xlu0.b32.cont [7/16] 0.0, 128
      %2965 = vxpose.xlu0.b32.cont [8/16] 0.0, 128
      %2966 = vxpose.xlu0.b32.cont [9/16] 0.0, 128
      %2967 = vxpose.xlu0.b32.cont [10/16] 0.0, 128
      %2968 = vxpose.xlu0.b32.cont [11/16] 0.0, 128
      %2969 = vxpose.xlu0.b32.cont [12/16] 0.0, 128
      %2970 = vxpose.xlu0.b32.cont [13/16] 0.0, 128
      %2971 = vxpose.xlu0.b32.cont [14/16] 0.0, 128
      %2972 = vxpose.xlu0.b32.cont [15/16] 0.0, 128
      %2973 = vxpose.xlu0.b32.end [16/16] 0.0, 128
      %v2974 = vpop.trf.xlu0
      %v2975 = vpop.trf.xlu0
      %v2976 = vpop.trf.xlu0
      %v2977 = vpop.trf.xlu0
      %v2978 = vpop.trf.xlu0
      %v2979 = vpop.trf.xlu0
      %v2980 = vpop.trf.xlu0
      %v2981 = vpop.trf.xlu0
      %v2982 = vpop.trf.xlu0
      %v2983 = vpop.trf.xlu0
      %v2984 = vpop.trf.xlu0
      %v2985 = vpop.trf.xlu0
      %v2986 = vpop.trf.xlu0
      %v2987 = vpop.trf.xlu0
      %v2988 = vpop.trf.xlu0
      %v2989 = vpop.trf.xlu0
      %2990 = vxpose.xlu0.b32.start [1/16] %v2738, 128
      %2991 = vxpose.xlu0.b32.cont [2/16] %v2743, 128
      %2992 = vxpose.xlu0.b32.cont [3/16] 0.0, 128
      %2993 = vxpose.xlu0.b32.cont [4/16] 0.0, 128
      %2994 = vxpose.xlu0.b32.cont [5/16] 0.0, 128
      %2995 = vxpose.xlu0.b32.cont [6/16] 0.0, 128
      %2996 = vxpose.xlu0.b32.cont [7/16] 0.0, 128
      %2997 = vxpose.xlu0.b32.cont [8/16] 0.0, 128
      %2998 = vxpose.xlu0.b32.cont [9/16] 0.0, 128
      %2999 = vxpose.xlu0.b32.cont [10/16] 0.0, 128
      %3000 = vxpose.xlu0.b32.cont [11/16] 0.0, 128
      %3001 = vxpose.xlu0.b32.cont [12/16] 0.0, 128
      %3002 = vxpose.xlu0.b32.cont [13/16] 0.0, 128
      %3003 = vxpose.xlu0.b32.cont [14/16] 0.0, 128
      %3004 = vxpose.xlu0.b32.cont [15/16] 0.0, 128
      %3005 = vxpose.xlu0.b32.end [16/16] 0.0, 128
      %v3006 = vpop.trf.xlu0
      %v3007 = vpop.trf.xlu0
      %v3008 = vpop.trf.xlu0
      %v3009 = vpop.trf.xlu0
      %v3010 = vpop.trf.xlu0
      %v3011 = vpop.trf.xlu0
      %v3012 = vpop.trf.xlu0
      %v3013 = vpop.trf.xlu0
      %v3014 = vpop.trf.xlu0
      %v3015 = vpop.trf.xlu0
      %v3016 = vpop.trf.xlu0
      %v3017 = vpop.trf.xlu0
      %v3018 = vpop.trf.xlu0
      %v3019 = vpop.trf.xlu0
      %v3020 = vpop.trf.xlu0
      %v3021 = vpop.trf.xlu0
      %3022 = vxpose.xlu0.b32.start [1/16] %v2748, 128
      %3023 = vxpose.xlu0.b32.cont [2/16] %v2753, 128
      %3024 = vxpose.xlu0.b32.cont [3/16] 0.0, 128
      %3025 = vxpose.xlu0.b32.cont [4/16] 0.0, 128
      %3026 = vxpose.xlu0.b32.cont [5/16] 0.0, 128
      %3027 = vxpose.xlu0.b32.cont [6/16] 0.0, 128
      %3028 = vxpose.xlu0.b32.cont [7/16] 0.0, 128
      %3029 = vxpose.xlu0.b32.cont [8/16] 0.0, 128
      %3030 = vxpose.xlu0.b32.cont [9/16] 0.0, 128
      %3031 = vxpose.xlu0.b32.cont [10/16] 0.0, 128
      %3032 = vxpose.xlu0.b32.cont [11/16] 0.0, 128
      %3033 = vxpose.xlu0.b32.cont [12/16] 0.0, 128
      %3034 = vxpose.xlu0.b32.cont [13/16] 0.0, 128
      %3035 = vxpose.xlu0.b32.cont [14/16] 0.0, 128
      %3036 = vxpose.xlu0.b32.cont [15/16] 0.0, 128
      %3037 = vxpose.xlu0.b32.end [16/16] 0.0, 128
      %v3038 = vpop.trf.xlu0
      %v3039 = vpop.trf.xlu0
      %v3040 = vpop.trf.xlu0
      %v3041 = vpop.trf.xlu0
      %v3042 = vpop.trf.xlu0
      %v3043 = vpop.trf.xlu0
      %v3044 = vpop.trf.xlu0
      %v3045 = vpop.trf.xlu0
      %v3046 = vpop.trf.xlu0
      %v3047 = vpop.trf.xlu0
      %v3048 = vpop.trf.xlu0
      %v3049 = vpop.trf.xlu0
      %v3050 = vpop.trf.xlu0
      %v3051 = vpop.trf.xlu0
      %v3052 = vpop.trf.xlu0
      %v3053 = vpop.trf.xlu0
      %3054 = vxpose.xlu0.b32.start [1/16] %v2758, 128
      %3055 = vxpose.xlu0.b32.cont [2/16] %v2763, 128
      %3056 = vxpose.xlu0.b32.cont [3/16] 0.0, 128
      %3057 = vxpose.xlu0.b32.cont [4/16] 0.0, 128
      %3058 = vxpose.xlu0.b32.cont [5/16] 0.0, 128
      %3059 = vxpose.xlu0.b32.cont [6/16] 0.0, 128
      %3060 = vxpose.xlu0.b32.cont [7/16] 0.0, 128
      %3061 = vxpose.xlu0.b32.cont [8/16] 0.0, 128
      %3062 = vxpose.xlu0.b32.cont [9/16] 0.0, 128
      %3063 = vxpose.xlu0.b32.cont [10/16] 0.0, 128
      %3064 = vxpose.xlu0.b32.cont [11/16] 0.0, 128
      %3065 = vxpose.xlu0.b32.cont [12/16] 0.0, 128
      %3066 = vxpose.xlu0.b32.cont [13/16] 0.0, 128
      %3067 = vxpose.xlu0.b32.cont [14/16] 0.0, 128
      %3068 = vxpose.xlu0.b32.cont [15/16] 0.0, 128
      %3069 = vxpose.xlu0.b32.end [16/16] 0.0, 128
      %v3070 = vpop.trf.xlu0
      %v3071 = vpop.trf.xlu0
      %v3072 = vpop.trf.xlu0
      %v3073 = vpop.trf.xlu0
      %v3074 = vpop.trf.xlu0
      %v3075 = vpop.trf.xlu0
      %v3076 = vpop.trf.xlu0
      %v3077 = vpop.trf.xlu0
      %v3078 = vpop.trf.xlu0
      %v3079 = vpop.trf.xlu0
      %v3080 = vpop.trf.xlu0
      %v3081 = vpop.trf.xlu0
      %v3082 = vpop.trf.xlu0
      %v3083 = vpop.trf.xlu0
      %v3084 = vpop.trf.xlu0
      %v3085 = vpop.trf.xlu0
      %v3086 = vlaneseq
      %v3087 = vand.u32 %v3086, 127
      %vm3088 = vcmp.lt.s32.totalorder %v3087, 11
      %v3089 = vsel %vm3088, 1, 0
      %vm3090 = vcmp.eq.s32.totalorder %v3089, 1
      %3092 = vset.pattern.permute.xlu0 10
      %3093 = vperm.xlu0 %3092, %v2782
      %v3094 = vpop.permute.xlu0 %3093
      %3097 = vset.pattern.permute.xlu0 10
      %3098 = vperm.xlu0 %3097, %v2783
      %v3099 = vpop.permute.xlu0 %3098
      %3102 = vset.pattern.permute.xlu0 10
      %3103 = vperm.xlu0 %3102, %v2784
      %v3104 = vpop.permute.xlu0 %3103
      %3107 = vset.pattern.permute.xlu0 10
      %3108 = vperm.xlu0 %3107, %v2814
      %v3109 = vpop.permute.xlu0 %3108
      %3112 = vset.pattern.permute.xlu0 10
      %3113 = vperm.xlu0 %3112, %v2815
      %v3114 = vpop.permute.xlu0 %3113
      %3117 = vset.pattern.permute.xlu0 10
      %3118 = vperm.xlu0 %3117, %v2816
      %v3119 = vpop.permute.xlu0 %3118
      %3122 = vset.pattern.permute.xlu0 10
      %3123 = vperm.xlu0 %3122, %v2846
      %v3124 = vpop.permute.xlu0 %3123
      %3127 = vset.pattern.permute.xlu0 10
      %3128 = vperm.xlu0 %3127, %v2847
      %v3129 = vpop.permute.xlu0 %3128
      %3132 = vset.pattern.permute.xlu0 10
      %3133 = vperm.xlu0 %3132, %v2848
      %v3134 = vpop.permute.xlu0 %3133
      %3137 = vset.pattern.permute.xlu0 10
      %3138 = vperm.xlu0 %3137, %v2878
      %v3139 = vpop.permute.xlu0 %3138
      %3142 = vset.pattern.permute.xlu0 10
      %3143 = vperm.xlu0 %3142, %v2879
      %v3144 = vpop.permute.xlu0 %3143
      %3147 = vset.pattern.permute.xlu0 10
      %3148 = vperm.xlu0 %3147, %v2880
      %v3149 = vpop.permute.xlu0 %3148
      %3152 = vset.pattern.permute.xlu0 10
      %3153 = vperm.xlu0 %3152, %v2910
      %v3154 = vpop.permute.xlu0 %3153
      %3157 = vset.pattern.permute.xlu0 10
      %3158 = vperm.xlu0 %3157, %v2911
      %v3159 = vpop.permute.xlu0 %3158
      %3162 = vset.pattern.permute.xlu0 10
      %3163 = vperm.xlu0 %3162, %v2912
      %v3164 = vpop.permute.xlu0 %3163
      %3167 = vset.pattern.permute.xlu0 10
      %3168 = vperm.xlu0 %3167, %v2942
      %v3169 = vpop.permute.xlu0 %3168
      %3172 = vset.pattern.permute.xlu0 10
      %3173 = vperm.xlu0 %3172, %v2943
      %v3174 = vpop.permute.xlu0 %3173
      %3177 = vset.pattern.permute.xlu0 10
      %3178 = vperm.xlu0 %3177, %v2944
      %v3179 = vpop.permute.xlu0 %3178
      %3182 = vset.pattern.permute.xlu0 10
      %3183 = vperm.xlu0 %3182, %v2974
      %v3184 = vpop.permute.xlu0 %3183
      %3187 = vset.pattern.permute.xlu0 10
      %3188 = vperm.xlu0 %3187, %v2975
      %v3189 = vpop.permute.xlu0 %3188
      %3192 = vset.pattern.permute.xlu0 10
      %3193 = vperm.xlu0 %3192, %v2976
      %v3194 = vpop.permute.xlu0 %3193
      %3197 = vset.pattern.permute.xlu0 10
      %3198 = vperm.xlu0 %3197, %v3006
      %v3199 = vpop.permute.xlu0 %3198
      %3202 = vset.pattern.permute.xlu0 10
      %3203 = vperm.xlu0 %3202, %v3007
      %v3204 = vpop.permute.xlu0 %3203
      %3207 = vset.pattern.permute.xlu0 10
      %3208 = vperm.xlu0 %3207, %v3008
      %v3209 = vpop.permute.xlu0 %3208
      %3212 = vset.pattern.permute.xlu0 10
      %3213 = vperm.xlu0 %3212, %v3038
      %v3214 = vpop.permute.xlu0 %3213
      %3217 = vset.pattern.permute.xlu0 10
      %3218 = vperm.xlu0 %3217, %v3039
      %v3219 = vpop.permute.xlu0 %3218
      %3222 = vset.pattern.permute.xlu0 10
      %3223 = vperm.xlu0 %3222, %v3040
      %v3224 = vpop.permute.xlu0 %3223
      %3227 = vset.pattern.permute.xlu0 10
      %3228 = vperm.xlu0 %3227, %v3070
      %v3229 = vpop.permute.xlu0 %3228
      %3232 = vset.pattern.permute.xlu0 10
      %3233 = vperm.xlu0 %3232, %v3071
      %v3234 = vpop.permute.xlu0 %3233
      %3237 = vset.pattern.permute.xlu0 10
      %3238 = vperm.xlu0 %3237, %v3072
      %v3239 = vpop.permute.xlu0 %3238
      %v3241 = vsel %vm3090, %v2782, %v3094
      %v3242 = vsel %vm3090, %v2783, %v3099
      %v3243 = vsel %vm3090, %v2784, %v3104
      %v3244 = vsel %vm3090, %v2814, %v3109
      %v3245 = vsel %vm3090, %v2815, %v3114
      %v3246 = vsel %vm3090, %v2816, %v3119
      %v3247 = vsel %vm3090, %v2846, %v3124
      %v3248 = vsel %vm3090, %v2847, %v3129
      %v3249 = vsel %vm3090, %v2848, %v3134
      %v3250 = vsel %vm3090, %v2878, %v3139
      %v3251 = vsel %vm3090, %v2879, %v3144
      %v3252 = vsel %vm3090, %v2880, %v3149
      %v3253 = vsel %vm3090, %v2910, %v3154
      %v3254 = vsel %vm3090, %v2911, %v3159
      %v3255 = vsel %vm3090, %v2912, %v3164
      %v3256 = vsel %vm3090, %v2942, %v3169
      %v3257 = vsel %vm3090, %v2943, %v3174
      %v3258 = vsel %vm3090, %v2944, %v3179
      %v3259 = vsel %vm3090, %v2974, %v3184
      %v3260 = vsel %vm3090, %v2975, %v3189
      %v3261 = vsel %vm3090, %v2976, %v3194
      %v3262 = vsel %vm3090, %v3006, %v3199
      %v3263 = vsel %vm3090, %v3007, %v3204
      %v3264 = vsel %vm3090, %v3008, %v3209
      %v3265 = vsel %vm3090, %v3038, %v3214
      %v3266 = vsel %vm3090, %v3039, %v3219
      %v3267 = vsel %vm3090, %v3040, %v3224
      %v3268 = vsel %vm3090, %v3070, %v3229
      %v3269 = vsel %vm3090, %v3071, %v3234
      %v3270 = vsel %vm3090, %v3072, %v3239
      %3301 = vrot.lane.b32.xlu0 %v3241, 127
      %v3302 = vpop.permute.xlu0 %3301
      %3303 = vrot.lane.b32.xlu0 %v3242, 127
      %v3304 = vpop.permute.xlu0 %3303
      %3305 = vrot.lane.b32.xlu0 %v3243, 127
      %v3306 = vpop.permute.xlu0 %3305
      %3307 = vrot.lane.b32.xlu0 %v3244, 127
      %v3308 = vpop.permute.xlu0 %3307
      %3309 = vrot.lane.b32.xlu0 %v3245, 127
      %v3310 = vpop.permute.xlu0 %3309
      %3311 = vrot.lane.b32.xlu0 %v3246, 127
      %v3312 = vpop.permute.xlu0 %3311
      %3313 = vrot.lane.b32.xlu0 %v3247, 127
      %v3314 = vpop.permute.xlu0 %3313
      %3315 = vrot.lane.b32.xlu0 %v3248, 127
      %v3316 = vpop.permute.xlu0 %3315
      %3317 = vrot.lane.b32.xlu0 %v3249, 127
      %v3318 = vpop.permute.xlu0 %3317
      %3319 = vrot.lane.b32.xlu0 %v3250, 127
      %v3320 = vpop.permute.xlu0 %3319
      %3321 = vrot.lane.b32.xlu0 %v3251, 127
      %v3322 = vpop.permute.xlu0 %3321
      %3323 = vrot.lane.b32.xlu0 %v3252, 127
      %v3324 = vpop.permute.xlu0 %3323
      %3325 = vrot.lane.b32.xlu0 %v3253, 127
      %v3326 = vpop.permute.xlu0 %3325
      %3327 = vrot.lane.b32.xlu0 %v3254, 127
      %v3328 = vpop.permute.xlu0 %3327
      %3329 = vrot.lane.b32.xlu0 %v3255, 127
      %v3330 = vpop.permute.xlu0 %3329
      %3331 = vrot.lane.b32.xlu0 %v3256, 127
      %v3332 = vpop.permute.xlu0 %3331
      %3333 = vrot.lane.b32.xlu0 %v3257, 127
      %v3334 = vpop.permute.xlu0 %3333
      %3335 = vrot.lane.b32.xlu0 %v3258, 127
      %v3336 = vpop.permute.xlu0 %3335
      %3337 = vrot.lane.b32.xlu0 %v3259, 127
      %v3338 = vpop.permute.xlu0 %3337
      %3339 = vrot.lane.b32.xlu0 %v3260, 127
      %v3340 = vpop.permute.xlu0 %3339
      %3341 = vrot.lane.b32.xlu0 %v3261, 127
      %v3342 = vpop.permute.xlu0 %3341
      %3343 = vrot.lane.b32.xlu0 %v3262, 127
      %v3344 = vpop.permute.xlu0 %3343
      %3345 = vrot.lane.b32.xlu0 %v3263, 127
      %v3346 = vpop.permute.xlu0 %3345
      %3347 = vrot.lane.b32.xlu0 %v3264, 127
      %v3348 = vpop.permute.xlu0 %3347
      %3349 = vrot.lane.b32.xlu0 %v3265, 127
      %v3350 = vpop.permute.xlu0 %3349
      %3351 = vrot.lane.b32.xlu0 %v3266, 127
      %v3352 = vpop.permute.xlu0 %3351
      %3353 = vrot.lane.b32.xlu0 %v3267, 127
      %v3354 = vpop.permute.xlu0 %3353
      %3355 = vrot.lane.b32.xlu0 %v3268, 127
      %v3356 = vpop.permute.xlu0 %3355
      %3357 = vrot.lane.b32.xlu0 %v3269, 127
      %v3358 = vpop.permute.xlu0 %3357
      %3359 = vrot.lane.b32.xlu0 %v3270, 127
      %v3360 = vpop.permute.xlu0 %3359
      %vm3391 = vcmask 121856
      %v3392 = vsel %vm3391, %v3302, %v3241
      %v3393 = vsel %vm3391, %v3304, %v3242
      %v3394 = vsel %vm3391, %v3306, %v3243
      %v3395 = vsel %vm3391, %v3308, %v3244
      %v3396 = vsel %vm3391, %v3310, %v3245
      %v3397 = vsel %vm3391, %v3312, %v3246
      %v3398 = vsel %vm3391, %v3314, %v3247
      %v3399 = vsel %vm3391, %v3316, %v3248
      %v3400 = vsel %vm3391, %v3318, %v3249
      %v3401 = vsel %vm3391, %v3320, %v3250
      %v3402 = vsel %vm3391, %v3322, %v3251
      %v3403 = vsel %vm3391, %v3324, %v3252
      %v3404 = vsel %vm3391, %v3326, %v3253
      %v3405 = vsel %vm3391, %v3328, %v3254
      %v3406 = vsel %vm3391, %v3330, %v3255
      %v3407 = vsel %vm3391, %v3332, %v3256
      %v3408 = vsel %vm3391, %v3334, %v3257
      %v3409 = vsel %vm3391, %v3336, %v3258
      %v3410 = vsel %vm3391, %v3338, %v3259
      %v3411 = vsel %vm3391, %v3340, %v3260
      %v3412 = vsel %vm3391, %v3342, %v3261
      %v3413 = vsel %vm3391, %v3344, %v3262
      %v3414 = vsel %vm3391, %v3346, %v3263
      %v3415 = vsel %vm3391, %v3348, %v3264
      %v3416 = vsel %vm3391, %v3350, %v3265
      %v3417 = vsel %vm3391, %v3352, %v3266
      %v3418 = vsel %vm3391, %v3354, %v3267
      %v3419 = vsel %vm3391, %v3356, %v3268
      %v3420 = vsel %vm3391, %v3358, %v3269
      %v3421 = vsel %vm3391, %v3360, %v3270
      %3422 = vrot.lane.b32.xlu0 %v3241, 1
      %v3423 = vpop.permute.xlu0 %3422
      %3424 = vrot.lane.b32.xlu0 %v3242, 1
      %v3425 = vpop.permute.xlu0 %3424
      %3426 = vrot.lane.b32.xlu0 %v3243, 1
      %v3427 = vpop.permute.xlu0 %3426
      %3428 = vrot.lane.b32.xlu0 %v3244, 1
      %v3429 = vpop.permute.xlu0 %3428
      %3430 = vrot.lane.b32.xlu0 %v3245, 1
      %v3431 = vpop.permute.xlu0 %3430
      %3432 = vrot.lane.b32.xlu0 %v3246, 1
      %v3433 = vpop.permute.xlu0 %3432
      %3434 = vrot.lane.b32.xlu0 %v3247, 1
      %v3435 = vpop.permute.xlu0 %3434
      %3436 = vrot.lane.b32.xlu0 %v3248, 1
      %v3437 = vpop.permute.xlu0 %3436
      %3438 = vrot.lane.b32.xlu0 %v3249, 1
      %v3439 = vpop.permute.xlu0 %3438
      %3440 = vrot.lane.b32.xlu0 %v3250, 1
      %v3441 = vpop.permute.xlu0 %3440
      %3442 = vrot.lane.b32.xlu0 %v3251, 1
      %v3443 = vpop.permute.xlu0 %3442
      %3444 = vrot.lane.b32.xlu0 %v3252, 1
      %v3445 = vpop.permute.xlu0 %3444
      %3446 = vrot.lane.b32.xlu0 %v3253, 1
      %v3447 = vpop.permute.xlu0 %3446
      %3448 = vrot.lane.b32.xlu0 %v3254, 1
      %v3449 = vpop.permute.xlu0 %3448
      %3450 = vrot.lane.b32.xlu0 %v3255, 1
      %v3451 = vpop.permute.xlu0 %3450
      %3452 = vrot.lane.b32.xlu0 %v3256, 1
      %v3453 = vpop.permute.xlu0 %3452
      %3454 = vrot.lane.b32.xlu0 %v3257, 1
      %v3455 = vpop.permute.xlu0 %3454
      %3456 = vrot.lane.b32.xlu0 %v3258, 1
      %v3457 = vpop.permute.xlu0 %3456
      %3458 = vrot.lane.b32.xlu0 %v3259, 1
      %v3459 = vpop.permute.xlu0 %3458
      %3460 = vrot.lane.b32.xlu0 %v3260, 1
      %v3461 = vpop.permute.xlu0 %3460
      %3462 = vrot.lane.b32.xlu0 %v3261, 1
      %v3463 = vpop.permute.xlu0 %3462
      %3464 = vrot.lane.b32.xlu0 %v3262, 1
      %v3465 = vpop.permute.xlu0 %3464
      %3466 = vrot.lane.b32.xlu0 %v3263, 1
      %v3467 = vpop.permute.xlu0 %3466
      %3468 = vrot.lane.b32.xlu0 %v3264, 1
      %v3469 = vpop.permute.xlu0 %3468
      %3470 = vrot.lane.b32.xlu0 %v3265, 1
      %v3471 = vpop.permute.xlu0 %3470
      %3472 = vrot.lane.b32.xlu0 %v3266, 1
      %v3473 = vpop.permute.xlu0 %3472
      %3474 = vrot.lane.b32.xlu0 %v3267, 1
      %v3475 = vpop.permute.xlu0 %3474
      %3476 = vrot.lane.b32.xlu0 %v3268, 1
      %v3477 = vpop.permute.xlu0 %3476
      %3478 = vrot.lane.b32.xlu0 %v3269, 1
      %v3479 = vpop.permute.xlu0 %3478
      %3480 = vrot.lane.b32.xlu0 %v3270, 1
      %v3481 = vpop.permute.xlu0 %3480
      %vm3512 = vcmask 7168
      %v3513 = vsel %vm3512, %v3241, %v3423
      %v3514 = vsel %vm3512, %v3242, %v3425
      %v3515 = vsel %vm3512, %v3243, %v3427
      %v3516 = vsel %vm3512, %v3244, %v3429
      %v3517 = vsel %vm3512, %v3245, %v3431
      %v3518 = vsel %vm3512, %v3246, %v3433
      %v3519 = vsel %vm3512, %v3247, %v3435
      %v3520 = vsel %vm3512, %v3248, %v3437
      %v3521 = vsel %vm3512, %v3249, %v3439
      %v3522 = vsel %vm3512, %v3250, %v3441
      %v3523 = vsel %vm3512, %v3251, %v3443
      %v3524 = vsel %vm3512, %v3252, %v3445
      %v3525 = vsel %vm3512, %v3253, %v3447
      %v3526 = vsel %vm3512, %v3254, %v3449
      %v3527 = vsel %vm3512, %v3255, %v3451
      %v3528 = vsel %vm3512, %v3256, %v3453
      %v3529 = vsel %vm3512, %v3257, %v3455
      %v3530 = vsel %vm3512, %v3258, %v3457
      %v3531 = vsel %vm3512, %v3259, %v3459
      %v3532 = vsel %vm3512, %v3260, %v3461
      %v3533 = vsel %vm3512, %v3261, %v3463
      %v3534 = vsel %vm3512, %v3262, %v3465
      %v3535 = vsel %vm3512, %v3263, %v3467
      %v3536 = vsel %vm3512, %v3264, %v3469
      %v3537 = vsel %vm3512, %v3265, %v3471
      %v3538 = vsel %vm3512, %v3266, %v3473
      %v3539 = vsel %vm3512, %v3267, %v3475
      %v3540 = vsel %vm3512, %v3268, %v3477
      %v3541 = vsel %vm3512, %v3269, %v3479
      %v3542 = vsel %vm3512, %v3270, %v3481
      %v3543 = vsub.f32 %v3392, %v3513
      %v3544 = vsub.f32 %v3393, %v3514
      %v3545 = vsub.f32 %v3394, %v3515
      %v3546 = vsub.f32 %v3395, %v3516
      %v3547 = vsub.f32 %v3396, %v3517
      %v3548 = vsub.f32 %v3397, %v3518
      %v3549 = vsub.f32 %v3398, %v3519
      %v3550 = vsub.f32 %v3399, %v3520
      %v3551 = vsub.f32 %v3400, %v3521
      %v3552 = vsub.f32 %v3401, %v3522
      %v3553 = vsub.f32 %v3402, %v3523
      %v3554 = vsub.f32 %v3403, %v3524
      %v3555 = vsub.f32 %v3404, %v3525
      %v3556 = vsub.f32 %v3405, %v3526
      %v3557 = vsub.f32 %v3406, %v3527
      %v3558 = vsub.f32 %v3407, %v3528
      %v3559 = vsub.f32 %v3408, %v3529
      %v3560 = vsub.f32 %v3409, %v3530
      %v3561 = vsub.f32 %v3410, %v3531
      %v3562 = vsub.f32 %v3411, %v3532
      %v3563 = vsub.f32 %v3412, %v3533
      %v3564 = vsub.f32 %v3413, %v3534
      %v3565 = vsub.f32 %v3414, %v3535
      %v3566 = vsub.f32 %v3415, %v3536
      %v3567 = vsub.f32 %v3416, %v3537
      %v3568 = vsub.f32 %v3417, %v3538
      %v3569 = vsub.f32 %v3418, %v3539
      %v3570 = vsub.f32 %v3419, %v3540
      %v3571 = vsub.f32 %v3420, %v3541
      %v3572 = vsub.f32 %v3421, %v3542
      %3573 = vset.pattern.permute.xlu0 15
      %3574 = vperm.xlu0 %3573, %v3241
      %v3575 = vpop.permute.xlu0 %3574
      %3577 = vset.pattern.permute.xlu0 15
      %3578 = vperm.xlu0 %3577, %v3242
      %v3579 = vpop.permute.xlu0 %3578
      %3581 = vset.pattern.permute.xlu0 15
      %3582 = vperm.xlu0 %3581, %v3243
      %v3583 = vpop.permute.xlu0 %3582
      %3585 = vset.pattern.permute.xlu0 15
      %3586 = vperm.xlu0 %3585, %v3244
      %v3587 = vpop.permute.xlu0 %3586
      %3589 = vset.pattern.permute.xlu0 15
      %3590 = vperm.xlu0 %3589, %v3245
      %v3591 = vpop.permute.xlu0 %3590
      %3593 = vset.pattern.permute.xlu0 15
      %3594 = vperm.xlu0 %3593, %v3246
      %v3595 = vpop.permute.xlu0 %3594
      %3597 = vset.pattern.permute.xlu0 15
      %3598 = vperm.xlu0 %3597, %v3247
      %v3599 = vpop.permute.xlu0 %3598
      %3601 = vset.pattern.permute.xlu0 15
      %3602 = vperm.xlu0 %3601, %v3248
      %v3603 = vpop.permute.xlu0 %3602
      %3605 = vset.pattern.permute.xlu0 15
      %3606 = vperm.xlu0 %3605, %v3249
      %v3607 = vpop.permute.xlu0 %3606
      %3609 = vset.pattern.permute.xlu0 15
      %3610 = vperm.xlu0 %3609, %v3250
      %v3611 = vpop.permute.xlu0 %3610
      %3613 = vset.pattern.permute.xlu0 15
      %3614 = vperm.xlu0 %3613, %v3251
      %v3615 = vpop.permute.xlu0 %3614
      %3617 = vset.pattern.permute.xlu0 15
      %3618 = vperm.xlu0 %3617, %v3252
      %v3619 = vpop.permute.xlu0 %3618
      %3621 = vset.pattern.permute.xlu0 15
      %3622 = vperm.xlu0 %3621, %v3253
      %v3623 = vpop.permute.xlu0 %3622
      %3625 = vset.pattern.permute.xlu0 15
      %3626 = vperm.xlu0 %3625, %v3254
      %v3627 = vpop.permute.xlu0 %3626
      %3629 = vset.pattern.permute.xlu0 15
      %3630 = vperm.xlu0 %3629, %v3255
      %v3631 = vpop.permute.xlu0 %3630
      %3633 = vset.pattern.permute.xlu0 15
      %3634 = vperm.xlu0 %3633, %v3256
      %v3635 = vpop.permute.xlu0 %3634
      %3637 = vset.pattern.permute.xlu0 15
      %3638 = vperm.xlu0 %3637, %v3257
      %v3639 = vpop.permute.xlu0 %3638
      %3641 = vset.pattern.permute.xlu0 15
      %3642 = vperm.xlu0 %3641, %v3258
      %v3643 = vpop.permute.xlu0 %3642
      %3645 = vset.pattern.permute.xlu0 15
      %3646 = vperm.xlu0 %3645, %v3259
      %v3647 = vpop.permute.xlu0 %3646
      %3649 = vset.pattern.permute.xlu0 15
      %3650 = vperm.xlu0 %3649, %v3260
      %v3651 = vpop.permute.xlu0 %3650
      %3653 = vset.pattern.permute.xlu0 15
      %3654 = vperm.xlu0 %3653, %v3261
      %v3655 = vpop.permute.xlu0 %3654
      %3657 = vset.pattern.permute.xlu0 15
      %3658 = vperm.xlu0 %3657, %v3262
      %v3659 = vpop.permute.xlu0 %3658
      %3661 = vset.pattern.permute.xlu0 15
      %3662 = vperm.xlu0 %3661, %v3263
      %v3663 = vpop.permute.xlu0 %3662
      %3665 = vset.pattern.permute.xlu0 15
      %3666 = vperm.xlu0 %3665, %v3264
      %v3667 = vpop.permute.xlu0 %3666
      %3669 = vset.pattern.permute.xlu0 15
      %3670 = vperm.xlu0 %3669, %v3265
      %v3671 = vpop.permute.xlu0 %3670
      %3673 = vset.pattern.permute.xlu0 15
      %3674 = vperm.xlu0 %3673, %v3266
      %v3675 = vpop.permute.xlu0 %3674
      %3677 = vset.pattern.permute.xlu0 15
      %3678 = vperm.xlu0 %3677, %v3267
      %v3679 = vpop.permute.xlu0 %3678
      %3681 = vset.pattern.permute.xlu0 15
      %3682 = vperm.xlu0 %3681, %v3268
      %v3683 = vpop.permute.xlu0 %3682
      %3685 = vset.pattern.permute.xlu0 15
      %3686 = vperm.xlu0 %3685, %v3269
      %v3687 = vpop.permute.xlu0 %3686
      %3689 = vset.pattern.permute.xlu0 15
      %3690 = vperm.xlu0 %3689, %v3270
      %v3691 = vpop.permute.xlu0 %3690
      %3693 = vrot.lane.b32.xlu0 %v3241, 126
      %v3694 = vpop.permute.xlu0 %3693
      %3695 = vrot.lane.b32.xlu0 %v3242, 126
      %v3696 = vpop.permute.xlu0 %3695
      %3697 = vrot.lane.b32.xlu0 %v3243, 126
      %v3698 = vpop.permute.xlu0 %3697
      %3699 = vrot.lane.b32.xlu0 %v3244, 126
      %v3700 = vpop.permute.xlu0 %3699
      %3701 = vrot.lane.b32.xlu0 %v3245, 126
      %v3702 = vpop.permute.xlu0 %3701
      %3703 = vrot.lane.b32.xlu0 %v3246, 126
      %v3704 = vpop.permute.xlu0 %3703
      %3705 = vrot.lane.b32.xlu0 %v3247, 126
      %v3706 = vpop.permute.xlu0 %3705
      %3707 = vrot.lane.b32.xlu0 %v3248, 126
      %v3708 = vpop.permute.xlu0 %3707
      %3709 = vrot.lane.b32.xlu0 %v3249, 126
      %v3710 = vpop.permute.xlu0 %3709
      %3711 = vrot.lane.b32.xlu0 %v3250, 126
      %v3712 = vpop.permute.xlu0 %3711
      %3713 = vrot.lane.b32.xlu0 %v3251, 126
      %v3714 = vpop.permute.xlu0 %3713
      %3715 = vrot.lane.b32.xlu0 %v3252, 126
      %v3716 = vpop.permute.xlu0 %3715
      %3717 = vrot.lane.b32.xlu0 %v3253, 126
      %v3718 = vpop.permute.xlu0 %3717
      %3719 = vrot.lane.b32.xlu0 %v3254, 126
      %v3720 = vpop.permute.xlu0 %3719
      %3721 = vrot.lane.b32.xlu0 %v3255, 126
      %v3722 = vpop.permute.xlu0 %3721
      %3723 = vrot.lane.b32.xlu0 %v3256, 126
      %v3724 = vpop.permute.xlu0 %3723
      %3725 = vrot.lane.b32.xlu0 %v3257, 126
      %v3726 = vpop.permute.xlu0 %3725
      %3727 = vrot.lane.b32.xlu0 %v3258, 126
      %v3728 = vpop.permute.xlu0 %3727
      %3729 = vrot.lane.b32.xlu0 %v3259, 126
      %v3730 = vpop.permute.xlu0 %3729
      %3731 = vrot.lane.b32.xlu0 %v3260, 126
      %v3732 = vpop.permute.xlu0 %3731
      %3733 = vrot.lane.b32.xlu0 %v3261, 126
      %v3734 = vpop.permute.xlu0 %3733
      %3735 = vrot.lane.b32.xlu0 %v3262, 126
      %v3736 = vpop.permute.xlu0 %3735
      %3737 = vrot.lane.b32.xlu0 %v3263, 126
      %v3738 = vpop.permute.xlu0 %3737
      %3739 = vrot.lane.b32.xlu0 %v3264, 126
      %v3740 = vpop.permute.xlu0 %3739
      %3741 = vrot.lane.b32.xlu0 %v3265, 126
      %v3742 = vpop.permute.xlu0 %3741
      %3743 = vrot.lane.b32.xlu0 %v3266, 126
      %v3744 = vpop.permute.xlu0 %3743
      %3745 = vrot.lane.b32.xlu0 %v3267, 126
      %v3746 = vpop.permute.xlu0 %3745
      %3747 = vrot.lane.b32.xlu0 %v3268, 126
      %v3748 = vpop.permute.xlu0 %3747
      %3749 = vrot.lane.b32.xlu0 %v3269, 126
      %v3750 = vpop.permute.xlu0 %3749
      %3751 = vrot.lane.b32.xlu0 %v3270, 126
      %v3752 = vpop.permute.xlu0 %3751
      %vm3783 = vcmask 113664
      %v3784 = vsel %vm3783, %v3694, %v3575
      %v3785 = vsel %vm3783, %v3696, %v3579
      %v3786 = vsel %vm3783, %v3698, %v3583
      %v3787 = vsel %vm3783, %v3700, %v3587
      %v3788 = vsel %vm3783, %v3702, %v3591
      %v3789 = vsel %vm3783, %v3704, %v3595
      %v3790 = vsel %vm3783, %v3706, %v3599
      %v3791 = vsel %vm3783, %v3708, %v3603
      %v3792 = vsel %vm3783, %v3710, %v3607
      %v3793 = vsel %vm3783, %v3712, %v3611
      %v3794 = vsel %vm3783, %v3714, %v3615
      %v3795 = vsel %vm3783, %v3716, %v3619
      %v3796 = vsel %vm3783, %v3718, %v3623
      %v3797 = vsel %vm3783, %v3720, %v3627
      %v3798 = vsel %vm3783, %v3722, %v3631
      %v3799 = vsel %vm3783, %v3724, %v3635
      %v3800 = vsel %vm3783, %v3726, %v3639
      %v3801 = vsel %vm3783, %v3728, %v3643
      %v3802 = vsel %vm3783, %v3730, %v3647
      %v3803 = vsel %vm3783, %v3732, %v3651
      %v3804 = vsel %vm3783, %v3734, %v3655
      %v3805 = vsel %vm3783, %v3736, %v3659
      %v3806 = vsel %vm3783, %v3738, %v3663
      %v3807 = vsel %vm3783, %v3740, %v3667
      %v3808 = vsel %vm3783, %v3742, %v3671
      %v3809 = vsel %vm3783, %v3744, %v3675
      %v3810 = vsel %vm3783, %v3746, %v3679
      %v3811 = vsel %vm3783, %v3748, %v3683
      %v3812 = vsel %vm3783, %v3750, %v3687
      %v3813 = vsel %vm3783, %v3752, %v3691
      %3814 = vset.pattern.permute.xlu0 0
      %3815 = vperm.xlu0 %3814, %v3241
      %v3816 = vpop.permute.xlu0 %3815
      %3818 = vset.pattern.permute.xlu0 0
      %3819 = vperm.xlu0 %3818, %v3242
      %v3820 = vpop.permute.xlu0 %3819
      %3822 = vset.pattern.permute.xlu0 0
      %3823 = vperm.xlu0 %3822, %v3243
      %v3824 = vpop.permute.xlu0 %3823
      %3826 = vset.pattern.permute.xlu0 0
      %3827 = vperm.xlu0 %3826, %v3244
      %v3828 = vpop.permute.xlu0 %3827
      %3830 = vset.pattern.permute.xlu0 0
      %3831 = vperm.xlu0 %3830, %v3245
      %v3832 = vpop.permute.xlu0 %3831
      %3834 = vset.pattern.permute.xlu0 0
      %3835 = vperm.xlu0 %3834, %v3246
      %v3836 = vpop.permute.xlu0 %3835
      %3838 = vset.pattern.permute.xlu0 0
      %3839 = vperm.xlu0 %3838, %v3247
      %v3840 = vpop.permute.xlu0 %3839
      %3842 = vset.pattern.permute.xlu0 0
      %3843 = vperm.xlu0 %3842, %v3248
      %v3844 = vpop.permute.xlu0 %3843
      %3846 = vset.pattern.permute.xlu0 0
      %3847 = vperm.xlu0 %3846, %v3249
      %v3848 = vpop.permute.xlu0 %3847
      %3850 = vset.pattern.permute.xlu0 0
      %3851 = vperm.xlu0 %3850, %v3250
      %v3852 = vpop.permute.xlu0 %3851
      %3854 = vset.pattern.permute.xlu0 0
      %3855 = vperm.xlu0 %3854, %v3251
      %v3856 = vpop.permute.xlu0 %3855
      %3858 = vset.pattern.permute.xlu0 0
      %3859 = vperm.xlu0 %3858, %v3252
      %v3860 = vpop.permute.xlu0 %3859
      %3862 = vset.pattern.permute.xlu0 0
      %3863 = vperm.xlu0 %3862, %v3253
      %v3864 = vpop.permute.xlu0 %3863
      %3866 = vset.pattern.permute.xlu0 0
      %3867 = vperm.xlu0 %3866, %v3254
      %v3868 = vpop.permute.xlu0 %3867
      %3870 = vset.pattern.permute.xlu0 0
      %3871 = vperm.xlu0 %3870, %v3255
      %v3872 = vpop.permute.xlu0 %3871
      %3874 = vset.pattern.permute.xlu0 0
      %3875 = vperm.xlu0 %3874, %v3256
      %v3876 = vpop.permute.xlu0 %3875
      %3878 = vset.pattern.permute.xlu0 0
      %3879 = vperm.xlu0 %3878, %v3257
      %v3880 = vpop.permute.xlu0 %3879
      %3882 = vset.pattern.permute.xlu0 0
      %3883 = vperm.xlu0 %3882, %v3258
      %v3884 = vpop.permute.xlu0 %3883
      %3886 = vset.pattern.permute.xlu0 0
      %3887 = vperm.xlu0 %3886, %v3259
      %v3888 = vpop.permute.xlu0 %3887
      %3890 = vset.pattern.permute.xlu0 0
      %3891 = vperm.xlu0 %3890, %v3260
      %v3892 = vpop.permute.xlu0 %3891
      %3894 = vset.pattern.permute.xlu0 0
      %3895 = vperm.xlu0 %3894, %v3261
      %v3896 = vpop.permute.xlu0 %3895
      %3898 = vset.pattern.permute.xlu0 0
      %3899 = vperm.xlu0 %3898, %v3262
      %v3900 = vpop.permute.xlu0 %3899
      %3902 = vset.pattern.permute.xlu0 0
      %3903 = vperm.xlu0 %3902, %v3263
      %v3904 = vpop.permute.xlu0 %3903
      %3906 = vset.pattern.permute.xlu0 0
      %3907 = vperm.xlu0 %3906, %v3264
      %v3908 = vpop.permute.xlu0 %3907
      %3910 = vset.pattern.permute.xlu0 0
      %3911 = vperm.xlu0 %3910, %v3265
      %v3912 = vpop.permute.xlu0 %3911
      %3914 = vset.pattern.permute.xlu0 0
      %3915 = vperm.xlu0 %3914, %v3266
      %v3916 = vpop.permute.xlu0 %3915
      %3918 = vset.pattern.permute.xlu0 0
      %3919 = vperm.xlu0 %3918, %v3267
      %v3920 = vpop.permute.xlu0 %3919
      %3922 = vset.pattern.permute.xlu0 0
      %3923 = vperm.xlu0 %3922, %v3268
      %v3924 = vpop.permute.xlu0 %3923
      %3926 = vset.pattern.permute.xlu0 0
      %3927 = vperm.xlu0 %3926, %v3269
      %v3928 = vpop.permute.xlu0 %3927
      %3930 = vset.pattern.permute.xlu0 0
      %3931 = vperm.xlu0 %3930, %v3270
      %v3932 = vpop.permute.xlu0 %3931
      %3934 = vrot.lane.b32.xlu0 %v3241, 2
      %v3935 = vpop.permute.xlu0 %3934
      %3936 = vrot.lane.b32.xlu0 %v3242, 2
      %v3937 = vpop.permute.xlu0 %3936
      %3938 = vrot.lane.b32.xlu0 %v3243, 2
      %v3939 = vpop.permute.xlu0 %3938
      %3940 = vrot.lane.b32.xlu0 %v3244, 2
      %v3941 = vpop.permute.xlu0 %3940
      %3942 = vrot.lane.b32.xlu0 %v3245, 2
      %v3943 = vpop.permute.xlu0 %3942
      %3944 = vrot.lane.b32.xlu0 %v3246, 2
      %v3945 = vpop.permute.xlu0 %3944
      %3946 = vrot.lane.b32.xlu0 %v3247, 2
      %v3947 = vpop.permute.xlu0 %3946
      %3948 = vrot.lane.b32.xlu0 %v3248, 2
      %v3949 = vpop.permute.xlu0 %3948
      %3950 = vrot.lane.b32.xlu0 %v3249, 2
      %v3951 = vpop.permute.xlu0 %3950
      %3952 = vrot.lane.b32.xlu0 %v3250, 2
      %v3953 = vpop.permute.xlu0 %3952
      %3954 = vrot.lane.b32.xlu0 %v3251, 2
      %v3955 = vpop.permute.xlu0 %3954
      %3956 = vrot.lane.b32.xlu0 %v3252, 2
      %v3957 = vpop.permute.xlu0 %3956
      %3958 = vrot.lane.b32.xlu0 %v3253, 2
      %v3959 = vpop.permute.xlu0 %3958
      %3960 = vrot.lane.b32.xlu0 %v3254, 2
      %v3961 = vpop.permute.xlu0 %3960
      %3962 = vrot.lane.b32.xlu0 %v3255, 2
      %v3963 = vpop.permute.xlu0 %3962
      %3964 = vrot.lane.b32.xlu0 %v3256, 2
      %v3965 = vpop.permute.xlu0 %3964
      %3966 = vrot.lane.b32.xlu0 %v3257, 2
      %v3967 = vpop.permute.xlu0 %3966
      %3968 = vrot.lane.b32.xlu0 %v3258, 2
      %v3969 = vpop.permute.xlu0 %3968
      %3970 = vrot.lane.b32.xlu0 %v3259, 2
      %v3971 = vpop.permute.xlu0 %3970
      %3972 = vrot.lane.b32.xlu0 %v3260, 2
      %v3973 = vpop.permute.xlu0 %3972
      %3974 = vrot.lane.b32.xlu0 %v3261, 2
      %v3975 = vpop.permute.xlu0 %3974
      %3976 = vrot.lane.b32.xlu0 %v3262, 2
      %v3977 = vpop.permute.xlu0 %3976
      %3978 = vrot.lane.b32.xlu0 %v3263, 2
      %v3979 = vpop.permute.xlu0 %3978
      %3980 = vrot.lane.b32.xlu0 %v3264, 2
      %v3981 = vpop.permute.xlu0 %3980
      %3982 = vrot.lane.b32.xlu0 %v3265, 2
      %v3983 = vpop.permute.xlu0 %3982
      %3984 = vrot.lane.b32.xlu0 %v3266, 2
      %v3985 = vpop.permute.xlu0 %3984
      %3986 = vrot.lane.b32.xlu0 %v3267, 2
      %v3987 = vpop.permute.xlu0 %3986
      %3988 = vrot.lane.b32.xlu0 %v3268, 2
      %v3989 = vpop.permute.xlu0 %3988
      %3990 = vrot.lane.b32.xlu0 %v3269, 2
      %v3991 = vpop.permute.xlu0 %3990
      %3992 = vrot.lane.b32.xlu0 %v3270, 2
      %v3993 = vpop.permute.xlu0 %3992
      %vm4024 = vcmask 15360
      %v4025 = vsel %vm4024, %v3816, %v3935
      %v4026 = vsel %vm4024, %v3820, %v3937
      %v4027 = vsel %vm4024, %v3824, %v3939
      %v4028 = vsel %vm4024, %v3828, %v3941
      %v4029 = vsel %vm4024, %v3832, %v3943
      %v4030 = vsel %vm4024, %v3836, %v3945
      %v4031 = vsel %vm4024, %v3840, %v3947
      %v4032 = vsel %vm4024, %v3844, %v3949
      %v4033 = vsel %vm4024, %v3848, %v3951
      %v4034 = vsel %vm4024, %v3852, %v3953
      %v4035 = vsel %vm4024, %v3856, %v3955
      %v4036 = vsel %vm4024, %v3860, %v3957
      %v4037 = vsel %vm4024, %v3864, %v3959
      %v4038 = vsel %vm4024, %v3868, %v3961
      %v4039 = vsel %vm4024, %v3872, %v3963
      %v4040 = vsel %vm4024, %v3876, %v3965
      %v4041 = vsel %vm4024, %v3880, %v3967
      %v4042 = vsel %vm4024, %v3884, %v3969
      %v4043 = vsel %vm4024, %v3888, %v3971
      %v4044 = vsel %vm4024, %v3892, %v3973
      %v4045 = vsel %vm4024, %v3896, %v3975
      %v4046 = vsel %vm4024, %v3900, %v3977
      %v4047 = vsel %vm4024, %v3904, %v3979
      %v4048 = vsel %vm4024, %v3908, %v3981
      %v4049 = vsel %vm4024, %v3912, %v3983
      %v4050 = vsel %vm4024, %v3916, %v3985
      %v4051 = vsel %vm4024, %v3920, %v3987
      %v4052 = vsel %vm4024, %v3924, %v3989
      %v4053 = vsel %vm4024, %v3928, %v3991
      %v4054 = vsel %vm4024, %v3932, %v3993
      %v4055 = vsub.f32 %v3784, %v4025
      %v4056 = vsub.f32 %v3785, %v4026
      %v4057 = vsub.f32 %v3786, %v4027
      %v4058 = vsub.f32 %v3787, %v4028
      %v4059 = vsub.f32 %v3788, %v4029
      %v4060 = vsub.f32 %v3789, %v4030
      %v4061 = vsub.f32 %v3790, %v4031
      %v4062 = vsub.f32 %v3791, %v4032
      %v4063 = vsub.f32 %v3792, %v4033
      %v4064 = vsub.f32 %v3793, %v4034
      %v4065 = vsub.f32 %v3794, %v4035
      %v4066 = vsub.f32 %v3795, %v4036
      %v4067 = vsub.f32 %v3796, %v4037
      %v4068 = vsub.f32 %v3797, %v4038
      %v4069 = vsub.f32 %v3798, %v4039
      %v4070 = vsub.f32 %v3799, %v4040
      %v4071 = vsub.f32 %v3800, %v4041
      %v4072 = vsub.f32 %v3801, %v4042
      %v4073 = vsub.f32 %v3802, %v4043
      %v4074 = vsub.f32 %v3803, %v4044
      %v4075 = vsub.f32 %v3804, %v4045
      %v4076 = vsub.f32 %v3805, %v4046
      %v4077 = vsub.f32 %v3806, %v4047
      %v4078 = vsub.f32 %v3807, %v4048
      %v4079 = vsub.f32 %v3808, %v4049
      %v4080 = vsub.f32 %v3809, %v4050
      %v4081 = vsub.f32 %v3810, %v4051
      %v4082 = vsub.f32 %v3811, %v4052
      %v4083 = vsub.f32 %v3812, %v4053
      %v4084 = vsub.f32 %v3813, %v4054
      %v4085 = vmul.f32 %v4055, 2.0
      %v4086 = vmul.f32 %v4056, 2.0
      %v4087 = vmul.f32 %v4057, 2.0
      %v4088 = vmul.f32 %v4058, 2.0
      %v4089 = vmul.f32 %v4059, 2.0
      %v4090 = vmul.f32 %v4060, 2.0
      %v4091 = vmul.f32 %v4061, 2.0
      %v4092 = vmul.f32 %v4062, 2.0
      %v4093 = vmul.f32 %v4063, 2.0
      %v4094 = vmul.f32 %v4064, 2.0
      %v4095 = vmul.f32 %v4065, 2.0
      %v4096 = vmul.f32 %v4066, 2.0
      %v4097 = vmul.f32 %v4067, 2.0
      %v4098 = vmul.f32 %v4068, 2.0
      %v4099 = vmul.f32 %v4069, 2.0
      %v4100 = vmul.f32 %v4070, 2.0
      %v4101 = vmul.f32 %v4071, 2.0
      %v4102 = vmul.f32 %v4072, 2.0
      %v4103 = vmul.f32 %v4073, 2.0
      %v4104 = vmul.f32 %v4074, 2.0
      %v4105 = vmul.f32 %v4075, 2.0
      %v4106 = vmul.f32 %v4076, 2.0
      %v4107 = vmul.f32 %v4077, 2.0
      %v4108 = vmul.f32 %v4078, 2.0
      %v4109 = vmul.f32 %v4079, 2.0
      %v4110 = vmul.f32 %v4080, 2.0
      %v4111 = vmul.f32 %v4081, 2.0
      %v4112 = vmul.f32 %v4082, 2.0
      %v4113 = vmul.f32 %v4083, 2.0
      %v4114 = vmul.f32 %v4084, 2.0
      %v4115 = vadd.f32 %v3543, %v4085
      %v4116 = vadd.f32 %v3544, %v4086
      %v4117 = vadd.f32 %v3545, %v4087
      %v4118 = vadd.f32 %v3546, %v4088
      %v4119 = vadd.f32 %v3547, %v4089
      %v4120 = vadd.f32 %v3548, %v4090
      %v4121 = vadd.f32 %v3549, %v4091
      %v4122 = vadd.f32 %v3550, %v4092
      %v4123 = vadd.f32 %v3551, %v4093
      %v4124 = vadd.f32 %v3552, %v4094
      %v4125 = vadd.f32 %v3553, %v4095
      %v4126 = vadd.f32 %v3554, %v4096
      %v4127 = vadd.f32 %v3555, %v4097
      %v4128 = vadd.f32 %v3556, %v4098
      %v4129 = vadd.f32 %v3557, %v4099
      %v4130 = vadd.f32 %v3558, %v4100
      %v4131 = vadd.f32 %v3559, %v4101
      %v4132 = vadd.f32 %v3560, %v4102
      %v4133 = vadd.f32 %v3561, %v4103
      %v4134 = vadd.f32 %v3562, %v4104
      %v4135 = vadd.f32 %v3563, %v4105
      %v4136 = vadd.f32 %v3564, %v4106
      %v4137 = vadd.f32 %v3565, %v4107
      %v4138 = vadd.f32 %v3566, %v4108
      %v4139 = vadd.f32 %v3567, %v4109
      %v4140 = vadd.f32 %v3568, %v4110
      %v4141 = vadd.f32 %v3569, %v4111
      %v4142 = vadd.f32 %v3570, %v4112
      %v4143 = vadd.f32 %v3571, %v4113
      %v4144 = vadd.f32 %v3572, %v4114
      %v4145 = vrcp.pop 10.0
      %v4146 = vmul.f32 %v4115, %v4145
      %v4147 = vmul.f32 %v4116, %v4145
      %v4148 = vmul.f32 %v4117, %v4145
      %v4149 = vmul.f32 %v4118, %v4145
      %v4150 = vmul.f32 %v4119, %v4145
      %v4151 = vmul.f32 %v4120, %v4145
      %v4152 = vmul.f32 %v4121, %v4145
      %v4153 = vmul.f32 %v4122, %v4145
      %v4154 = vmul.f32 %v4123, %v4145
      %v4155 = vmul.f32 %v4124, %v4145
      %v4156 = vmul.f32 %v4125, %v4145
      %v4157 = vmul.f32 %v4126, %v4145
      %v4158 = vmul.f32 %v4127, %v4145
      %v4159 = vmul.f32 %v4128, %v4145
      %v4160 = vmul.f32 %v4129, %v4145
      %v4161 = vmul.f32 %v4130, %v4145
      %v4162 = vmul.f32 %v4131, %v4145
      %v4163 = vmul.f32 %v4132, %v4145
      %v4164 = vmul.f32 %v4133, %v4145
      %v4165 = vmul.f32 %v4134, %v4145
      %v4166 = vmul.f32 %v4135, %v4145
      %v4167 = vmul.f32 %v4136, %v4145
      %v4168 = vmul.f32 %v4137, %v4145
      %v4169 = vmul.f32 %v4138, %v4145
      %v4170 = vmul.f32 %v4139, %v4145
      %v4171 = vmul.f32 %v4140, %v4145
      %v4172 = vmul.f32 %v4141, %v4145
      %v4173 = vmul.f32 %v4142, %v4145
      %v4174 = vmul.f32 %v4143, %v4145
      %v4175 = vmul.f32 %v4144, %v4145
      %4177 = vset.pattern.permute.xlu0 10
      %4178 = vperm.xlu0 %4177, %v4146
      %v4179 = vpop.permute.xlu0 %4178
      %4182 = vset.pattern.permute.xlu0 10
      %4183 = vperm.xlu0 %4182, %v4147
      %v4184 = vpop.permute.xlu0 %4183
      %4187 = vset.pattern.permute.xlu0 10
      %4188 = vperm.xlu0 %4187, %v4148
      %v4189 = vpop.permute.xlu0 %4188
      %4192 = vset.pattern.permute.xlu0 10
      %4193 = vperm.xlu0 %4192, %v4149
      %v4194 = vpop.permute.xlu0 %4193
      %4197 = vset.pattern.permute.xlu0 10
      %4198 = vperm.xlu0 %4197, %v4150
      %v4199 = vpop.permute.xlu0 %4198
      %4202 = vset.pattern.permute.xlu0 10
      %4203 = vperm.xlu0 %4202, %v4151
      %v4204 = vpop.permute.xlu0 %4203
      %4207 = vset.pattern.permute.xlu0 10
      %4208 = vperm.xlu0 %4207, %v4152
      %v4209 = vpop.permute.xlu0 %4208
      %4212 = vset.pattern.permute.xlu0 10
      %4213 = vperm.xlu0 %4212, %v4153
      %v4214 = vpop.permute.xlu0 %4213
      %4217 = vset.pattern.permute.xlu0 10
      %4218 = vperm.xlu0 %4217, %v4154
      %v4219 = vpop.permute.xlu0 %4218
      %4222 = vset.pattern.permute.xlu0 10
      %4223 = vperm.xlu0 %4222, %v4155
      %v4224 = vpop.permute.xlu0 %4223
      %4227 = vset.pattern.permute.xlu0 10
      %4228 = vperm.xlu0 %4227, %v4156
      %v4229 = vpop.permute.xlu0 %4228
      %4232 = vset.pattern.permute.xlu0 10
      %4233 = vperm.xlu0 %4232, %v4157
      %v4234 = vpop.permute.xlu0 %4233
      %4237 = vset.pattern.permute.xlu0 10
      %4238 = vperm.xlu0 %4237, %v4158
      %v4239 = vpop.permute.xlu0 %4238
      %4242 = vset.pattern.permute.xlu0 10
      %4243 = vperm.xlu0 %4242, %v4159
      %v4244 = vpop.permute.xlu0 %4243
      %4247 = vset.pattern.permute.xlu0 10
      %4248 = vperm.xlu0 %4247, %v4160
      %v4249 = vpop.permute.xlu0 %4248
      %4252 = vset.pattern.permute.xlu0 10
      %4253 = vperm.xlu0 %4252, %v4161
      %v4254 = vpop.permute.xlu0 %4253
      %4257 = vset.pattern.permute.xlu0 10
      %4258 = vperm.xlu0 %4257, %v4162
      %v4259 = vpop.permute.xlu0 %4258
      %4262 = vset.pattern.permute.xlu0 10
      %4263 = vperm.xlu0 %4262, %v4163
      %v4264 = vpop.permute.xlu0 %4263
      %4267 = vset.pattern.permute.xlu0 10
      %4268 = vperm.xlu0 %4267, %v4164
      %v4269 = vpop.permute.xlu0 %4268
      %4272 = vset.pattern.permute.xlu0 10
      %4273 = vperm.xlu0 %4272, %v4165
      %v4274 = vpop.permute.xlu0 %4273
      %4277 = vset.pattern.permute.xlu0 10
      %4278 = vperm.xlu0 %4277, %v4166
      %v4279 = vpop.permute.xlu0 %4278
      %4282 = vset.pattern.permute.xlu0 10
      %4283 = vperm.xlu0 %4282, %v4167
      %v4284 = vpop.permute.xlu0 %4283
      %4287 = vset.pattern.permute.xlu0 10
      %4288 = vperm.xlu0 %4287, %v4168
      %v4289 = vpop.permute.xlu0 %4288
      %4292 = vset.pattern.permute.xlu0 10
      %4293 = vperm.xlu0 %4292, %v4169
      %v4294 = vpop.permute.xlu0 %4293
      %4297 = vset.pattern.permute.xlu0 10
      %4298 = vperm.xlu0 %4297, %v4170
      %v4299 = vpop.permute.xlu0 %4298
      %4302 = vset.pattern.permute.xlu0 10
      %4303 = vperm.xlu0 %4302, %v4171
      %v4304 = vpop.permute.xlu0 %4303
      %4307 = vset.pattern.permute.xlu0 10
      %4308 = vperm.xlu0 %4307, %v4172
      %v4309 = vpop.permute.xlu0 %4308
      %4312 = vset.pattern.permute.xlu0 10
      %4313 = vperm.xlu0 %4312, %v4173
      %v4314 = vpop.permute.xlu0 %4313
      %4317 = vset.pattern.permute.xlu0 10
      %4318 = vperm.xlu0 %4317, %v4174
      %v4319 = vpop.permute.xlu0 %4318
      %4322 = vset.pattern.permute.xlu0 10
      %4323 = vperm.xlu0 %4322, %v4175
      %v4324 = vpop.permute.xlu0 %4323
      %v4326 = vsel %vm3090, %v4146, %v4179
      %v4327 = vsel %vm3090, %v4147, %v4184
      %v4328 = vsel %vm3090, %v4148, %v4189
      %v4329 = vsel %vm3090, %v4149, %v4194
      %v4330 = vsel %vm3090, %v4150, %v4199
      %v4331 = vsel %vm3090, %v4151, %v4204
      %v4332 = vsel %vm3090, %v4152, %v4209
      %v4333 = vsel %vm3090, %v4153, %v4214
      %v4334 = vsel %vm3090, %v4154, %v4219
      %v4335 = vsel %vm3090, %v4155, %v4224
      %v4336 = vsel %vm3090, %v4156, %v4229
      %v4337 = vsel %vm3090, %v4157, %v4234
      %v4338 = vsel %vm3090, %v4158, %v4239
      %v4339 = vsel %vm3090, %v4159, %v4244
      %v4340 = vsel %vm3090, %v4160, %v4249
      %v4341 = vsel %vm3090, %v4161, %v4254
      %v4342 = vsel %vm3090, %v4162, %v4259
      %v4343 = vsel %vm3090, %v4163, %v4264
      %v4344 = vsel %vm3090, %v4164, %v4269
      %v4345 = vsel %vm3090, %v4165, %v4274
      %v4346 = vsel %vm3090, %v4166, %v4279
      %v4347 = vsel %vm3090, %v4167, %v4284
      %v4348 = vsel %vm3090, %v4168, %v4289
      %v4349 = vsel %vm3090, %v4169, %v4294
      %v4350 = vsel %vm3090, %v4170, %v4299
      %v4351 = vsel %vm3090, %v4171, %v4304
      %v4352 = vsel %vm3090, %v4172, %v4309
      %v4353 = vsel %vm3090, %v4173, %v4314
      %v4354 = vsel %vm3090, %v4174, %v4319
      %v4355 = vsel %vm3090, %v4175, %v4324
      %4386 = vrot.lane.b32.xlu0 %v4326, 127
      %v4387 = vpop.permute.xlu0 %4386
      %4388 = vrot.lane.b32.xlu0 %v4327, 127
      %v4389 = vpop.permute.xlu0 %4388
      %4390 = vrot.lane.b32.xlu0 %v4328, 127
      %v4391 = vpop.permute.xlu0 %4390
      %4392 = vrot.lane.b32.xlu0 %v4329, 127
      %v4393 = vpop.permute.xlu0 %4392
      %4394 = vrot.lane.b32.xlu0 %v4330, 127
      %v4395 = vpop.permute.xlu0 %4394
      %4396 = vrot.lane.b32.xlu0 %v4331, 127
      %v4397 = vpop.permute.xlu0 %4396
      %4398 = vrot.lane.b32.xlu0 %v4332, 127
      %v4399 = vpop.permute.xlu0 %4398
      %4400 = vrot.lane.b32.xlu0 %v4333, 127
      %v4401 = vpop.permute.xlu0 %4400
      %4402 = vrot.lane.b32.xlu0 %v4334, 127
      %v4403 = vpop.permute.xlu0 %4402
      %4404 = vrot.lane.b32.xlu0 %v4335, 127
      %v4405 = vpop.permute.xlu0 %4404
      %4406 = vrot.lane.b32.xlu0 %v4336, 127
      %v4407 = vpop.permute.xlu0 %4406
      %4408 = vrot.lane.b32.xlu0 %v4337, 127
      %v4409 = vpop.permute.xlu0 %4408
      %4410 = vrot.lane.b32.xlu0 %v4338, 127
      %v4411 = vpop.permute.xlu0 %4410
      %4412 = vrot.lane.b32.xlu0 %v4339, 127
      %v4413 = vpop.permute.xlu0 %4412
      %4414 = vrot.lane.b32.xlu0 %v4340, 127
      %v4415 = vpop.permute.xlu0 %4414
      %4416 = vrot.lane.b32.xlu0 %v4341, 127
      %v4417 = vpop.permute.xlu0 %4416
      %4418 = vrot.lane.b32.xlu0 %v4342, 127
      %v4419 = vpop.permute.xlu0 %4418
      %4420 = vrot.lane.b32.xlu0 %v4343, 127
      %v4421 = vpop.permute.xlu0 %4420
      %4422 = vrot.lane.b32.xlu0 %v4344, 127
      %v4423 = vpop.permute.xlu0 %4422
      %4424 = vrot.lane.b32.xlu0 %v4345, 127
      %v4425 = vpop.permute.xlu0 %4424
      %4426 = vrot.lane.b32.xlu0 %v4346, 127
      %v4427 = vpop.permute.xlu0 %4426
      %4428 = vrot.lane.b32.xlu0 %v4347, 127
      %v4429 = vpop.permute.xlu0 %4428
      %4430 = vrot.lane.b32.xlu0 %v4348, 127
      %v4431 = vpop.permute.xlu0 %4430
      %4432 = vrot.lane.b32.xlu0 %v4349, 127
      %v4433 = vpop.permute.xlu0 %4432
      %4434 = vrot.lane.b32.xlu0 %v4350, 127
      %v4435 = vpop.permute.xlu0 %4434
      %4436 = vrot.lane.b32.xlu0 %v4351, 127
      %v4437 = vpop.permute.xlu0 %4436
      %4438 = vrot.lane.b32.xlu0 %v4352, 127
      %v4439 = vpop.permute.xlu0 %4438
      %4440 = vrot.lane.b32.xlu0 %v4353, 127
      %v4441 = vpop.permute.xlu0 %4440
      %4442 = vrot.lane.b32.xlu0 %v4354, 127
      %v4443 = vpop.permute.xlu0 %4442
      %4444 = vrot.lane.b32.xlu0 %v4355, 127
      %v4445 = vpop.permute.xlu0 %4444
      %v4476 = vsel %vm3391, %v4387, %v4326
      %v4477 = vsel %vm3391, %v4389, %v4327
      %v4478 = vsel %vm3391, %v4391, %v4328
      %v4479 = vsel %vm3391, %v4393, %v4329
      %v4480 = vsel %vm3391, %v4395, %v4330
      %v4481 = vsel %vm3391, %v4397, %v4331
      %v4482 = vsel %vm3391, %v4399, %v4332
      %v4483 = vsel %vm3391, %v4401, %v4333
      %v4484 = vsel %vm3391, %v4403, %v4334
      %v4485 = vsel %vm3391, %v4405, %v4335
      %v4486 = vsel %vm3391, %v4407, %v4336
      %v4487 = vsel %vm3391, %v4409, %v4337
      %v4488 = vsel %vm3391, %v4411, %v4338
      %v4489 = vsel %vm3391, %v4413, %v4339
      %v4490 = vsel %vm3391, %v4415, %v4340
      %v4491 = vsel %vm3391, %v4417, %v4341
      %v4492 = vsel %vm3391, %v4419, %v4342
      %v4493 = vsel %vm3391, %v4421, %v4343
      %v4494 = vsel %vm3391, %v4423, %v4344
      %v4495 = vsel %vm3391, %v4425, %v4345
      %v4496 = vsel %vm3391, %v4427, %v4346
      %v4497 = vsel %vm3391, %v4429, %v4347
      %v4498 = vsel %vm3391, %v4431, %v4348
      %v4499 = vsel %vm3391, %v4433, %v4349
      %v4500 = vsel %vm3391, %v4435, %v4350
      %v4501 = vsel %vm3391, %v4437, %v4351
      %v4502 = vsel %vm3391, %v4439, %v4352
      %v4503 = vsel %vm3391, %v4441, %v4353
      %v4504 = vsel %vm3391, %v4443, %v4354
      %v4505 = vsel %vm3391, %v4445, %v4355
      %4506 = vrot.lane.b32.xlu0 %v4326, 1
      %v4507 = vpop.permute.xlu0 %4506
      %4508 = vrot.lane.b32.xlu0 %v4327, 1
      %v4509 = vpop.permute.xlu0 %4508
      %4510 = vrot.lane.b32.xlu0 %v4328, 1
      %v4511 = vpop.permute.xlu0 %4510
      %4512 = vrot.lane.b32.xlu0 %v4329, 1
      %v4513 = vpop.permute.xlu0 %4512
      %4514 = vrot.lane.b32.xlu0 %v4330, 1
      %v4515 = vpop.permute.xlu0 %4514
      %4516 = vrot.lane.b32.xlu0 %v4331, 1
      %v4517 = vpop.permute.xlu0 %4516
      %4518 = vrot.lane.b32.xlu0 %v4332, 1
      %v4519 = vpop.permute.xlu0 %4518
      %4520 = vrot.lane.b32.xlu0 %v4333, 1
      %v4521 = vpop.permute.xlu0 %4520
      %4522 = vrot.lane.b32.xlu0 %v4334, 1
      %v4523 = vpop.permute.xlu0 %4522
      %4524 = vrot.lane.b32.xlu0 %v4335, 1
      %v4525 = vpop.permute.xlu0 %4524
      %4526 = vrot.lane.b32.xlu0 %v4336, 1
      %v4527 = vpop.permute.xlu0 %4526
      %4528 = vrot.lane.b32.xlu0 %v4337, 1
      %v4529 = vpop.permute.xlu0 %4528
      %4530 = vrot.lane.b32.xlu0 %v4338, 1
      %v4531 = vpop.permute.xlu0 %4530
      %4532 = vrot.lane.b32.xlu0 %v4339, 1
      %v4533 = vpop.permute.xlu0 %4532
      %4534 = vrot.lane.b32.xlu0 %v4340, 1
      %v4535 = vpop.permute.xlu0 %4534
      %4536 = vrot.lane.b32.xlu0 %v4341, 1
      %v4537 = vpop.permute.xlu0 %4536
      %4538 = vrot.lane.b32.xlu0 %v4342, 1
      %v4539 = vpop.permute.xlu0 %4538
      %4540 = vrot.lane.b32.xlu0 %v4343, 1
      %v4541 = vpop.permute.xlu0 %4540
      %4542 = vrot.lane.b32.xlu0 %v4344, 1
      %v4543 = vpop.permute.xlu0 %4542
      %4544 = vrot.lane.b32.xlu0 %v4345, 1
      %v4545 = vpop.permute.xlu0 %4544
      %4546 = vrot.lane.b32.xlu0 %v4346, 1
      %v4547 = vpop.permute.xlu0 %4546
      %4548 = vrot.lane.b32.xlu0 %v4347, 1
      %v4549 = vpop.permute.xlu0 %4548
      %4550 = vrot.lane.b32.xlu0 %v4348, 1
      %v4551 = vpop.permute.xlu0 %4550
      %4552 = vrot.lane.b32.xlu0 %v4349, 1
      %v4553 = vpop.permute.xlu0 %4552
      %4554 = vrot.lane.b32.xlu0 %v4350, 1
      %v4555 = vpop.permute.xlu0 %4554
      %4556 = vrot.lane.b32.xlu0 %v4351, 1
      %v4557 = vpop.permute.xlu0 %4556
      %4558 = vrot.lane.b32.xlu0 %v4352, 1
      %v4559 = vpop.permute.xlu0 %4558
      %4560 = vrot.lane.b32.xlu0 %v4353, 1
      %v4561 = vpop.permute.xlu0 %4560
      %4562 = vrot.lane.b32.xlu0 %v4354, 1
      %v4563 = vpop.permute.xlu0 %4562
      %4564 = vrot.lane.b32.xlu0 %v4355, 1
      %v4565 = vpop.permute.xlu0 %4564
      %v4596 = vsel %vm3512, %v4326, %v4507
      %v4597 = vsel %vm3512, %v4327, %v4509
      %v4598 = vsel %vm3512, %v4328, %v4511
      %v4599 = vsel %vm3512, %v4329, %v4513
      %v4600 = vsel %vm3512, %v4330, %v4515
      %v4601 = vsel %vm3512, %v4331, %v4517
      %v4602 = vsel %vm3512, %v4332, %v4519
      %v4603 = vsel %vm3512, %v4333, %v4521
      %v4604 = vsel %vm3512, %v4334, %v4523
      %v4605 = vsel %vm3512, %v4335, %v4525
      %v4606 = vsel %vm3512, %v4336, %v4527
      %v4607 = vsel %vm3512, %v4337, %v4529
      %v4608 = vsel %vm3512, %v4338, %v4531
      %v4609 = vsel %vm3512, %v4339, %v4533
      %v4610 = vsel %vm3512, %v4340, %v4535
      %v4611 = vsel %vm3512, %v4341, %v4537
      %v4612 = vsel %vm3512, %v4342, %v4539
      %v4613 = vsel %vm3512, %v4343, %v4541
      %v4614 = vsel %vm3512, %v4344, %v4543
      %v4615 = vsel %vm3512, %v4345, %v4545
      %v4616 = vsel %vm3512, %v4346, %v4547
      %v4617 = vsel %vm3512, %v4347, %v4549
      %v4618 = vsel %vm3512, %v4348, %v4551
      %v4619 = vsel %vm3512, %v4349, %v4553
      %v4620 = vsel %vm3512, %v4350, %v4555
      %v4621 = vsel %vm3512, %v4351, %v4557
      %v4622 = vsel %vm3512, %v4352, %v4559
      %v4623 = vsel %vm3512, %v4353, %v4561
      %v4624 = vsel %vm3512, %v4354, %v4563
      %v4625 = vsel %vm3512, %v4355, %v4565
      %v4626 = vsub.f32 %v4476, %v4596
      %v4627 = vsub.f32 %v4477, %v4597
      %v4628 = vsub.f32 %v4478, %v4598
      %v4629 = vsub.f32 %v4479, %v4599
      %v4630 = vsub.f32 %v4480, %v4600
      %v4631 = vsub.f32 %v4481, %v4601
      %v4632 = vsub.f32 %v4482, %v4602
      %v4633 = vsub.f32 %v4483, %v4603
      %v4634 = vsub.f32 %v4484, %v4604
      %v4635 = vsub.f32 %v4485, %v4605
      %v4636 = vsub.f32 %v4486, %v4606
      %v4637 = vsub.f32 %v4487, %v4607
      %v4638 = vsub.f32 %v4488, %v4608
      %v4639 = vsub.f32 %v4489, %v4609
      %v4640 = vsub.f32 %v4490, %v4610
      %v4641 = vsub.f32 %v4491, %v4611
      %v4642 = vsub.f32 %v4492, %v4612
      %v4643 = vsub.f32 %v4493, %v4613
      %v4644 = vsub.f32 %v4494, %v4614
      %v4645 = vsub.f32 %v4495, %v4615
      %v4646 = vsub.f32 %v4496, %v4616
      %v4647 = vsub.f32 %v4497, %v4617
      %v4648 = vsub.f32 %v4498, %v4618
      %v4649 = vsub.f32 %v4499, %v4619
      %v4650 = vsub.f32 %v4500, %v4620
      %v4651 = vsub.f32 %v4501, %v4621
      %v4652 = vsub.f32 %v4502, %v4622
      %v4653 = vsub.f32 %v4503, %v4623
      %v4654 = vsub.f32 %v4504, %v4624
      %v4655 = vsub.f32 %v4505, %v4625
      %4656 = vset.pattern.permute.xlu0 15
      %4657 = vperm.xlu0 %4656, %v4326
      %v4658 = vpop.permute.xlu0 %4657
      %4660 = vset.pattern.permute.xlu0 15
      %4661 = vperm.xlu0 %4660, %v4327
      %v4662 = vpop.permute.xlu0 %4661
      %4664 = vset.pattern.permute.xlu0 15
      %4665 = vperm.xlu0 %4664, %v4328
      %v4666 = vpop.permute.xlu0 %4665
      %4668 = vset.pattern.permute.xlu0 15
      %4669 = vperm.xlu0 %4668, %v4329
      %v4670 = vpop.permute.xlu0 %4669
      %4672 = vset.pattern.permute.xlu0 15
      %4673 = vperm.xlu0 %4672, %v4330
      %v4674 = vpop.permute.xlu0 %4673
      %4676 = vset.pattern.permute.xlu0 15
      %4677 = vperm.xlu0 %4676, %v4331
      %v4678 = vpop.permute.xlu0 %4677
      %4680 = vset.pattern.permute.xlu0 15
      %4681 = vperm.xlu0 %4680, %v4332
      %v4682 = vpop.permute.xlu0 %4681
      %4684 = vset.pattern.permute.xlu0 15
      %4685 = vperm.xlu0 %4684, %v4333
      %v4686 = vpop.permute.xlu0 %4685
      %4688 = vset.pattern.permute.xlu0 15
      %4689 = vperm.xlu0 %4688, %v4334
      %v4690 = vpop.permute.xlu0 %4689
      %4692 = vset.pattern.permute.xlu0 15
      %4693 = vperm.xlu0 %4692, %v4335
      %v4694 = vpop.permute.xlu0 %4693
      %4696 = vset.pattern.permute.xlu0 15
      %4697 = vperm.xlu0 %4696, %v4336
      %v4698 = vpop.permute.xlu0 %4697
      %4700 = vset.pattern.permute.xlu0 15
      %4701 = vperm.xlu0 %4700, %v4337
      %v4702 = vpop.permute.xlu0 %4701
      %4704 = vset.pattern.permute.xlu0 15
      %4705 = vperm.xlu0 %4704, %v4338
      %v4706 = vpop.permute.xlu0 %4705
      %4708 = vset.pattern.permute.xlu0 15
      %4709 = vperm.xlu0 %4708, %v4339
      %v4710 = vpop.permute.xlu0 %4709
      %4712 = vset.pattern.permute.xlu0 15
      %4713 = vperm.xlu0 %4712, %v4340
      %v4714 = vpop.permute.xlu0 %4713
      %4716 = vset.pattern.permute.xlu0 15
      %4717 = vperm.xlu0 %4716, %v4341
      %v4718 = vpop.permute.xlu0 %4717
      %4720 = vset.pattern.permute.xlu0 15
      %4721 = vperm.xlu0 %4720, %v4342
      %v4722 = vpop.permute.xlu0 %4721
      %4724 = vset.pattern.permute.xlu0 15
      %4725 = vperm.xlu0 %4724, %v4343
      %v4726 = vpop.permute.xlu0 %4725
      %4728 = vset.pattern.permute.xlu0 15
      %4729 = vperm.xlu0 %4728, %v4344
      %v4730 = vpop.permute.xlu0 %4729
      %4732 = vset.pattern.permute.xlu0 15
      %4733 = vperm.xlu0 %4732, %v4345
      %v4734 = vpop.permute.xlu0 %4733
      %4736 = vset.pattern.permute.xlu0 15
      %4737 = vperm.xlu0 %4736, %v4346
      %v4738 = vpop.permute.xlu0 %4737
      %4740 = vset.pattern.permute.xlu0 15
      %4741 = vperm.xlu0 %4740, %v4347
      %v4742 = vpop.permute.xlu0 %4741
      %4744 = vset.pattern.permute.xlu0 15
      %4745 = vperm.xlu0 %4744, %v4348
      %v4746 = vpop.permute.xlu0 %4745
      %4748 = vset.pattern.permute.xlu0 15
      %4749 = vperm.xlu0 %4748, %v4349
      %v4750 = vpop.permute.xlu0 %4749
      %4752 = vset.pattern.permute.xlu0 15
      %4753 = vperm.xlu0 %4752, %v4350
      %v4754 = vpop.permute.xlu0 %4753
      %4756 = vset.pattern.permute.xlu0 15
      %4757 = vperm.xlu0 %4756, %v4351
      %v4758 = vpop.permute.xlu0 %4757
      %4760 = vset.pattern.permute.xlu0 15
      %4761 = vperm.xlu0 %4760, %v4352
      %v4762 = vpop.permute.xlu0 %4761
      %4764 = vset.pattern.permute.xlu0 15
      %4765 = vperm.xlu0 %4764, %v4353
      %v4766 = vpop.permute.xlu0 %4765
      %4768 = vset.pattern.permute.xlu0 15
      %4769 = vperm.xlu0 %4768, %v4354
      %v4770 = vpop.permute.xlu0 %4769
      %4772 = vset.pattern.permute.xlu0 15
      %4773 = vperm.xlu0 %4772, %v4355
      %v4774 = vpop.permute.xlu0 %4773
      %4776 = vrot.lane.b32.xlu0 %v4326, 126
      %v4777 = vpop.permute.xlu0 %4776
      %4778 = vrot.lane.b32.xlu0 %v4327, 126
      %v4779 = vpop.permute.xlu0 %4778
      %4780 = vrot.lane.b32.xlu0 %v4328, 126
      %v4781 = vpop.permute.xlu0 %4780
      %4782 = vrot.lane.b32.xlu0 %v4329, 126
      %v4783 = vpop.permute.xlu0 %4782
      %4784 = vrot.lane.b32.xlu0 %v4330, 126
      %v4785 = vpop.permute.xlu0 %4784
      %4786 = vrot.lane.b32.xlu0 %v4331, 126
      %v4787 = vpop.permute.xlu0 %4786
      %4788 = vrot.lane.b32.xlu0 %v4332, 126
      %v4789 = vpop.permute.xlu0 %4788
      %4790 = vrot.lane.b32.xlu0 %v4333, 126
      %v4791 = vpop.permute.xlu0 %4790
      %4792 = vrot.lane.b32.xlu0 %v4334, 126
      %v4793 = vpop.permute.xlu0 %4792
      %4794 = vrot.lane.b32.xlu0 %v4335, 126
      %v4795 = vpop.permute.xlu0 %4794
      %4796 = vrot.lane.b32.xlu0 %v4336, 126
      %v4797 = vpop.permute.xlu0 %4796
      %4798 = vrot.lane.b32.xlu0 %v4337, 126
      %v4799 = vpop.permute.xlu0 %4798
      %4800 = vrot.lane.b32.xlu0 %v4338, 126
      %v4801 = vpop.permute.xlu0 %4800
      %4802 = vrot.lane.b32.xlu0 %v4339, 126
      %v4803 = vpop.permute.xlu0 %4802
      %4804 = vrot.lane.b32.xlu0 %v4340, 126
      %v4805 = vpop.permute.xlu0 %4804
      %4806 = vrot.lane.b32.xlu0 %v4341, 126
      %v4807 = vpop.permute.xlu0 %4806
      %4808 = vrot.lane.b32.xlu0 %v4342, 126
      %v4809 = vpop.permute.xlu0 %4808
      %4810 = vrot.lane.b32.xlu0 %v4343, 126
      %v4811 = vpop.permute.xlu0 %4810
      %4812 = vrot.lane.b32.xlu0 %v4344, 126
      %v4813 = vpop.permute.xlu0 %4812
      %4814 = vrot.lane.b32.xlu0 %v4345, 126
      %v4815 = vpop.permute.xlu0 %4814
      %4816 = vrot.lane.b32.xlu0 %v4346, 126
      %v4817 = vpop.permute.xlu0 %4816
      %4818 = vrot.lane.b32.xlu0 %v4347, 126
      %v4819 = vpop.permute.xlu0 %4818
      %4820 = vrot.lane.b32.xlu0 %v4348, 126
      %v4821 = vpop.permute.xlu0 %4820
      %4822 = vrot.lane.b32.xlu0 %v4349, 126
      %v4823 = vpop.permute.xlu0 %4822
      %4824 = vrot.lane.b32.xlu0 %v4350, 126
      %v4825 = vpop.permute.xlu0 %4824
      %4826 = vrot.lane.b32.xlu0 %v4351, 126
      %v4827 = vpop.permute.xlu0 %4826
      %4828 = vrot.lane.b32.xlu0 %v4352, 126
      %v4829 = vpop.permute.xlu0 %4828
      %4830 = vrot.lane.b32.xlu0 %v4353, 126
      %v4831 = vpop.permute.xlu0 %4830
      %4832 = vrot.lane.b32.xlu0 %v4354, 126
      %v4833 = vpop.permute.xlu0 %4832
      %4834 = vrot.lane.b32.xlu0 %v4355, 126
      %v4835 = vpop.permute.xlu0 %4834
      %v4866 = vsel %vm3783, %v4777, %v4658
      %v4867 = vsel %vm3783, %v4779, %v4662
      %v4868 = vsel %vm3783, %v4781, %v4666
      %v4869 = vsel %vm3783, %v4783, %v4670
      %v4870 = vsel %vm3783, %v4785, %v4674
      %v4871 = vsel %vm3783, %v4787, %v4678
      %v4872 = vsel %vm3783, %v4789, %v4682
      %v4873 = vsel %vm3783, %v4791, %v4686
      %v4874 = vsel %vm3783, %v4793, %v4690
      %v4875 = vsel %vm3783, %v4795, %v4694
      %v4876 = vsel %vm3783, %v4797, %v4698
      %v4877 = vsel %vm3783, %v4799, %v4702
      %v4878 = vsel %vm3783, %v4801, %v4706
      %v4879 = vsel %vm3783, %v4803, %v4710
      %v4880 = vsel %vm3783, %v4805, %v4714
      %v4881 = vsel %vm3783, %v4807, %v4718
      %v4882 = vsel %vm3783, %v4809, %v4722
      %v4883 = vsel %vm3783, %v4811, %v4726
      %v4884 = vsel %vm3783, %v4813, %v4730
      %v4885 = vsel %vm3783, %v4815, %v4734
      %v4886 = vsel %vm3783, %v4817, %v4738
      %v4887 = vsel %vm3783, %v4819, %v4742
      %v4888 = vsel %vm3783, %v4821, %v4746
      %v4889 = vsel %vm3783, %v4823, %v4750
      %v4890 = vsel %vm3783, %v4825, %v4754
      %v4891 = vsel %vm3783, %v4827, %v4758
      %v4892 = vsel %vm3783, %v4829, %v4762
      %v4893 = vsel %vm3783, %v4831, %v4766
      %v4894 = vsel %vm3783, %v4833, %v4770
      %v4895 = vsel %vm3783, %v4835, %v4774
      %4896 = vset.pattern.permute.xlu0 0
      %4897 = vperm.xlu0 %4896, %v4326
      %v4898 = vpop.permute.xlu0 %4897
      %4900 = vset.pattern.permute.xlu0 0
      %4901 = vperm.xlu0 %4900, %v4327
      %v4902 = vpop.permute.xlu0 %4901
      %4904 = vset.pattern.permute.xlu0 0
      %4905 = vperm.xlu0 %4904, %v4328
      %v4906 = vpop.permute.xlu0 %4905
      %4908 = vset.pattern.permute.xlu0 0
      %4909 = vperm.xlu0 %4908, %v4329
      %v4910 = vpop.permute.xlu0 %4909
      %4912 = vset.pattern.permute.xlu0 0
      %4913 = vperm.xlu0 %4912, %v4330
      %v4914 = vpop.permute.xlu0 %4913
      %4916 = vset.pattern.permute.xlu0 0
      %4917 = vperm.xlu0 %4916, %v4331
      %v4918 = vpop.permute.xlu0 %4917
      %4920 = vset.pattern.permute.xlu0 0
      %4921 = vperm.xlu0 %4920, %v4332
      %v4922 = vpop.permute.xlu0 %4921
      %4924 = vset.pattern.permute.xlu0 0
      %4925 = vperm.xlu0 %4924, %v4333
      %v4926 = vpop.permute.xlu0 %4925
      %4928 = vset.pattern.permute.xlu0 0
      %4929 = vperm.xlu0 %4928, %v4334
      %v4930 = vpop.permute.xlu0 %4929
      %4932 = vset.pattern.permute.xlu0 0
      %4933 = vperm.xlu0 %4932, %v4335
      %v4934 = vpop.permute.xlu0 %4933
      %4936 = vset.pattern.permute.xlu0 0
      %4937 = vperm.xlu0 %4936, %v4336
      %v4938 = vpop.permute.xlu0 %4937
      %4940 = vset.pattern.permute.xlu0 0
      %4941 = vperm.xlu0 %4940, %v4337
      %v4942 = vpop.permute.xlu0 %4941
      %4944 = vset.pattern.permute.xlu0 0
      %4945 = vperm.xlu0 %4944, %v4338
      %v4946 = vpop.permute.xlu0 %4945
      %4948 = vset.pattern.permute.xlu0 0
      %4949 = vperm.xlu0 %4948, %v4339
      %v4950 = vpop.permute.xlu0 %4949
      %4952 = vset.pattern.permute.xlu0 0
      %4953 = vperm.xlu0 %4952, %v4340
      %v4954 = vpop.permute.xlu0 %4953
      %4956 = vset.pattern.permute.xlu0 0
      %4957 = vperm.xlu0 %4956, %v4341
      %v4958 = vpop.permute.xlu0 %4957
      %4960 = vset.pattern.permute.xlu0 0
      %4961 = vperm.xlu0 %4960, %v4342
      %v4962 = vpop.permute.xlu0 %4961
      %4964 = vset.pattern.permute.xlu0 0
      %4965 = vperm.xlu0 %4964, %v4343
      %v4966 = vpop.permute.xlu0 %4965
      %4968 = vset.pattern.permute.xlu0 0
      %4969 = vperm.xlu0 %4968, %v4344
      %v4970 = vpop.permute.xlu0 %4969
      %4972 = vset.pattern.permute.xlu0 0
      %4973 = vperm.xlu0 %4972, %v4345
      %v4974 = vpop.permute.xlu0 %4973
      %4976 = vset.pattern.permute.xlu0 0
      %4977 = vperm.xlu0 %4976, %v4346
      %v4978 = vpop.permute.xlu0 %4977
      %4980 = vset.pattern.permute.xlu0 0
      %4981 = vperm.xlu0 %4980, %v4347
      %v4982 = vpop.permute.xlu0 %4981
      %4984 = vset.pattern.permute.xlu0 0
      %4985 = vperm.xlu0 %4984, %v4348
      %v4986 = vpop.permute.xlu0 %4985
      %4988 = vset.pattern.permute.xlu0 0
      %4989 = vperm.xlu0 %4988, %v4349
      %v4990 = vpop.permute.xlu0 %4989
      %4992 = vset.pattern.permute.xlu0 0
      %4993 = vperm.xlu0 %4992, %v4350
      %v4994 = vpop.permute.xlu0 %4993
      %4996 = vset.pattern.permute.xlu0 0
      %4997 = vperm.xlu0 %4996, %v4351
      %v4998 = vpop.permute.xlu0 %4997
      %5000 = vset.pattern.permute.xlu0 0
      %5001 = vperm.xlu0 %5000, %v4352
      %v5002 = vpop.permute.xlu0 %5001
      %5004 = vset.pattern.permute.xlu0 0
      %5005 = vperm.xlu0 %5004, %v4353
      %v5006 = vpop.permute.xlu0 %5005
      %5008 = vset.pattern.permute.xlu0 0
      %5009 = vperm.xlu0 %5008, %v4354
      %v5010 = vpop.permute.xlu0 %5009
      %5012 = vset.pattern.permute.xlu0 0
      %5013 = vperm.xlu0 %5012, %v4355
      %v5014 = vpop.permute.xlu0 %5013
      %5016 = vrot.lane.b32.xlu0 %v4326, 2
      %v5017 = vpop.permute.xlu0 %5016
      %5018 = vrot.lane.b32.xlu0 %v4327, 2
      %v5019 = vpop.permute.xlu0 %5018
      %5020 = vrot.lane.b32.xlu0 %v4328, 2
      %v5021 = vpop.permute.xlu0 %5020
      %5022 = vrot.lane.b32.xlu0 %v4329, 2
      %v5023 = vpop.permute.xlu0 %5022
      %5024 = vrot.lane.b32.xlu0 %v4330, 2
      %v5025 = vpop.permute.xlu0 %5024
      %5026 = vrot.lane.b32.xlu0 %v4331, 2
      %v5027 = vpop.permute.xlu0 %5026
      %5028 = vrot.lane.b32.xlu0 %v4332, 2
      %v5029 = vpop.permute.xlu0 %5028
      %5030 = vrot.lane.b32.xlu0 %v4333, 2
      %v5031 = vpop.permute.xlu0 %5030
      %5032 = vrot.lane.b32.xlu0 %v4334, 2
      %v5033 = vpop.permute.xlu0 %5032
      %5034 = vrot.lane.b32.xlu0 %v4335, 2
      %v5035 = vpop.permute.xlu0 %5034
      %5036 = vrot.lane.b32.xlu0 %v4336, 2
      %v5037 = vpop.permute.xlu0 %5036
      %5038 = vrot.lane.b32.xlu0 %v4337, 2
      %v5039 = vpop.permute.xlu0 %5038
      %5040 = vrot.lane.b32.xlu0 %v4338, 2
      %v5041 = vpop.permute.xlu0 %5040
      %5042 = vrot.lane.b32.xlu0 %v4339, 2
      %v5043 = vpop.permute.xlu0 %5042
      %5044 = vrot.lane.b32.xlu0 %v4340, 2
      %v5045 = vpop.permute.xlu0 %5044
      %5046 = vrot.lane.b32.xlu0 %v4341, 2
      %v5047 = vpop.permute.xlu0 %5046
      %5048 = vrot.lane.b32.xlu0 %v4342, 2
      %v5049 = vpop.permute.xlu0 %5048
      %5050 = vrot.lane.b32.xlu0 %v4343, 2
      %v5051 = vpop.permute.xlu0 %5050
      %5052 = vrot.lane.b32.xlu0 %v4344, 2
      %v5053 = vpop.permute.xlu0 %5052
      %5054 = vrot.lane.b32.xlu0 %v4345, 2
      %v5055 = vpop.permute.xlu0 %5054
      %5056 = vrot.lane.b32.xlu0 %v4346, 2
      %v5057 = vpop.permute.xlu0 %5056
      %5058 = vrot.lane.b32.xlu0 %v4347, 2
      %v5059 = vpop.permute.xlu0 %5058
      %5060 = vrot.lane.b32.xlu0 %v4348, 2
      %v5061 = vpop.permute.xlu0 %5060
      %5062 = vrot.lane.b32.xlu0 %v4349, 2
      %v5063 = vpop.permute.xlu0 %5062
      %5064 = vrot.lane.b32.xlu0 %v4350, 2
      %v5065 = vpop.permute.xlu0 %5064
      %5066 = vrot.lane.b32.xlu0 %v4351, 2
      %v5067 = vpop.permute.xlu0 %5066
      %5068 = vrot.lane.b32.xlu0 %v4352, 2
      %v5069 = vpop.permute.xlu0 %5068
      %5070 = vrot.lane.b32.xlu0 %v4353, 2
      %v5071 = vpop.permute.xlu0 %5070
      %5072 = vrot.lane.b32.xlu0 %v4354, 2
      %v5073 = vpop.permute.xlu0 %5072
      %5074 = vrot.lane.b32.xlu0 %v4355, 2
      %v5075 = vpop.permute.xlu0 %5074
      %v5106 = vsel %vm4024, %v4898, %v5017
      %v5107 = vsel %vm4024, %v4902, %v5019
      %v5108 = vsel %vm4024, %v4906, %v5021
      %v5109 = vsel %vm4024, %v4910, %v5023
      %v5110 = vsel %vm4024, %v4914, %v5025
      %v5111 = vsel %vm4024, %v4918, %v5027
      %v5112 = vsel %vm4024, %v4922, %v5029
      %v5113 = vsel %vm4024, %v4926, %v5031
      %v5114 = vsel %vm4024, %v4930, %v5033
      %v5115 = vsel %vm4024, %v4934, %v5035
      %v5116 = vsel %vm4024, %v4938, %v5037
      %v5117 = vsel %vm4024, %v4942, %v5039
      %v5118 = vsel %vm4024, %v4946, %v5041
      %v5119 = vsel %vm4024, %v4950, %v5043
      %v5120 = vsel %vm4024, %v4954, %v5045
      %v5121 = vsel %vm4024, %v4958, %v5047
      %v5122 = vsel %vm4024, %v4962, %v5049
      %v5123 = vsel %vm4024, %v4966, %v5051
      %v5124 = vsel %vm4024, %v4970, %v5053
      %v5125 = vsel %vm4024, %v4974, %v5055
      %v5126 = vsel %vm4024, %v4978, %v5057
      %v5127 = vsel %vm4024, %v4982, %v5059
      %v5128 = vsel %vm4024, %v4986, %v5061
      %v5129 = vsel %vm4024, %v4990, %v5063
      %v5130 = vsel %vm4024, %v4994, %v5065
      %v5131 = vsel %vm4024, %v4998, %v5067
      %v5132 = vsel %vm4024, %v5002, %v5069
      %v5133 = vsel %vm4024, %v5006, %v5071
      %v5134 = vsel %vm4024, %v5010, %v5073
      %v5135 = vsel %vm4024, %v5014, %v5075
      %v5136 = vsub.f32 %v4866, %v5106
      %v5137 = vsub.f32 %v4867, %v5107
      %v5138 = vsub.f32 %v4868, %v5108
      %v5139 = vsub.f32 %v4869, %v5109
      %v5140 = vsub.f32 %v4870, %v5110
      %v5141 = vsub.f32 %v4871, %v5111
      %v5142 = vsub.f32 %v4872, %v5112
      %v5143 = vsub.f32 %v4873, %v5113
      %v5144 = vsub.f32 %v4874, %v5114
      %v5145 = vsub.f32 %v4875, %v5115
      %v5146 = vsub.f32 %v4876, %v5116
      %v5147 = vsub.f32 %v4877, %v5117
      %v5148 = vsub.f32 %v4878, %v5118
      %v5149 = vsub.f32 %v4879, %v5119
      %v5150 = vsub.f32 %v4880, %v5120
      %v5151 = vsub.f32 %v4881, %v5121
      %v5152 = vsub.f32 %v4882, %v5122
      %v5153 = vsub.f32 %v4883, %v5123
      %v5154 = vsub.f32 %v4884, %v5124
      %v5155 = vsub.f32 %v4885, %v5125
      %v5156 = vsub.f32 %v4886, %v5126
      %v5157 = vsub.f32 %v4887, %v5127
      %v5158 = vsub.f32 %v4888, %v5128
      %v5159 = vsub.f32 %v4889, %v5129
      %v5160 = vsub.f32 %v4890, %v5130
      %v5161 = vsub.f32 %v4891, %v5131
      %v5162 = vsub.f32 %v4892, %v5132
      %v5163 = vsub.f32 %v4893, %v5133
      %v5164 = vsub.f32 %v4894, %v5134
      %v5165 = vsub.f32 %v4895, %v5135
      %v5166 = vmul.f32 %v5136, 2.0
      %v5167 = vmul.f32 %v5137, 2.0
      %v5168 = vmul.f32 %v5138, 2.0
      %v5169 = vmul.f32 %v5139, 2.0
      %v5170 = vmul.f32 %v5140, 2.0
      %v5171 = vmul.f32 %v5141, 2.0
      %v5172 = vmul.f32 %v5142, 2.0
      %v5173 = vmul.f32 %v5143, 2.0
      %v5174 = vmul.f32 %v5144, 2.0
      %v5175 = vmul.f32 %v5145, 2.0
      %v5176 = vmul.f32 %v5146, 2.0
      %v5177 = vmul.f32 %v5147, 2.0
      %v5178 = vmul.f32 %v5148, 2.0
      %v5179 = vmul.f32 %v5149, 2.0
      %v5180 = vmul.f32 %v5150, 2.0
      %v5181 = vmul.f32 %v5151, 2.0
      %v5182 = vmul.f32 %v5152, 2.0
      %v5183 = vmul.f32 %v5153, 2.0
      %v5184 = vmul.f32 %v5154, 2.0
      %v5185 = vmul.f32 %v5155, 2.0
      %v5186 = vmul.f32 %v5156, 2.0
      %v5187 = vmul.f32 %v5157, 2.0
      %v5188 = vmul.f32 %v5158, 2.0
      %v5189 = vmul.f32 %v5159, 2.0
      %v5190 = vmul.f32 %v5160, 2.0
      %v5191 = vmul.f32 %v5161, 2.0
      %v5192 = vmul.f32 %v5162, 2.0
      %v5193 = vmul.f32 %v5163, 2.0
      %v5194 = vmul.f32 %v5164, 2.0
      %v5195 = vmul.f32 %v5165, 2.0
      %v5196 = vadd.f32 %v4626, %v5166
      %v5197 = vadd.f32 %v4627, %v5167
      %v5198 = vadd.f32 %v4628, %v5168
      %v5199 = vadd.f32 %v4629, %v5169
      %v5200 = vadd.f32 %v4630, %v5170
      %v5201 = vadd.f32 %v4631, %v5171
      %v5202 = vadd.f32 %v4632, %v5172
      %v5203 = vadd.f32 %v4633, %v5173
      %v5204 = vadd.f32 %v4634, %v5174
      %v5205 = vadd.f32 %v4635, %v5175
      %v5206 = vadd.f32 %v4636, %v5176
      %v5207 = vadd.f32 %v4637, %v5177
      %v5208 = vadd.f32 %v4638, %v5178
      %v5209 = vadd.f32 %v4639, %v5179
      %v5210 = vadd.f32 %v4640, %v5180
      %v5211 = vadd.f32 %v4641, %v5181
      %v5212 = vadd.f32 %v4642, %v5182
      %v5213 = vadd.f32 %v4643, %v5183
      %v5214 = vadd.f32 %v4644, %v5184
      %v5215 = vadd.f32 %v4645, %v5185
      %v5216 = vadd.f32 %v4646, %v5186
      %v5217 = vadd.f32 %v4647, %v5187
      %v5218 = vadd.f32 %v4648, %v5188
      %v5219 = vadd.f32 %v4649, %v5189
      %v5220 = vadd.f32 %v4650, %v5190
      %v5221 = vadd.f32 %v4651, %v5191
      %v5222 = vadd.f32 %v4652, %v5192
      %v5223 = vadd.f32 %v4653, %v5193
      %v5224 = vadd.f32 %v4654, %v5194
      %v5225 = vadd.f32 %v4655, %v5195
      %v5226 = vmul.f32 %v5196, %v4145
      %v5227 = vmul.f32 %v5197, %v4145
      %v5228 = vmul.f32 %v5198, %v4145
      %v5229 = vmul.f32 %v5199, %v4145
      %v5230 = vmul.f32 %v5200, %v4145
      %v5231 = vmul.f32 %v5201, %v4145
      %v5232 = vmul.f32 %v5202, %v4145
      %v5233 = vmul.f32 %v5203, %v4145
      %v5234 = vmul.f32 %v5204, %v4145
      %v5235 = vmul.f32 %v5205, %v4145
      %v5236 = vmul.f32 %v5206, %v4145
      %v5237 = vmul.f32 %v5207, %v4145
      %v5238 = vmul.f32 %v5208, %v4145
      %v5239 = vmul.f32 %v5209, %v4145
      %v5240 = vmul.f32 %v5210, %v4145
      %v5241 = vmul.f32 %v5211, %v4145
      %v5242 = vmul.f32 %v5212, %v4145
      %v5243 = vmul.f32 %v5213, %v4145
      %v5244 = vmul.f32 %v5214, %v4145
      %v5245 = vmul.f32 %v5215, %v4145
      %v5246 = vmul.f32 %v5216, %v4145
      %v5247 = vmul.f32 %v5217, %v4145
      %v5248 = vmul.f32 %v5218, %v4145
      %v5249 = vmul.f32 %v5219, %v4145
      %v5250 = vmul.f32 %v5220, %v4145
      %v5251 = vmul.f32 %v5221, %v4145
      %v5252 = vmul.f32 %v5222, %v4145
      %v5253 = vmul.f32 %v5223, %v4145
      %v5254 = vmul.f32 %v5224, %v4145
      %v5255 = vmul.f32 %v5225, %v4145
      %5256 = vst.msk [vmem:[%s204] sm:$0xff] %vm608, %v3241
      %5257 = vst.msk [vmem:[%s204 + $0x8] sm:$0xff] %vm608, %v3242
      %vm5258 = vcmask 125952
      %5259 = vst.msk [vmem:[%s204 + $0x10] sm:$0xf] %vm5258, %v3243
      %5260 = vst.msk [vmem:[%s204 + $0x40] sm:$0xff] %vm608, %v3244
      %5261 = vst.msk [vmem:[%s204 + $0x48] sm:$0xff] %vm608, %v3245
      %5262 = vst.msk [vmem:[%s204 + $0x50] sm:$0xf] %vm5258, %v3246
      %5263 = vst.msk [vmem:[%s204 + $0x80] sm:$0xff] %vm608, %v3247
      %5264 = vst.msk [vmem:[%s204 + $0x88] sm:$0xff] %vm608, %v3248
      %5265 = vst.msk [vmem:[%s204 + $0x90] sm:$0xf] %vm5258, %v3249
      %5266 = vst.msk [vmem:[%s204 + $0xc0] sm:$0xff] %vm608, %v3250
      %5267 = vst.msk [vmem:[%s204 + $0xc8] sm:$0xff] %vm608, %v3251
      %5268 = vst.msk [vmem:[%s204 + $0xd0] sm:$0xf] %vm5258, %v3252
      %5269 = vst.msk [vmem:[%s204 + $0x100] sm:$0xff] %vm608, %v3253
      %5270 = vst.msk [vmem:[%s204 + $0x108] sm:$0xff] %vm608, %v3254
      %5271 = vst.msk [vmem:[%s204 + $0x110] sm:$0xf] %vm5258, %v3255
      %5272 = vst.msk [vmem:[%s204 + $0x140] sm:$0xff] %vm608, %v3256
      %5273 = vst.msk [vmem:[%s204 + $0x148] sm:$0xff] %vm608, %v3257
      %5274 = vst.msk [vmem:[%s204 + $0x150] sm:$0xf] %vm5258, %v3258
      %5275 = vst.msk [vmem:[%s204 + $0x180] sm:$0xff] %vm608, %v3259
      %5276 = vst.msk [vmem:[%s204 + $0x188] sm:$0xff] %vm608, %v3260
      %5277 = vst.msk [vmem:[%s204 + $0x190] sm:$0xf] %vm5258, %v3261
      %5278 = vst.msk [vmem:[%s204 + $0x1c0] sm:$0xff] %vm608, %v3262
      %5279 = vst.msk [vmem:[%s204 + $0x1c8] sm:$0xff] %vm608, %v3263
      %5280 = vst.msk [vmem:[%s204 + $0x1d0] sm:$0xf] %vm5258, %v3264
      %5281 = vst.msk [vmem:[%s204 + $0x200] sm:$0xff] %vm608, %v3265
      %5282 = vst.msk [vmem:[%s204 + $0x208] sm:$0xff] %vm608, %v3266
      %5283 = vst.msk [vmem:[%s204 + $0x210] sm:$0xf] %vm5258, %v3267
      %5284 = vst.msk [vmem:[%s204 + $0x240] sm:$0xff] %vm608, %v3268
      %5285 = vst.msk [vmem:[%s204 + $0x248] sm:$0xff] %vm608, %v3269
      %5286 = vst.msk [vmem:[%s204 + $0x250] sm:$0xf] %vm5258, %v3270
      %5287 = vst.msk [vmem:[%s204 + $0x14] sm:$0xff] %vm608, %v4326
      %5288 = vst.msk [vmem:[%s204 + $0x1c] sm:$0xff] %vm608, %v4327
      %5289 = vst.msk [vmem:[%s204 + $0x24] sm:$0xf] %vm5258, %v4328
      %5290 = vst.msk [vmem:[%s204 + $0x54] sm:$0xff] %vm608, %v4329
      %5291 = vst.msk [vmem:[%s204 + $0x5c] sm:$0xff] %vm608, %v4330
      %5292 = vst.msk [vmem:[%s204 + $0x64] sm:$0xf] %vm5258, %v4331
      %5293 = vst.msk [vmem:[%s204 + $0x94] sm:$0xff] %vm608, %v4332
      %5294 = vst.msk [vmem:[%s204 + $0x9c] sm:$0xff] %vm608, %v4333
      %5295 = vst.msk [vmem:[%s204 + $0xa4] sm:$0xf] %vm5258, %v4334
      %5296 = vst.msk [vmem:[%s204 + $0xd4] sm:$0xff] %vm608, %v4335
      %5297 = vst.msk [vmem:[%s204 + $0xdc] sm:$0xff] %vm608, %v4336
      %5298 = vst.msk [vmem:[%s204 + $0xe4] sm:$0xf] %vm5258, %v4337
      %5299 = vst.msk [vmem:[%s204 + $0x114] sm:$0xff] %vm608, %v4338
      %5300 = vst.msk [vmem:[%s204 + $0x11c] sm:$0xff] %vm608, %v4339
      %5301 = vst.msk [vmem:[%s204 + $0x124] sm:$0xf] %vm5258, %v4340
      %5302 = vst.msk [vmem:[%s204 + $0x154] sm:$0xff] %vm608, %v4341
      %5303 = vst.msk [vmem:[%s204 + $0x15c] sm:$0xff] %vm608, %v4342
      %5304 = vst.msk [vmem:[%s204 + $0x164] sm:$0xf] %vm5258, %v4343
      %5305 = vst.msk [vmem:[%s204 + $0x194] sm:$0xff] %vm608, %v4344
      %5306 = vst.msk [vmem:[%s204 + $0x19c] sm:$0xff] %vm608, %v4345
      %5307 = vst.msk [vmem:[%s204 + $0x1a4] sm:$0xf] %vm5258, %v4346
      %5308 = vst.msk [vmem:[%s204 + $0x1d4] sm:$0xff] %vm608, %v4347
      %5309 = vst.msk [vmem:[%s204 + $0x1dc] sm:$0xff] %vm608, %v4348
      %5310 = vst.msk [vmem:[%s204 + $0x1e4] sm:$0xf] %vm5258, %v4349
      %5311 = vst.msk [vmem:[%s204 + $0x214] sm:$0xff] %vm608, %v4350
      %5312 = vst.msk [vmem:[%s204 + $0x21c] sm:$0xff] %vm608, %v4351
      %5313 = vst.msk [vmem:[%s204 + $0x224] sm:$0xf] %vm5258, %v4352
      %5314 = vst.msk [vmem:[%s204 + $0x254] sm:$0xff] %vm608, %v4353
      %5315 = vst.msk [vmem:[%s204 + $0x25c] sm:$0xff] %vm608, %v4354
      %5316 = vst.msk [vmem:[%s204 + $0x264] sm:$0xf] %vm5258, %v4355
      %5317 = vst.msk [vmem:[%s204 + $0x28] sm:$0xff] %vm608, %v5226
      %5318 = vst.msk [vmem:[%s204 + $0x30] sm:$0xff] %vm608, %v5227
      %5319 = vst.msk [vmem:[%s204 + $0x38] sm:$0xf] %vm5258, %v5228
      %5320 = vst.msk [vmem:[%s204 + $0x68] sm:$0xff] %vm608, %v5229
      %5321 = vst.msk [vmem:[%s204 + $0x70] sm:$0xff] %vm608, %v5230
      %5322 = vst.msk [vmem:[%s204 + $0x78] sm:$0xf] %vm5258, %v5231
      %5323 = vst.msk [vmem:[%s204 + $0xa8] sm:$0xff] %vm608, %v5232
      %5324 = vst.msk [vmem:[%s204 + $0xb0] sm:$0xff] %vm608, %v5233
      %5325 = vst.msk [vmem:[%s204 + $0xb8] sm:$0xf] %vm5258, %v5234
      %5326 = vst.msk [vmem:[%s204 + $0xe8] sm:$0xff] %vm608, %v5235
      %5327 = vst.msk [vmem:[%s204 + $0xf0] sm:$0xff] %vm608, %v5236
      %5328 = vst.msk [vmem:[%s204 + $0xf8] sm:$0xf] %vm5258, %v5237
      %5329 = vst.msk [vmem:[%s204 + $0x128] sm:$0xff] %vm608, %v5238
      %5330 = vst.msk [vmem:[%s204 + $0x130] sm:$0xff] %vm608, %v5239
      %5331 = vst.msk [vmem:[%s204 + $0x138] sm:$0xf] %vm5258, %v5240
      %5332 = vst.msk [vmem:[%s204 + $0x168] sm:$0xff] %vm608, %v5241
      %5333 = vst.msk [vmem:[%s204 + $0x170] sm:$0xff] %vm608, %v5242
      %5334 = vst.msk [vmem:[%s204 + $0x178] sm:$0xf] %vm5258, %v5243
      %5335 = vst.msk [vmem:[%s204 + $0x1a8] sm:$0xff] %vm608, %v5244
      %5336 = vst.msk [vmem:[%s204 + $0x1b0] sm:$0xff] %vm608, %v5245
      %5337 = vst.msk [vmem:[%s204 + $0x1b8] sm:$0xf] %vm5258, %v5246
      %5338 = vst.msk [vmem:[%s204 + $0x1e8] sm:$0xff] %vm608, %v5247
      %5339 = vst.msk [vmem:[%s204 + $0x1f0] sm:$0xff] %vm608, %v5248
      %5340 = vst.msk [vmem:[%s204 + $0x1f8] sm:$0xf] %vm5258, %v5249
      %5341 = vst.msk [vmem:[%s204 + $0x228] sm:$0xff] %vm608, %v5250
      %5342 = vst.msk [vmem:[%s204 + $0x230] sm:$0xff] %vm608, %v5251
      %5343 = vst.msk [vmem:[%s204 + $0x238] sm:$0xf] %vm5258, %v5252
      %5344 = vst.msk [vmem:[%s204 + $0x268] sm:$0xff] %vm608, %v5253
      %5345 = vst.msk [vmem:[%s204 + $0x270] sm:$0xff] %vm608, %v5254
      %5346 = vst.msk [vmem:[%s204 + $0x278] sm:$0xf] %vm5258, %v5255
      %vm5347 = vcmask 122880
      %5348 = vst.msk [vmem:[%s204 + $0x3c] sm:$0x1] %vm5347, %v3241
      %5349 = vst.msk [vmem:[%s204 + $0x7c] sm:$0x1] %vm5347, %v3244
      %5350 = vst.msk [vmem:[%s204 + $0xbc] sm:$0x1] %vm5347, %v3247
      %5351 = vst.msk [vmem:[%s204 + $0xfc] sm:$0x1] %vm5347, %v3250
      %5352 = vst.msk [vmem:[%s204 + $0x13c] sm:$0x1] %vm5347, %v3253
      %5353 = vst.msk [vmem:[%s204 + $0x17c] sm:$0x1] %vm5347, %v3256
      %5354 = vst.msk [vmem:[%s204 + $0x1bc] sm:$0x1] %vm5347, %v3259
      %5355 = vst.msk [vmem:[%s204 + $0x1fc] sm:$0x1] %vm5347, %v3262
      %5356 = vst.msk [vmem:[%s204 + $0x23c] sm:$0x1] %vm5347, %v3265
      %5357 = vst.msk [vmem:[%s204 + $0x27c] sm:$0x1] %vm5347, %v3268
      %5358 = vst.msk [vmem:[%s204 + $0x3d] sm:$0x1] %vm5347, %v4326
      %5359 = vst.msk [vmem:[%s204 + $0x7d] sm:$0x1] %vm5347, %v4329
      %5360 = vst.msk [vmem:[%s204 + $0xbd] sm:$0x1] %vm5347, %v4332
      %5361 = vst.msk [vmem:[%s204 + $0xfd] sm:$0x1] %vm5347, %v4335
      %5362 = vst.msk [vmem:[%s204 + $0x13d] sm:$0x1] %vm5347, %v4338
      %5363 = vst.msk [vmem:[%s204 + $0x17d] sm:$0x1] %vm5347, %v4341
      %5364 = vst.msk [vmem:[%s204 + $0x1bd] sm:$0x1] %vm5347, %v4344
      %5365 = vst.msk [vmem:[%s204 + $0x1fd] sm:$0x1] %vm5347, %v4347
      %5366 = vst.msk [vmem:[%s204 + $0x23d] sm:$0x1] %vm5347, %v4350
      %5367 = vst.msk [vmem:[%s204 + $0x27d] sm:$0x1] %vm5347, %v4353
      %5368 = vst.msk [vmem:[%s204 + $0x3e] sm:$0x1] %vm5347, %v5226
      %5369 = vst.msk [vmem:[%s204 + $0x7e] sm:$0x1] %vm5347, %v5229
      %5370 = vst.msk [vmem:[%s204 + $0xbe] sm:$0x1] %vm5347, %v5232
      %5371 = vst.msk [vmem:[%s204 + $0xfe] sm:$0x1] %vm5347, %v5235
      %5372 = vst.msk [vmem:[%s204 + $0x13e] sm:$0x1] %vm5347, %v5238
      %5373 = vst.msk [vmem:[%s204 + $0x17e] sm:$0x1] %vm5347, %v5241
      %5374 = vst.msk [vmem:[%s204 + $0x1be] sm:$0x1] %vm5347, %v5244
      %5375 = vst.msk [vmem:[%s204 + $0x1fe] sm:$0x1] %vm5347, %v5247
      %5376 = vst.msk [vmem:[%s204 + $0x23e] sm:$0x1] %vm5347, %v5250
      %5377 = vst.msk [vmem:[%s204 + $0x27e] sm:$0x1] %vm5347, %v5253
      %s5378 = smul.u32 10, %s15
      %p5379 = scmp.lt.s32.totalorder %s5378, 19
      %s5380 = scalar_select %p5379, %s5378, 19
      %s5381 = smul.addr %s5380, 8
      %s5382 = smul.addr %s5381, 8
      %s5383 = scalar_lea.vmem %s4, %s5382
      // Predicated region
      $region37: #{tpu_custom_call.1} parent=35 // pred_check
        %p5384 = pneg %p122
      $region38: #{tpu_custom_call.1} parent=35 // pred_check_branch
        %5386 = sbr.rel (%p5384) target = $region40
      $region39: #{tpu_custom_call.1} parent=35 // pred_region
        %s5387 = smul.u32 10, %s15
      $region40: #{tpu_custom_call.1} parent=35 // pred_fallthru
        _
    $region36: #{tpu_custom_call.1} parent=5 // pred_fallthru
      _
    %p5388 = scmp.le.s32.totalorder 2, %s10
    // Predicated region
    $region41: #{tpu_custom_call.1} parent=5 // pred_check
      %p5389 = pneg %p5388
    $region42: #{tpu_custom_call.1} parent=5 // pred_check_branch
      %5391 = sbr.rel (%p5389) target = $region44
    $region43: #{tpu_custom_call.1} parent=5 // pred_region
      %s5392 = ssub.s32 %s10, 2
      // Predicated region
      $region45: #{tpu_custom_call.1} parent=43 // pred_check
        %p5393 = pneg %p128
      $region46: #{tpu_custom_call.1} parent=43 // pred_check_branch
        %5395 = sbr.rel (%p5393) target = $region48
      $region47: #{tpu_custom_call.1} parent=43 // pred_region
        %s5396 = smul.u32 10, %s16
        %p5397 = scmp.lt.s32.totalorder %s5396, 19
        %s5398 = scalar_select %p5397, %s5396, 19
        %s5399 = smul.addr %s5398, 8
        %s5400 = smul.addr %s5399, 8
        %s5401 = scalar_lea.vmem %s4, %s5400
      $region48: #{tpu_custom_call.1} parent=43 // pred_fallthru
        _
    $region44: #{tpu_custom_call.1} parent=5 // pred_fallthru
      _
  $region6: #{tpu_custom_call.1} parent=0 // loop_footer
    %s14 = sadd.s32 1, %s10
  $region7: #{tpu_custom_call.1} parent=0 // loop_footer_branch
    %9 = sbr.rel target = $region3
  $region8: #{tpu_custom_call.1} parent=0 // loop_exit
    _

</llo_original>
